<compile_context>
chip_gen: v5e
topology: v5e:2x2
jax: 0.10.0
libtpu: 0.0.40
codegen_flags: <defaults>
</compile_context>

<pallas_src>
import jax
import jax.numpy as jnp
import numpy as np
from jax import lax
from jax.experimental import pallas as pl
from jax.experimental.pallas import tpu as pltpu

EPS = 1e-6
NEG_BIG = -1e30          # stand-in for -inf in the running-max carry


def _softplus(x):
    return jnp.logaddexp(x, 0.0)


def _silu_bf16(x):
    # bf16 EUP/VPU path on v6e/v7x (~2x rate); compiler falls back to f32 on v5e.
    xb = x.astype(jnp.bfloat16)
    return (xb * jax.nn.sigmoid(xb)).astype(jnp.float32)


def _rmsnorm(x, w):
    return x * lax.rsqrt(jnp.mean(x * x, axis=-1, keepdims=True) + EPS) * w


def _ffn_slab(dff):
    """Column-slab width for the SwiGLU intermediate (bounds live VMEM)."""
    if dff <= 512:
        return dff
    for s in (512, 256, 128):
        if dff % s == 0:
            return s
    return dff


# ----------------------------- Pallas kernel -----------------------------
def sioconv_stack_kernel(
    x_ref, hid_ref, tril_ref,
    w_xn_ref, w_y_ref, w_ffn_ref, w_out_ref,
    b_xn_ref, b_ffn_ref, pk_ref,
    y_ref, h_ref,
    cum_c, m_c, s_c,
):
    """All depth layers on one (batch, seq-chunk) tile.  x_ref: (1, Tc, D) f32."""
    c = pl.program_id(1)
    depth = w_xn_ref.shape[0]
    Dff = w_out_ref.shape[1]
    x = x_ref[0]                          # (Tc, D) f32 residual stream, VMEM-resident
    tril_f = tril_ref[...]                # (Tc, Tc) f32 lower-triangular ones
    tril_b = tril_f.astype(jnp.bfloat16)
    Tc, D = x.shape
    slab = _ffn_slab(Dff)

    # Reset the per-(batch, layer) scan carries at the first chunk of each batch row.
    @pl.when(c == 0)
    def _():
        cum_c[...] = jnp.zeros(cum_c.shape, jnp.float32)
        m_c[...] = jnp.full(m_c.shape, NEG_BIG, jnp.float32)
        s_c[...] = jnp.zeros(s_c.shape, jnp.float32)

    for l in range(depth):                # static unroll over layers (depth is small/static)
        # Packed small vectors for layer l: rows = [norm1_w, norm2_w, b_y, b_out, pad...]
        n1 = pk_ref[l, 0:1, :]
        n2 = pk_ref[l, 1:2, :]
        b_y = pk_ref[l, 2:3, :]
        b_out = pk_ref[l, 3:4, :]
        hid0 = hid_ref[0, l:l + 1, :]     # (1, D) initial hidden state of this layer

        # ---- norm_sio_conv (RMSNorm, f32) ----
        xn = _rmsnorm(x, n1)
        xn_b = xn.astype(jnp.bfloat16)

        # ---- fused xn @ [W_ln_z | W_dt | W_y_gate]  (bf16 MXU, f32 accumulate) ----
        xn_proj = jnp.dot(xn_b, w_xn_ref[l],
                          preferred_element_type=jnp.float32) + b_xn_ref[l]
        lnz_pre = xn_proj[:, 0 * D:1 * D]
        dt = xn_proj[:, 1 * D:2 * D]
        gate = xn_proj[:, 2 * D:3 * D]

        ln_z = -_softplus(-lnz_pre)
        ln_da = -_softplus(-dt)
        ln_z_da = ln_z + ln_da
        ln_o_da = ln_da - dt              # identity: == -softplus(dt)

        # ---- chunked parallel scan (f32) ----
        # within-chunk prefix sum via the constant tril matmul + carried prefix sum
        # TODO(synk): swap this f32 matmul for a log2(Tc) pltpu.roll prefix sum (XLU).
        cum = jnp.dot(tril_f, ln_o_da, preferred_element_type=jnp.float32) + cum_c[l]

        # online (flash-style) logcumsumexp carry of arg = ln_z_da - cum
        arg = ln_z_da - cum
        m_prev = m_c[l]
        s_prev = s_c[l]
        m_new = jnp.maximum(m_prev, jnp.max(arg, axis=0, keepdims=True))
        p = jnp.exp(arg - m_new)
        # masked running sums: bf16 tril matmul (tril exact in bf16, p in (0,1])
        s_tot = (jnp.dot(tril_b, p.astype(jnp.bfloat16),
                         preferred_element_type=jnp.float32)
                 + s_prev * jnp.exp(m_prev - m_new))
        # exp/log fold: exp(m_new + cum) * s_tot == exp(logcumsumexp + cum);
        # the exponent is formed as (m_new + cum) BEFORE the exp.
        h = jnp.exp(m_new + cum) * s_tot + jnp.exp(cum) * hid0      # (Tc, D) f32

        # carries for the next chunk of this batch row
        cum_c[l] = cum[Tc - 1:Tc, :]
        m_c[l] = m_new
        s_c[l] = s_tot[Tc - 1:Tc, :]

        # ---- output projection + SiLU gate ----
        y = (jnp.dot(h.astype(jnp.bfloat16), w_y_ref[l],
                     preferred_element_type=jnp.float32) + b_y) * _silu_bf16(gate)
        x1 = y + x                        # residual (dropout is identity at p=0 / eval)

        # ---- norm_ffn + SwiGLU, column-slabbed over Dff to bound live VMEM ----
        x1n_b = _rmsnorm(x1, n2).astype(jnp.bfloat16)
        acc = None
        for s0 in range(0, Dff, slab):
            s1 = s0 + slab
            ff = (jnp.dot(x1n_b, w_ffn_ref[l, :, s0:s1],
                          preferred_element_type=jnp.float32)
                  + b_ffn_ref[l, :, s0:s1])
            fg = (jnp.dot(x1n_b, w_ffn_ref[l, :, Dff + s0:Dff + s1],
                          preferred_element_type=jnp.float32)
                  + b_ffn_ref[l, :, Dff + s0:Dff + s1])
            ffh = (ff * _silu_bf16(fg)).astype(jnp.bfloat16)
            contrib = jnp.dot(ffh, w_out_ref[l, s0:s1, :],
                              preferred_element_type=jnp.float32)
            acc = contrib if acc is None else acc + contrib
        x = acc + b_out + x1              # next layer's input, stays in VMEM

        h_ref[0, l] = h.astype(h_ref.dtype)   # hidden trajectory stored in bf16

    y_ref[0] = x


# ----------------------------- wrappers -----------------------------
def _const_spec(shape):
    """Full-extent, constant-index, single-buffered block (weights / constants)."""
    nd = len(shape)
    return pl.BlockSpec(shape, lambda b, c, _nd=nd: (0,) * _nd,
                        pipeline_mode=pl.Buffered(1))


def _vmem_limit_bytes(depth, Tc, D, Dff):
    bf16, f32 = 2, 4
    # single-buffered constants
    const_b = depth * bf16 * (D * 3 * D + D * D + D * 2 * Dff + Dff * D)
    const_b += depth * f32 * (3 * D + 2 * Dff + 8 * D) + f32 * Tc * Tc
    # double-buffered pipelined tiles (x in, hidden in, y out, h out)
    pipe_b = 2 * (Tc * D * f32 + depth * D * f32 + Tc * D * f32 + depth * Tc * D * bf16)
    scratch_b = 3 * depth * D * f32
    live_b = f32 * Tc * max(3 * D, D + 2 * _ffn_slab(Dff))   # largest f32 intermediates
    est = const_b + pipe_b + scratch_b + 4 * live_b
    try:
        cap = pltpu.get_tpu_info().vmem_capacity_bytes        # 64 MiB v7x, 128 MiB v5e/v6e
    except Exception:
        cap = 64 * 1024 * 1024
    # leave >= 8 MiB headroom for compiler-internal scratch
    return int(max(16 * 1024 * 1024, min(cap - 8 * 1024 * 1024, est + 8 * 1024 * 1024)))


@jax.jit
def _sioconv_ps_impl(x, hidden_stack, params, tril):
    B, S_pad, D = x.shape
    depth = hidden_stack.shape[1]
    Tc = tril.shape[0]
    C = S_pad // Tc
    Dff = params["w_out"].shape[1]

    grid_spec = pltpu.PrefetchScalarGridSpec(
        num_scalar_prefetch=0,
        grid=(B, C),
        in_specs=[
            pl.BlockSpec((1, Tc, D), lambda b, c: (b, c, 0)),       # x chunk
            pl.BlockSpec((1, depth, D), lambda b, c: (b, 0, 0)),    # initial hidden states
            _const_spec((Tc, Tc)),                                  # tril constant
            _const_spec((depth, D, 3 * D)),                         # [W_lnz|W_dt|W_ygate] bf16
            _const_spec((depth, D, D)),                             # W_y bf16
            _const_spec((depth, D, 2 * Dff)),                       # [W_fc|W_fc_gate] bf16
            _const_spec((depth, Dff, D)),                           # W_out bf16
            _const_spec((depth, 1, 3 * D)),                         # fused sio bias f32
            _const_spec((depth, 1, 2 * Dff)),                       # fused ffn bias f32
            _const_spec((depth, 8, D)),                             # [n1, n2, b_y, b_out] f32
        ],
        out_specs=[
            pl.BlockSpec((1, Tc, D), lambda b, c: (b, c, 0)),            # model output
            pl.BlockSpec((1, depth, Tc, D), lambda b, c: (b, 0, c, 0)),  # hidden trajectory
        ],
        scratch_shapes=[
            pltpu.VMEM((depth, 1, D), jnp.float32),   # cumulative ln(1-da) carry
            pltpu.VMEM((depth, 1, D), jnp.float32),   # running max carry
            pltpu.VMEM((depth, 1, D), jnp.float32),   # running sum-of-exp carry
        ],
    )
    y, h = pl.pallas_call(
        sioconv_stack_kernel,
        out_shape=(
            jax.ShapeDtypeStruct((B, S_pad, D), jnp.float32),
            jax.ShapeDtypeStruct((B, depth, S_pad, D), jnp.bfloat16),
        ),
        grid_spec=grid_spec,
        compiler_params=pltpu.CompilerParams(
            # NOTE: batch is the only "parallel" axis -> on v7x (2 TCs/chip) keep B >= 2.
            dimension_semantics=("parallel", "arbitrary"),
            vmem_limit_bytes=_vmem_limit_bytes(depth, Tc, D, Dff),
        ),
    )(
        x, hidden_stack, tril,
        params["w_xn"], params["w_y"], params["w_ffn"], params["w_out"],
        params["b_xn"], params["b_ffn"], params["pk"],
    )
    return y, h


def _pick_chunk(seq_len, chunk_size=None):
    if chunk_size is not None:
        assert chunk_size % 8 == 0, "chunk_size must be a multiple of 8"
        return chunk_size
    for t in (256, 128, 64, 32, 16, 8):     # cap at 256: tril cost grows as Tc^2 * D
        if seq_len % t == 0:
            return t
    return min(256, ((seq_len + 7) // 8) * 8)   # awkward lengths: pad instead of Tc=S


def sioconv_ps(x, hidden_stack, params, chunk_size=None):
    """x: (B, S, D) f32, hidden_stack: (B, depth, D) f32 ->
       ((B, S, D) f32, (B, depth, S, D) bf16 hidden trajectory)."""
    B, S, D = x.shape
    Tc = _pick_chunk(S, chunk_size)
    S_pad = ((S + Tc - 1) // Tc) * Tc
    if S_pad != S:
        x = jnp.pad(x, ((0, 0), (0, S_pad - S), (0, 0)))
    tril = jnp.asarray(np.tril(np.ones((Tc, Tc), np.float32)))
    y, h = _sioconv_ps_impl(x, hidden_stack, params, tril)
    if S_pad != S:
        y = y[:, :S]
        h = h[:, :, :S]
    return y, h


# ----------------------- pure-JAX reference (for checking) -----------------------
def _mm(x, w):
    # mirrors the kernel's precision: bf16 operands, f32 accumulation
    return jnp.dot(x.astype(jnp.bfloat16), w, preferred_element_type=jnp.float32)


def _ref_rmsnorm(x, w):
    return x * lax.rsqrt(jnp.mean(x * x, axis=-1, keepdims=True) + EPS) * w


def _ref_block(x, hidden, p):
    xn = _ref_rmsnorm(x, p["n1"][0])
    lnz_pre = _mm(xn, p["w_lnz"]) + p["b_lnz"]
    dt = _mm(xn, p["w_dt"]) + p["b_dt"]
    ln_z = -_softplus(-lnz_pre)
    ln_da = -_softplus(-dt)
    ln_z_da = ln_z + ln_da
    ln_o_da = -_softplus(dt)
    ln_o_da_cumsum = jnp.cumsum(ln_o_da, axis=1)
    arg = ln_z_da - ln_o_da_cumsum
    lce = lax.associative_scan(jnp.logaddexp, arg, axis=1)
    h = jnp.exp(lce + ln_o_da_cumsum) + jnp.exp(ln_o_da_cumsum) * hidden[:, None, :]
    y = (_mm(h, p["w_y"]) + p["b_y"]) * _silu_bf16(_mm(xn, p["w_yg"]) + p["b_yg"])
    x1 = y + x
    x1n = _ref_rmsnorm(x1, p["n2"][0])
    ff = (_mm(x1n, p["w_fc"]) + p["b_fc"]) * _silu_bf16(_mm(x1n, p["w_fcg"]) + p["b_fcg"])
    x2 = _mm(ff, p["w_out"]) + p["b_out"] + x1
    return x2, h


def _ref_model(x, hidden_stack, blocks):
    hs = []
    for i, p in enumerate(blocks):
        x, h = _ref_block(x, hidden_stack[:, i, :], p)
        hs.append(h)
    return x, jnp.stack(hs, axis=1)


# ----------------------------- parameter init / packing -----------------------------
def _init_linear(key, in_dim, out_dim):
    kw, kb = jax.random.split(key)
    bound = 1.0 / np.sqrt(in_dim)
    w = jax.random.uniform(kw, (in_dim, out_dim), jnp.float32, -bound, bound)
    b = jax.random.uniform(kb, (1, out_dim), jnp.float32, -bound, bound)
    return w.astype(jnp.bfloat16), b     # weights in bf16, biases in f32


def init_block_params(key, dim, dim_ff):
    keys = jax.random.split(key, 7)
    p = {}
    p["n1"] = jnp.ones((1, dim), jnp.float32)
    p["n2"] = jnp.ones((1, dim), jnp.float32)
    p["w_lnz"], p["b_lnz"] = _init_linear(keys[0], dim, dim)
    p["w_dt"], p["b_dt"] = _init_linear(keys[1], dim, dim)
    p["w_y"], p["b_y"] = _init_linear(keys[2], dim, dim)
    p["w_yg"], p["b_yg"] = _init_linear(keys[3], dim, dim)
    p["w_fc"], p["b_fc"] = _init_linear(keys[4], dim, dim_ff)
    p["w_fcg"], p["b_fcg"] = _init_linear(keys[5], dim, dim_ff)
    p["w_out"], p["b_out"] = _init_linear(keys[6], dim_ff, dim)
    return p


def pack_block_params(p):
    """Fuse shared-input weight matrices and pack the small bias/norm vectors."""
    dim = p["w_y"].shape[0]
    return {
        "w_xn": jnp.concatenate([p["w_lnz"], p["w_dt"], p["w_yg"]], axis=1),   # (D, 3D) bf16
        "b_xn": jnp.concatenate([p["b_lnz"], p["b_dt"], p["b_yg"]], axis=1),   # (1, 3D) f32
        "w_y": p["w_y"],                                                       # (D, D) bf16
        "w_ffn": jnp.concatenate([p["w_fc"], p["w_fcg"]], axis=1),             # (D, 2Dff) bf16
        "b_ffn": jnp.concatenate([p["b_fc"], p["b_fcg"]], axis=1),             # (1, 2Dff) f32
        "w_out": p["w_out"],                                                   # (Dff, D) bf16
        "pk": jnp.concatenate(
            [p["n1"], p["n2"], p["b_y"], p["b_out"],
             jnp.zeros((4, dim), jnp.float32)], axis=0),                       # (8, D) f32
    }


def stack_block_params(raw_blocks):
    """Stack per-layer packed params along a leading depth axis."""
    packs = [pack_block_params(p) for p in raw_blocks]
    return {k: jnp.stack([pk[k] for pk in packs], axis=0) for k in packs[0]}


if __name__ == "__main__":
    DEPTH, DIM, DIM_FF = 2, 128, 256     # lane-dense (multiple-of-128) feature dims
    B, S = 2, 16
    CHUNK = 8     # force two sequence chunks so the carried scan state is exercised

    key = jax.random.PRNGKey(0)
    k_x, k_h, k_p = jax.random.split(key, 3)
    x = jax.random.normal(k_x, (B, S, DIM), jnp.float32)
    hidden_stack = jax.random.normal(k_h, (B, DEPTH, DIM), jnp.float32)
    raw_blocks = [init_block_params(k, DIM, DIM_FF) for k in jax.random.split(k_p, DEPTH)]
    params = stack_block_params(raw_blocks)

    y, h_stack = sioconv_ps(x, hidden_stack, params, chunk_size=CHUNK)
    y, h_stack = jax.block_until_ready((y, h_stack))

    # Correctness check against a pure-JAX reference mirroring the kernel's precision
    # (bf16 weights / matmul operands / SiLU inputs, f32 scan math).  Tolerance covers
    # bf16 rounding, bf16 hidden-trajectory storage, and chunked-scan vs exact
    # logcumsumexp accumulation-order differences.
    y_ref, h_ref = _ref_model(x, hidden_stack, raw_blocks)
    np.testing.assert_allclose(np.asarray(y), np.asarray(y_ref), rtol=2e-2, atol=2e-2)
    np.testing.assert_allclose(np.asarray(h_stack.astype(jnp.float32)),
                               np.asarray(h_ref), rtol=2e-2, atol=2e-2)

    assert y.shape == (B, S, DIM) and h_stack.shape == (B, DEPTH, S, DIM)
    print("KERNEL_OK")
</pallas_src>

<mosaic_0001>
module attributes {stable_mosaic.version = 11 : i64} {
  func.func @sioconv_stack_kernel(%arg0: i32, %arg1: i32, %arg2: memref<1x8x128xf32, #tpu.memory_space<vmem>>, %arg3: memref<1x2x128xf32, #tpu.memory_space<vmem>>, %arg4: memref<8x8xf32, #tpu.memory_space<vmem>>, %arg5: memref<2x128x384xbf16, #tpu.memory_space<vmem>>, %arg6: memref<2x128x128xbf16, #tpu.memory_space<vmem>>, %arg7: memref<2x128x512xbf16, #tpu.memory_space<vmem>>, %arg8: memref<2x256x128xbf16, #tpu.memory_space<vmem>>, %arg9: memref<2x1x384xf32, #tpu.memory_space<vmem>>, %arg10: memref<2x1x512xf32, #tpu.memory_space<vmem>>, %arg11: memref<2x8x128xf32, #tpu.memory_space<vmem>>, %arg12: memref<1x8x128xf32, #tpu.memory_space<vmem>>, %arg13: memref<1x2x8x128xbf16, #tpu.memory_space<vmem>>, %arg14: memref<2x1x128xf32, #tpu.memory_space<vmem>>, %arg15: memref<2x1x128xf32, #tpu.memory_space<vmem>>, %arg16: memref<2x1x128xf32, #tpu.memory_space<vmem>>) attributes {dimension_semantics = [#tpu.dimension_semantics<parallel>, #tpu.dimension_semantics<arbitrary>], iteration_bounds = array<i64: 2, 2>, scalar_prefetch = 0 : i64, scratch_operands = 3 : i64, tpu.core_type = #tpu.core_type<tc>, window_params = [{transform_indices = @transform_0, window_bounds = array<i64: 1, 8, 128>}, {transform_indices = @transform_1, window_bounds = array<i64: 1, 2, 128>}, {pipeline_mode = #tpu.pipeline_mode<synchronous>, transform_indices = @transform_2, window_bounds = array<i64: 8, 8>}, {pipeline_mode = #tpu.pipeline_mode<synchronous>, transform_indices = @transform_3, window_bounds = array<i64: 2, 128, 384>}, {pipeline_mode = #tpu.pipeline_mode<synchronous>, transform_indices = @transform_4, window_bounds = array<i64: 2, 128, 128>}, {pipeline_mode = #tpu.pipeline_mode<synchronous>, transform_indices = @transform_5, window_bounds = array<i64: 2, 128, 512>}, {pipeline_mode = #tpu.pipeline_mode<synchronous>, transform_indices = @transform_6, window_bounds = array<i64: 2, 256, 128>}, {pipeline_mode = #tpu.pipeline_mode<synchronous>, transform_indices = @transform_7, window_bounds = array<i64: 2, 1, 384>}, {pipeline_mode = #tpu.pipeline_mode<synchronous>, transform_indices = @transform_8, window_bounds = array<i64: 2, 1, 512>}, {pipeline_mode = #tpu.pipeline_mode<synchronous>, transform_indices = @transform_9, window_bounds = array<i64: 2, 8, 128>}, {transform_indices = @transform_10, window_bounds = array<i64: 1, 8, 128>}, {transform_indices = @transform_11, window_bounds = array<i64: 1, 2, 8, 128>}]} {
    %c0 = arith.constant 0 : index
    %c0_0 = arith.constant 0 : index
    %c0_1 = arith.constant 0 : index
    %0 = vector.load %arg2[%c0, %c0_0, %c0_1] : memref<1x8x128xf32, #tpu.memory_space<vmem>>, vector<1x8x128xf32>
    %1 = vector.shape_cast %0 : vector<1x8x128xf32> to vector<8x128xf32>
    %c0_2 = arith.constant 0 : index
    %c0_3 = arith.constant 0 : index
    %2 = vector.load %arg4[%c0_2, %c0_3] : memref<8x8xf32, #tpu.memory_space<vmem>>, vector<8x8xf32>
    %3 = arith.truncf %2 : vector<8x8xf32> to vector<8x8xbf16>
    %c0_i32 = arith.constant 0 : i32
    %4 = arith.cmpi eq, %arg1, %c0_i32 : i32
    %5 = arith.extui %4 : i1 to i32
    %c0_i32_4 = arith.constant 0 : i32
    %6 = arith.cmpi ne, %5, %c0_i32_4 : i32
    scf.if %6 {
      %cst_173 = arith.constant 0.000000e+00 : f32
      %362 = vector.broadcast %cst_173 : f32 to vector<2x1x128xf32>
      %c0_174 = arith.constant 0 : index
      %c0_175 = arith.constant 0 : index
      %c0_176 = arith.constant 0 : index
      %363 = vector.load %arg14[%c0_174, %c0_175, %c0_176] : memref<2x1x128xf32, #tpu.memory_space<vmem>>, vector<2x1x128xf32>
      tpu.vector_store %arg14[%c0_174, %c0_175, %c0_176], %362 {strides = array<i32>} : memref<2x1x128xf32, #tpu.memory_space<vmem>>, vector<2x1x128xf32>,
      %cst_177 = arith.constant -1.000000e+30 : f32
      %364 = vector.broadcast %cst_177 : f32 to vector<2x1x128xf32>
      %c0_178 = arith.constant 0 : index
      %c0_179 = arith.constant 0 : index
      %c0_180 = arith.constant 0 : index
      %365 = vector.load %arg15[%c0_178, %c0_179, %c0_180] : memref<2x1x128xf32, #tpu.memory_space<vmem>>, vector<2x1x128xf32>
      tpu.vector_store %arg15[%c0_178, %c0_179, %c0_180], %364 {strides = array<i32>} : memref<2x1x128xf32, #tpu.memory_space<vmem>>, vector<2x1x128xf32>,
      %cst_181 = arith.constant 0.000000e+00 : f32
      %366 = vector.broadcast %cst_181 : f32 to vector<2x1x128xf32>
      %c0_182 = arith.constant 0 : index
      %c0_183 = arith.constant 0 : index
      %c0_184 = arith.constant 0 : index
      %367 = vector.load %arg16[%c0_182, %c0_183, %c0_184] : memref<2x1x128xf32, #tpu.memory_space<vmem>>, vector<2x1x128xf32>
      tpu.vector_store %arg16[%c0_182, %c0_183, %c0_184], %366 {strides = array<i32>} : memref<2x1x128xf32, #tpu.memory_space<vmem>>, vector<2x1x128xf32>,
    } else {
    }
    %c0_5 = arith.constant 0 : index
    %c0_6 = arith.constant 0 : index
    %c0_7 = arith.constant 0 : index
    %7 = vector.load %arg11[%c0_5, %c0_6, %c0_7] : memref<2x8x128xf32, #tpu.memory_space<vmem>>, vector<1x1x128xf32>
    %8 = vector.shape_cast %7 : vector<1x1x128xf32> to vector<1x128xf32>
    %c0_8 = arith.constant 0 : index
    %c1 = arith.constant 1 : index
    %c0_9 = arith.constant 0 : index
    %9 = vector.load %arg11[%c0_8, %c1, %c0_9] : memref<2x8x128xf32, #tpu.memory_space<vmem>>, vector<1x1x128xf32>
    %10 = vector.shape_cast %9 : vector<1x1x128xf32> to vector<1x128xf32>
    %c0_10 = arith.constant 0 : index
    %c2 = arith.constant 2 : index
    %c0_11 = arith.constant 0 : index
    %11 = vector.load %arg11[%c0_10, %c2, %c0_11] : memref<2x8x128xf32, #tpu.memory_space<vmem>>, vector<1x1x128xf32>
    %12 = vector.shape_cast %11 : vector<1x1x128xf32> to vector<1x128xf32>
    %c0_12 = arith.constant 0 : index
    %c3 = arith.constant 3 : index
    %c0_13 = arith.constant 0 : index
    %13 = vector.load %arg11[%c0_12, %c3, %c0_13] : memref<2x8x128xf32, #tpu.memory_space<vmem>>, vector<1x1x128xf32>
    %14 = vector.shape_cast %13 : vector<1x1x128xf32> to vector<1x128xf32>
    %c0_14 = arith.constant 0 : index
    %c0_15 = arith.constant 0 : index
    %c0_16 = arith.constant 0 : index
    %15 = vector.load %arg3[%c0_14, %c0_15, %c0_16] : memref<1x2x128xf32, #tpu.memory_space<vmem>>, vector<1x1x128xf32>
    %16 = vector.shape_cast %15 : vector<1x1x128xf32> to vector<1x128xf32>
    %17 = arith.mulf %1, %1 : vector<8x128xf32>
    %cst = arith.constant dense<0.000000e+00> : vector<8xf32>
    %18 = vector.multi_reduction <add>, %17, %cst [1] : vector<8x128xf32> to vector<8xf32>
    %19 = vector.shape_cast %18 : vector<8xf32> to vector<8x1xf32>
    %cst_17 = arith.constant 1.280000e+02 : f32
    %20 = vector.broadcast %cst_17 : f32 to vector<8x1xf32>
    %21 = arith.divf %19, %20 : vector<8x1xf32>
    %cst_18 = arith.constant 9.99999997E-7 : f32
    %22 = vector.broadcast %cst_18 : f32 to vector<8x1xf32>
    %23 = arith.addf %21, %22 : vector<8x1xf32>
    %24 = math.rsqrt %23 : vector<8x1xf32>
    %25 = vector.broadcast %24 : vector<8x1xf32> to vector<8x128xf32>
    %26 = arith.mulf %1, %25 : vector<8x128xf32>
    %27 = vector.broadcast %8 : vector<1x128xf32> to vector<8x128xf32>
    %28 = arith.mulf %26, %27 : vector<8x128xf32>
    %29 = arith.truncf %28 : vector<8x128xf32> to vector<8x128xbf16>
    %c0_19 = arith.constant 0 : index
    %c0_20 = arith.constant 0 : index
    %c0_21 = arith.constant 0 : index
    %30 = vector.load %arg5[%c0_19, %c0_20, %c0_21] : memref<2x128x384xbf16, #tpu.memory_space<vmem>>, vector<1x128x384xbf16>
    %31 = vector.shape_cast %30 : vector<1x128x384xbf16> to vector<128x384xbf16>
    %cst_22 = arith.constant dense<0.000000e+00> : vector<8x384xf32>
    %32 = tpu.matmul %29, %31, %cst_22 {dimension_numbers = #tpu.dot_dimension_numbers<[1], [0], [0], [1], [0, 0, 1, 1], [], []>} : vector<8x128xbf16>, vector<128x384xbf16>, vector<8x384xf32> -> vector<8x384xf32>
    %c0_23 = arith.constant 0 : index
    %c0_24 = arith.constant 0 : index
    %c0_25 = arith.constant 0 : index
    %33 = vector.load %arg9[%c0_23, %c0_24, %c0_25] : memref<2x1x384xf32, #tpu.memory_space<vmem>>, vector<1x1x384xf32>
    %34 = vector.shape_cast %33 : vector<1x1x384xf32> to vector<1x384xf32>
    %35 = vector.broadcast %34 : vector<1x384xf32> to vector<8x384xf32>
    %36 = arith.addf %32, %35 : vector<8x384xf32>
    %37 = vector.extract_strided_slice %36 {offsets = [0, 0], sizes = [8, 128], strides = [1, 1]} : vector<8x384xf32> to vector<8x128xf32>
    %38 = vector.extract_strided_slice %36 {offsets = [0, 128], sizes = [8, 128], strides = [1, 1]} : vector<8x384xf32> to vector<8x128xf32>
    %39 = vector.extract_strided_slice %36 {offsets = [0, 256], sizes = [8, 128], strides = [1, 1]} : vector<8x384xf32> to vector<8x128xf32>
    %cst_26 = arith.constant 0.000000e+00 : f32
    %40 = vector.broadcast %cst_26 : f32 to vector<8x128xf32>
    %41 = arith.subf %40, %37 : vector<8x128xf32>
    %cst_27 = arith.constant 0.000000e+00 : f32
    %42 = vector.broadcast %cst_27 : f32 to vector<8x128xf32>
    %43 = arith.maximumf %41, %42 : vector<8x128xf32>
    %44 = vector.broadcast %cst_27 : f32 to vector<8x128xf32>
    %45 = arith.subf %41, %44 : vector<8x128xf32>
    %46 = arith.cmpf one, %45, %45 : vector<8x128xf32>
    %47 = vector.broadcast %cst_27 : f32 to vector<8x128xf32>
    %48 = arith.addf %41, %47 : vector<8x128xf32>
    %49 = math.absf %45 : vector<8x128xf32>
    %cst_28 = arith.constant 0.000000e+00 : f32
    %50 = vector.broadcast %cst_28 : f32 to vector<8x128xf32>
    %51 = arith.subf %50, %49 : vector<8x128xf32>
    %52 = math.exp %51 : vector<8x128xf32>
    %53 = math.log1p %52 : vector<8x128xf32>
    %54 = arith.addf %43, %53 : vector<8x128xf32>
    %55 = arith.select %46, %48, %54 : vector<8x128xi1>, vector<8x128xf32>
    %cst_29 = arith.constant 0.000000e+00 : f32
    %56 = vector.broadcast %cst_29 : f32 to vector<8x128xf32>
    %57 = arith.subf %56, %55 : vector<8x128xf32>
    %cst_30 = arith.constant 0.000000e+00 : f32
    %58 = vector.broadcast %cst_30 : f32 to vector<8x128xf32>
    %59 = arith.subf %58, %38 : vector<8x128xf32>
    %cst_31 = arith.constant 0.000000e+00 : f32
    %60 = vector.broadcast %cst_31 : f32 to vector<8x128xf32>
    %61 = arith.maximumf %59, %60 : vector<8x128xf32>
    %62 = vector.broadcast %cst_31 : f32 to vector<8x128xf32>
    %63 = arith.subf %59, %62 : vector<8x128xf32>
    %64 = arith.cmpf one, %63, %63 : vector<8x128xf32>
    %65 = vector.broadcast %cst_31 : f32 to vector<8x128xf32>
    %66 = arith.addf %59, %65 : vector<8x128xf32>
    %67 = math.absf %63 : vector<8x128xf32>
    %cst_32 = arith.constant 0.000000e+00 : f32
    %68 = vector.broadcast %cst_32 : f32 to vector<8x128xf32>
    %69 = arith.subf %68, %67 : vector<8x128xf32>
    %70 = math.exp %69 : vector<8x128xf32>
    %71 = math.log1p %70 : vector<8x128xf32>
    %72 = arith.addf %61, %71 : vector<8x128xf32>
    %73 = arith.select %64, %66, %72 : vector<8x128xi1>, vector<8x128xf32>
    %cst_33 = arith.constant 0.000000e+00 : f32
    %74 = vector.broadcast %cst_33 : f32 to vector<8x128xf32>
    %75 = arith.subf %74, %73 : vector<8x128xf32>
    %76 = arith.addf %57, %75 : vector<8x128xf32>
    %77 = arith.subf %75, %38 : vector<8x128xf32>
    %cst_34 = arith.constant dense<0.000000e+00> : vector<8x128xf32>
    %78 = tpu.matmul %2, %77, %cst_34 {dimension_numbers = #tpu.dot_dimension_numbers<[1], [0], [0], [1], [0, 0, 1, 1], [], []>} : vector<8x8xf32>, vector<8x128xf32>, vector<8x128xf32> -> vector<8x128xf32>
    %c0_35 = arith.constant 0 : index
    %c0_36 = arith.constant 0 : index
    %c0_37 = arith.constant 0 : index
    %79 = vector.load %arg14[%c0_35, %c0_36, %c0_37] : memref<2x1x128xf32, #tpu.memory_space<vmem>>, vector<1x1x128xf32>
    %80 = vector.shape_cast %79 : vector<1x1x128xf32> to vector<1x128xf32>
    %81 = vector.broadcast %80 : vector<1x128xf32> to vector<8x128xf32>
    %82 = arith.addf %78, %81 : vector<8x128xf32>
    %83 = arith.subf %76, %82 : vector<8x128xf32>
    %c0_38 = arith.constant 0 : index
    %c0_39 = arith.constant 0 : index
    %c0_40 = arith.constant 0 : index
    %84 = vector.load %arg15[%c0_38, %c0_39, %c0_40] : memref<2x1x128xf32, #tpu.memory_space<vmem>>, vector<1x1x128xf32>
    %85 = vector.shape_cast %84 : vector<1x1x128xf32> to vector<1x128xf32>
    %c0_41 = arith.constant 0 : index
    %c0_42 = arith.constant 0 : index
    %c0_43 = arith.constant 0 : index
    %86 = vector.load %arg16[%c0_41, %c0_42, %c0_43] : memref<2x1x128xf32, #tpu.memory_space<vmem>>, vector<1x1x128xf32>
    %87 = vector.shape_cast %86 : vector<1x1x128xf32> to vector<1x128xf32>
    %cst_44 = arith.constant dense<0xFF800000> : vector<128xf32>
    %88 = vector.multi_reduction <maximumf>, %83, %cst_44 [0] : vector<8x128xf32> to vector<128xf32>
    %89 = vector.shape_cast %88 : vector<128xf32> to vector<1x128xf32>
    %90 = arith.maximumf %85, %89 : vector<1x128xf32>
    %91 = vector.broadcast %90 : vector<1x128xf32> to vector<8x128xf32>
    %92 = arith.subf %83, %91 : vector<8x128xf32>
    %93 = math.exp %92 : vector<8x128xf32>
    %94 = arith.truncf %93 : vector<8x128xf32> to vector<8x128xbf16>
    %cst_45 = arith.constant dense<0.000000e+00> : vector<8x128xf32>
    %95 = tpu.matmul %3, %94, %cst_45 {dimension_numbers = #tpu.dot_dimension_numbers<[1], [0], [0], [1], [0, 0, 1, 1], [], []>} : vector<8x8xbf16>, vector<8x128xbf16>, vector<8x128xf32> -> vector<8x128xf32>
    %96 = arith.subf %85, %90 : vector<1x128xf32>
    %97 = math.exp %96 : vector<1x128xf32>
    %98 = arith.mulf %87, %97 : vector<1x128xf32>
    %99 = vector.broadcast %98 : vector<1x128xf32> to vector<8x128xf32>
    %100 = arith.addf %95, %99 : vector<8x128xf32>
    %101 = vector.broadcast %90 : vector<1x128xf32> to vector<8x128xf32>
    %102 = arith.addf %101, %82 : vector<8x128xf32>
    %103 = math.exp %102 : vector<8x128xf32>
    %104 = arith.mulf %103, %100 : vector<8x128xf32>
    %105 = math.exp %82 : vector<8x128xf32>
    %106 = vector.broadcast %16 : vector<1x128xf32> to vector<8x128xf32>
    %107 = arith.mulf %105, %106 : vector<8x128xf32>
    %108 = arith.addf %104, %107 : vector<8x128xf32>
    %109 = vector.extract_strided_slice %82 {offsets = [7, 0], sizes = [1, 128], strides = [1, 1]} : vector<8x128xf32> to vector<1x128xf32>
    %c0_46 = arith.constant 0 : index
    %c0_47 = arith.constant 0 : index
    %c0_48 = arith.constant 0 : index
    %110 = vector.load %arg14[%c0_46, %c0_47, %c0_48] : memref<2x1x128xf32, #tpu.memory_space<vmem>>, vector<1x1x128xf32>
    %111 = vector.shape_cast %110 : vector<1x1x128xf32> to vector<1x128xf32>
    %112 = vector.shape_cast %109 : vector<1x128xf32> to vector<1x1x128xf32>
    tpu.vector_store %arg14[%c0_46, %c0_47, %c0_48], %112 {strides = array<i32>} : memref<2x1x128xf32, #tpu.memory_space<vmem>>, vector<1x1x128xf32>,
    %c0_49 = arith.constant 0 : index
    %c0_50 = arith.constant 0 : index
    %c0_51 = arith.constant 0 : index
    %113 = vector.load %arg15[%c0_49, %c0_50, %c0_51] : memref<2x1x128xf32, #tpu.memory_space<vmem>>, vector<1x1x128xf32>
    %114 = vector.shape_cast %113 : vector<1x1x128xf32> to vector<1x128xf32>
    %115 = vector.shape_cast %90 : vector<1x128xf32> to vector<1x1x128xf32>
    tpu.vector_store %arg15[%c0_49, %c0_50, %c0_51], %115 {strides = array<i32>} : memref<2x1x128xf32, #tpu.memory_space<vmem>>, vector<1x1x128xf32>,
    %116 = vector.extract_strided_slice %100 {offsets = [7, 0], sizes = [1, 128], strides = [1, 1]} : vector<8x128xf32> to vector<1x128xf32>
    %c0_52 = arith.constant 0 : index
    %c0_53 = arith.constant 0 : index
    %c0_54 = arith.constant 0 : index
    %117 = vector.load %arg16[%c0_52, %c0_53, %c0_54] : memref<2x1x128xf32, #tpu.memory_space<vmem>>, vector<1x1x128xf32>
    %118 = vector.shape_cast %117 : vector<1x1x128xf32> to vector<1x128xf32>
    %119 = vector.shape_cast %116 : vector<1x128xf32> to vector<1x1x128xf32>
    tpu.vector_store %arg16[%c0_52, %c0_53, %c0_54], %119 {strides = array<i32>} : memref<2x1x128xf32, #tpu.memory_space<vmem>>, vector<1x1x128xf32>,
    %120 = arith.truncf %108 : vector<8x128xf32> to vector<8x128xbf16>
    %c0_55 = arith.constant 0 : index
    %c0_56 = arith.constant 0 : index
    %c0_57 = arith.constant 0 : index
    %121 = vector.load %arg6[%c0_55, %c0_56, %c0_57] : memref<2x128x128xbf16, #tpu.memory_space<vmem>>, vector<1x128x128xbf16>
    %122 = vector.shape_cast %121 : vector<1x128x128xbf16> to vector<128x128xbf16>
    %cst_58 = arith.constant dense<0.000000e+00> : vector<8x128xf32>
    %123 = tpu.matmul %120, %122, %cst_58 {dimension_numbers = #tpu.dot_dimension_numbers<[1], [0], [0], [1], [0, 0, 1, 1], [], []>} : vector<8x128xbf16>, vector<128x128xbf16>, vector<8x128xf32> -> vector<8x128xf32>
    %124 = vector.broadcast %12 : vector<1x128xf32> to vector<8x128xf32>
    %125 = arith.addf %123, %124 : vector<8x128xf32>
    %126 = arith.truncf %39 : vector<8x128xf32> to vector<8x128xbf16>
    %127 = arith.negf %126 : vector<8x128xbf16>
    %128 = math.exp %127 : vector<8x128xbf16>
    %cst_59 = arith.constant 1.000000e+00 : bf16
    %129 = vector.broadcast %cst_59 : bf16 to vector<8x128xbf16>
    %130 = arith.addf %129, %128 : vector<8x128xbf16>
    %131 = arith.divf %129, %130 : vector<8x128xbf16>
    %132 = arith.mulf %126, %131 : vector<8x128xbf16>
    %133 = arith.extf %132 : vector<8x128xbf16> to vector<8x128xf32>
    %134 = arith.mulf %125, %133 : vector<8x128xf32>
    %135 = arith.addf %134, %1 : vector<8x128xf32>
    %136 = arith.mulf %135, %135 : vector<8x128xf32>
    %cst_60 = arith.constant dense<0.000000e+00> : vector<8xf32>
    %137 = vector.multi_reduction <add>, %136, %cst_60 [1] : vector<8x128xf32> to vector<8xf32>
    %138 = vector.shape_cast %137 : vector<8xf32> to vector<8x1xf32>
    %cst_61 = arith.constant 1.280000e+02 : f32
    %139 = vector.broadcast %cst_61 : f32 to vector<8x1xf32>
    %140 = arith.divf %138, %139 : vector<8x1xf32>
    %cst_62 = arith.constant 9.99999997E-7 : f32
    %141 = vector.broadcast %cst_62 : f32 to vector<8x1xf32>
    %142 = arith.addf %140, %141 : vector<8x1xf32>
    %143 = math.rsqrt %142 : vector<8x1xf32>
    %144 = vector.broadcast %143 : vector<8x1xf32> to vector<8x128xf32>
    %145 = arith.mulf %135, %144 : vector<8x128xf32>
    %146 = vector.broadcast %10 : vector<1x128xf32> to vector<8x128xf32>
    %147 = arith.mulf %145, %146 : vector<8x128xf32>
    %148 = arith.truncf %147 : vector<8x128xf32> to vector<8x128xbf16>
    %c0_63 = arith.constant 0 : index
    %c0_64 = arith.constant 0 : index
    %c0_65 = arith.constant 0 : index
    %149 = vector.load %arg7[%c0_63, %c0_64, %c0_65] : memref<2x128x512xbf16, #tpu.memory_space<vmem>>, vector<1x128x256xbf16>
    %150 = vector.shape_cast %149 : vector<1x128x256xbf16> to vector<128x256xbf16>
    %cst_66 = arith.constant dense<0.000000e+00> : vector<8x256xf32>
    %151 = tpu.matmul %148, %150, %cst_66 {dimension_numbers = #tpu.dot_dimension_numbers<[1], [0], [0], [1], [0, 0, 1, 1], [], []>} : vector<8x128xbf16>, vector<128x256xbf16>, vector<8x256xf32> -> vector<8x256xf32>
    %c0_67 = arith.constant 0 : index
    %c0_68 = arith.constant 0 : index
    %c0_69 = arith.constant 0 : index
    %152 = vector.load %arg10[%c0_67, %c0_68, %c0_69] : memref<2x1x512xf32, #tpu.memory_space<vmem>>, vector<1x1x256xf32>
    %153 = vector.shape_cast %152 : vector<1x1x256xf32> to vector<1x256xf32>
    %154 = vector.broadcast %153 : vector<1x256xf32> to vector<8x256xf32>
    %155 = arith.addf %151, %154 : vector<8x256xf32>
    %c0_70 = arith.constant 0 : index
    %c0_71 = arith.constant 0 : index
    %c256 = arith.constant 256 : index
    %156 = vector.load %arg7[%c0_70, %c0_71, %c256] : memref<2x128x512xbf16, #tpu.memory_space<vmem>>, vector<1x128x256xbf16>
    %157 = vector.shape_cast %156 : vector<1x128x256xbf16> to vector<128x256xbf16>
    %cst_72 = arith.constant dense<0.000000e+00> : vector<8x256xf32>
    %158 = tpu.matmul %148, %157, %cst_72 {dimension_numbers = #tpu.dot_dimension_numbers<[1], [0], [0], [1], [0, 0, 1, 1], [], []>} : vector<8x128xbf16>, vector<128x256xbf16>, vector<8x256xf32> -> vector<8x256xf32>
    %c0_73 = arith.constant 0 : index
    %c0_74 = arith.constant 0 : index
    %c256_75 = arith.constant 256 : index
    %159 = vector.load %arg10[%c0_73, %c0_74, %c256_75] : memref<2x1x512xf32, #tpu.memory_space<vmem>>, vector<1x1x256xf32>
    %160 = vector.shape_cast %159 : vector<1x1x256xf32> to vector<1x256xf32>
    %161 = vector.broadcast %160 : vector<1x256xf32> to vector<8x256xf32>
    %162 = arith.addf %158, %161 : vector<8x256xf32>
    %163 = arith.truncf %162 : vector<8x256xf32> to vector<8x256xbf16>
    %164 = arith.negf %163 : vector<8x256xbf16>
    %165 = math.exp %164 : vector<8x256xbf16>
    %cst_76 = arith.constant 1.000000e+00 : bf16
    %166 = vector.broadcast %cst_76 : bf16 to vector<8x256xbf16>
    %167 = arith.addf %166, %165 : vector<8x256xbf16>
    %168 = arith.divf %166, %167 : vector<8x256xbf16>
    %169 = arith.mulf %163, %168 : vector<8x256xbf16>
    %170 = arith.extf %169 : vector<8x256xbf16> to vector<8x256xf32>
    %171 = arith.mulf %155, %170 : vector<8x256xf32>
    %172 = arith.truncf %171 : vector<8x256xf32> to vector<8x256xbf16>
    %c0_77 = arith.constant 0 : index
    %c0_78 = arith.constant 0 : index
    %c0_79 = arith.constant 0 : index
    %173 = vector.load %arg8[%c0_77, %c0_78, %c0_79] : memref<2x256x128xbf16, #tpu.memory_space<vmem>>, vector<1x256x128xbf16>
    %174 = vector.shape_cast %173 : vector<1x256x128xbf16> to vector<256x128xbf16>
    %cst_80 = arith.constant dense<0.000000e+00> : vector<8x128xf32>
    %175 = tpu.matmul %172, %174, %cst_80 {dimension_numbers = #tpu.dot_dimension_numbers<[1], [0], [0], [1], [0, 0, 1, 1], [], []>} : vector<8x256xbf16>, vector<256x128xbf16>, vector<8x128xf32> -> vector<8x128xf32>
    %176 = vector.broadcast %14 : vector<1x128xf32> to vector<8x128xf32>
    %177 = arith.addf %175, %176 : vector<8x128xf32>
    %178 = arith.addf %177, %135 : vector<8x128xf32>
    %179 = arith.truncf %108 : vector<8x128xf32> to vector<8x128xbf16>
    %c0_81 = arith.constant 0 : index
    %c0_82 = arith.constant 0 : index
    %c0_83 = arith.constant 0 : index
    %c0_84 = arith.constant 0 : index
    %180 = vector.load %arg13[%c0_81, %c0_82, %c0_83, %c0_84] : memref<1x2x8x128xbf16, #tpu.memory_space<vmem>>, vector<1x1x8x128xbf16>
    %181 = vector.shape_cast %180 : vector<1x1x8x128xbf16> to vector<8x128xbf16>
    %182 = vector.shape_cast %179 : vector<8x128xbf16> to vector<1x1x8x128xbf16>
    tpu.vector_store %arg13[%c0_81, %c0_82, %c0_83, %c0_84], %182 {strides = array<i32>} : memref<1x2x8x128xbf16, #tpu.memory_space<vmem>>, vector<1x1x8x128xbf16>,
    %c1_85 = arith.constant 1 : index
    %c0_86 = arith.constant 0 : index
    %c0_87 = arith.constant 0 : index
    %183 = vector.load %arg11[%c1_85, %c0_86, %c0_87] : memref<2x8x128xf32, #tpu.memory_space<vmem>>, vector<1x1x128xf32>
    %184 = vector.shape_cast %183 : vector<1x1x128xf32> to vector<1x128xf32>
    %c1_88 = arith.constant 1 : index
    %c1_89 = arith.constant 1 : index
    %c0_90 = arith.constant 0 : index
    %185 = vector.load %arg11[%c1_88, %c1_89, %c0_90] : memref<2x8x128xf32, #tpu.memory_space<vmem>>, vector<1x1x128xf32>
    %186 = vector.shape_cast %185 : vector<1x1x128xf32> to vector<1x128xf32>
    %c1_91 = arith.constant 1 : index
    %c2_92 = arith.constant 2 : index
    %c0_93 = arith.constant 0 : index
    %187 = vector.load %arg11[%c1_91, %c2_92, %c0_93] : memref<2x8x128xf32, #tpu.memory_space<vmem>>, vector<1x1x128xf32>
    %188 = vector.shape_cast %187 : vector<1x1x128xf32> to vector<1x128xf32>
    %c1_94 = arith.constant 1 : index
    %c3_95 = arith.constant 3 : index
    %c0_96 = arith.constant 0 : index
    %189 = vector.load %arg11[%c1_94, %c3_95, %c0_96] : memref<2x8x128xf32, #tpu.memory_space<vmem>>, vector<1x1x128xf32>
    %190 = vector.shape_cast %189 : vector<1x1x128xf32> to vector<1x128xf32>
    %c0_97 = arith.constant 0 : index
    %c1_98 = arith.constant 1 : index
    %c0_99 = arith.constant 0 : index
    %191 = vector.load %arg3[%c0_97, %c1_98, %c0_99] : memref<1x2x128xf32, #tpu.memory_space<vmem>>, vector<1x1x128xf32>
    %192 = vector.shape_cast %191 : vector<1x1x128xf32> to vector<1x128xf32>
    %193 = arith.mulf %178, %178 : vector<8x128xf32>
    %cst_100 = arith.constant dense<0.000000e+00> : vector<8xf32>
    %194 = vector.multi_reduction <add>, %193, %cst_100 [1] : vector<8x128xf32> to vector<8xf32>
    %195 = vector.shape_cast %194 : vector<8xf32> to vector<8x1xf32>
    %cst_101 = arith.constant 1.280000e+02 : f32
    %196 = vector.broadcast %cst_101 : f32 to vector<8x1xf32>
    %197 = arith.divf %195, %196 : vector<8x1xf32>
    %cst_102 = arith.constant 9.99999997E-7 : f32
    %198 = vector.broadcast %cst_102 : f32 to vector<8x1xf32>
    %199 = arith.addf %197, %198 : vector<8x1xf32>
    %200 = math.rsqrt %199 : vector<8x1xf32>
    %201 = vector.broadcast %200 : vector<8x1xf32> to vector<8x128xf32>
    %202 = arith.mulf %178, %201 : vector<8x128xf32>
    %203 = vector.broadcast %184 : vector<1x128xf32> to vector<8x128xf32>
    %204 = arith.mulf %202, %203 : vector<8x128xf32>
    %205 = arith.truncf %204 : vector<8x128xf32> to vector<8x128xbf16>
    %c1_103 = arith.constant 1 : index
    %c0_104 = arith.constant 0 : index
    %c0_105 = arith.constant 0 : index
    %206 = vector.load %arg5[%c1_103, %c0_104, %c0_105] : memref<2x128x384xbf16, #tpu.memory_space<vmem>>, vector<1x128x384xbf16>
    %207 = vector.shape_cast %206 : vector<1x128x384xbf16> to vector<128x384xbf16>
    %cst_106 = arith.constant dense<0.000000e+00> : vector<8x384xf32>
    %208 = tpu.matmul %205, %207, %cst_106 {dimension_numbers = #tpu.dot_dimension_numbers<[1], [0], [0], [1], [0, 0, 1, 1], [], []>} : vector<8x128xbf16>, vector<128x384xbf16>, vector<8x384xf32> -> vector<8x384xf32>
    %c1_107 = arith.constant 1 : index
    %c0_108 = arith.constant 0 : index
    %c0_109 = arith.constant 0 : index
    %209 = vector.load %arg9[%c1_107, %c0_108, %c0_109] : memref<2x1x384xf32, #tpu.memory_space<vmem>>, vector<1x1x384xf32>
    %210 = vector.shape_cast %209 : vector<1x1x384xf32> to vector<1x384xf32>
    %211 = vector.broadcast %210 : vector<1x384xf32> to vector<8x384xf32>
    %212 = arith.addf %208, %211 : vector<8x384xf32>
    %213 = vector.extract_strided_slice %212 {offsets = [0, 0], sizes = [8, 128], strides = [1, 1]} : vector<8x384xf32> to vector<8x128xf32>
    %214 = vector.extract_strided_slice %212 {offsets = [0, 128], sizes = [8, 128], strides = [1, 1]} : vector<8x384xf32> to vector<8x128xf32>
    %215 = vector.extract_strided_slice %212 {offsets = [0, 256], sizes = [8, 128], strides = [1, 1]} : vector<8x384xf32> to vector<8x128xf32>
    %cst_110 = arith.constant 0.000000e+00 : f32
    %216 = vector.broadcast %cst_110 : f32 to vector<8x128xf32>
    %217 = arith.subf %216, %213 : vector<8x128xf32>
    %cst_111 = arith.constant 0.000000e+00 : f32
    %218 = vector.broadcast %cst_111 : f32 to vector<8x128xf32>
    %219 = arith.maximumf %217, %218 : vector<8x128xf32>
    %220 = vector.broadcast %cst_111 : f32 to vector<8x128xf32>
    %221 = arith.subf %217, %220 : vector<8x128xf32>
    %222 = arith.cmpf one, %221, %221 : vector<8x128xf32>
    %223 = vector.broadcast %cst_111 : f32 to vector<8x128xf32>
    %224 = arith.addf %217, %223 : vector<8x128xf32>
    %225 = math.absf %221 : vector<8x128xf32>
    %cst_112 = arith.constant 0.000000e+00 : f32
    %226 = vector.broadcast %cst_112 : f32 to vector<8x128xf32>
    %227 = arith.subf %226, %225 : vector<8x128xf32>
    %228 = math.exp %227 : vector<8x128xf32>
    %229 = math.log1p %228 : vector<8x128xf32>
    %230 = arith.addf %219, %229 : vector<8x128xf32>
    %231 = arith.select %222, %224, %230 : vector<8x128xi1>, vector<8x128xf32>
    %cst_113 = arith.constant 0.000000e+00 : f32
    %232 = vector.broadcast %cst_113 : f32 to vector<8x128xf32>
    %233 = arith.subf %232, %231 : vector<8x128xf32>
    %cst_114 = arith.constant 0.000000e+00 : f32
    %234 = vector.broadcast %cst_114 : f32 to vector<8x128xf32>
    %235 = arith.subf %234, %214 : vector<8x128xf32>
    %cst_115 = arith.constant 0.000000e+00 : f32
    %236 = vector.broadcast %cst_115 : f32 to vector<8x128xf32>
    %237 = arith.maximumf %235, %236 : vector<8x128xf32>
    %238 = vector.broadcast %cst_115 : f32 to vector<8x128xf32>
    %239 = arith.subf %235, %238 : vector<8x128xf32>
    %240 = arith.cmpf one, %239, %239 : vector<8x128xf32>
    %241 = vector.broadcast %cst_115 : f32 to vector<8x128xf32>
    %242 = arith.addf %235, %241 : vector<8x128xf32>
    %243 = math.absf %239 : vector<8x128xf32>
    %cst_116 = arith.constant 0.000000e+00 : f32
    %244 = vector.broadcast %cst_116 : f32 to vector<8x128xf32>
    %245 = arith.subf %244, %243 : vector<8x128xf32>
    %246 = math.exp %245 : vector<8x128xf32>
    %247 = math.log1p %246 : vector<8x128xf32>
    %248 = arith.addf %237, %247 : vector<8x128xf32>
    %249 = arith.select %240, %242, %248 : vector<8x128xi1>, vector<8x128xf32>
    %cst_117 = arith.constant 0.000000e+00 : f32
    %250 = vector.broadcast %cst_117 : f32 to vector<8x128xf32>
    %251 = arith.subf %250, %249 : vector<8x128xf32>
    %252 = arith.addf %233, %251 : vector<8x128xf32>
    %253 = arith.subf %251, %214 : vector<8x128xf32>
    %cst_118 = arith.constant dense<0.000000e+00> : vector<8x128xf32>
    %254 = tpu.matmul %2, %253, %cst_118 {dimension_numbers = #tpu.dot_dimension_numbers<[1], [0], [0], [1], [0, 0, 1, 1], [], []>} : vector<8x8xf32>, vector<8x128xf32>, vector<8x128xf32> -> vector<8x128xf32>
    %c1_119 = arith.constant 1 : index
    %c0_120 = arith.constant 0 : index
    %c0_121 = arith.constant 0 : index
    %255 = vector.load %arg14[%c1_119, %c0_120, %c0_121] : memref<2x1x128xf32, #tpu.memory_space<vmem>>, vector<1x1x128xf32>
    %256 = vector.shape_cast %255 : vector<1x1x128xf32> to vector<1x128xf32>
    %257 = vector.broadcast %256 : vector<1x128xf32> to vector<8x128xf32>
    %258 = arith.addf %254, %257 : vector<8x128xf32>
    %259 = arith.subf %252, %258 : vector<8x128xf32>
    %c1_122 = arith.constant 1 : index
    %c0_123 = arith.constant 0 : index
    %c0_124 = arith.constant 0 : index
    %260 = vector.load %arg15[%c1_122, %c0_123, %c0_124] : memref<2x1x128xf32, #tpu.memory_space<vmem>>, vector<1x1x128xf32>
    %261 = vector.shape_cast %260 : vector<1x1x128xf32> to vector<1x128xf32>
    %c1_125 = arith.constant 1 : index
    %c0_126 = arith.constant 0 : index
    %c0_127 = arith.constant 0 : index
    %262 = vector.load %arg16[%c1_125, %c0_126, %c0_127] : memref<2x1x128xf32, #tpu.memory_space<vmem>>, vector<1x1x128xf32>
    %263 = vector.shape_cast %262 : vector<1x1x128xf32> to vector<1x128xf32>
    %cst_128 = arith.constant dense<0xFF800000> : vector<128xf32>
    %264 = vector.multi_reduction <maximumf>, %259, %cst_128 [0] : vector<8x128xf32> to vector<128xf32>
    %265 = vector.shape_cast %264 : vector<128xf32> to vector<1x128xf32>
    %266 = arith.maximumf %261, %265 : vector<1x128xf32>
    %267 = vector.broadcast %266 : vector<1x128xf32> to vector<8x128xf32>
    %268 = arith.subf %259, %267 : vector<8x128xf32>
    %269 = math.exp %268 : vector<8x128xf32>
    %270 = arith.truncf %269 : vector<8x128xf32> to vector<8x128xbf16>
    %cst_129 = arith.constant dense<0.000000e+00> : vector<8x128xf32>
    %271 = tpu.matmul %3, %270, %cst_129 {dimension_numbers = #tpu.dot_dimension_numbers<[1], [0], [0], [1], [0, 0, 1, 1], [], []>} : vector<8x8xbf16>, vector<8x128xbf16>, vector<8x128xf32> -> vector<8x128xf32>
    %272 = arith.subf %261, %266 : vector<1x128xf32>
    %273 = math.exp %272 : vector<1x128xf32>
    %274 = arith.mulf %263, %273 : vector<1x128xf32>
    %275 = vector.broadcast %274 : vector<1x128xf32> to vector<8x128xf32>
    %276 = arith.addf %271, %275 : vector<8x128xf32>
    %277 = vector.broadcast %266 : vector<1x128xf32> to vector<8x128xf32>
    %278 = arith.addf %277, %258 : vector<8x128xf32>
    %279 = math.exp %278 : vector<8x128xf32>
    %280 = arith.mulf %279, %276 : vector<8x128xf32>
    %281 = math.exp %258 : vector<8x128xf32>
    %282 = vector.broadcast %192 : vector<1x128xf32> to vector<8x128xf32>
    %283 = arith.mulf %281, %282 : vector<8x128xf32>
    %284 = arith.addf %280, %283 : vector<8x128xf32>
    %285 = vector.extract_strided_slice %258 {offsets = [7, 0], sizes = [1, 128], strides = [1, 1]} : vector<8x128xf32> to vector<1x128xf32>
    %c1_130 = arith.constant 1 : index
    %c0_131 = arith.constant 0 : index
    %c0_132 = arith.constant 0 : index
    %286 = vector.load %arg14[%c1_130, %c0_131, %c0_132] : memref<2x1x128xf32, #tpu.memory_space<vmem>>, vector<1x1x128xf32>
    %287 = vector.shape_cast %286 : vector<1x1x128xf32> to vector<1x128xf32>
    %288 = vector.shape_cast %285 : vector<1x128xf32> to vector<1x1x128xf32>
    tpu.vector_store %arg14[%c1_130, %c0_131, %c0_132], %288 {strides = array<i32>} : memref<2x1x128xf32, #tpu.memory_space<vmem>>, vector<1x1x128xf32>,
    %c1_133 = arith.constant 1 : index
    %c0_134 = arith.constant 0 : index
    %c0_135 = arith.constant 0 : index
    %289 = vector.load %arg15[%c1_133, %c0_134, %c0_135] : memref<2x1x128xf32, #tpu.memory_space<vmem>>, vector<1x1x128xf32>
    %290 = vector.shape_cast %289 : vector<1x1x128xf32> to vector<1x128xf32>
    %291 = vector.shape_cast %266 : vector<1x128xf32> to vector<1x1x128xf32>
    tpu.vector_store %arg15[%c1_133, %c0_134, %c0_135], %291 {strides = array<i32>} : memref<2x1x128xf32, #tpu.memory_space<vmem>>, vector<1x1x128xf32>,
    %292 = vector.extract_strided_slice %276 {offsets = [7, 0], sizes = [1, 128], strides = [1, 1]} : vector<8x128xf32> to vector<1x128xf32>
    %c1_136 = arith.constant 1 : index
    %c0_137 = arith.constant 0 : index
    %c0_138 = arith.constant 0 : index
    %293 = vector.load %arg16[%c1_136, %c0_137, %c0_138] : memref<2x1x128xf32, #tpu.memory_space<vmem>>, vector<1x1x128xf32>
    %294 = vector.shape_cast %293 : vector<1x1x128xf32> to vector<1x128xf32>
    %295 = vector.shape_cast %292 : vector<1x128xf32> to vector<1x1x128xf32>
    tpu.vector_store %arg16[%c1_136, %c0_137, %c0_138], %295 {strides = array<i32>} : memref<2x1x128xf32, #tpu.memory_space<vmem>>, vector<1x1x128xf32>,
    %296 = arith.truncf %284 : vector<8x128xf32> to vector<8x128xbf16>
    %c1_139 = arith.constant 1 : index
    %c0_140 = arith.constant 0 : index
    %c0_141 = arith.constant 0 : index
    %297 = vector.load %arg6[%c1_139, %c0_140, %c0_141] : memref<2x128x128xbf16, #tpu.memory_space<vmem>>, vector<1x128x128xbf16>
    %298 = vector.shape_cast %297 : vector<1x128x128xbf16> to vector<128x128xbf16>
    %cst_142 = arith.constant dense<0.000000e+00> : vector<8x128xf32>
    %299 = tpu.matmul %296, %298, %cst_142 {dimension_numbers = #tpu.dot_dimension_numbers<[1], [0], [0], [1], [0, 0, 1, 1], [], []>} : vector<8x128xbf16>, vector<128x128xbf16>, vector<8x128xf32> -> vector<8x128xf32>
    %300 = vector.broadcast %188 : vector<1x128xf32> to vector<8x128xf32>
    %301 = arith.addf %299, %300 : vector<8x128xf32>
    %302 = arith.truncf %215 : vector<8x128xf32> to vector<8x128xbf16>
    %303 = arith.negf %302 : vector<8x128xbf16>
    %304 = math.exp %303 : vector<8x128xbf16>
    %cst_143 = arith.constant 1.000000e+00 : bf16
    %305 = vector.broadcast %cst_143 : bf16 to vector<8x128xbf16>
    %306 = arith.addf %305, %304 : vector<8x128xbf16>
    %307 = arith.divf %305, %306 : vector<8x128xbf16>
    %308 = arith.mulf %302, %307 : vector<8x128xbf16>
    %309 = arith.extf %308 : vector<8x128xbf16> to vector<8x128xf32>
    %310 = arith.mulf %301, %309 : vector<8x128xf32>
    %311 = arith.addf %310, %178 : vector<8x128xf32>
    %312 = arith.mulf %311, %311 : vector<8x128xf32>
    %cst_144 = arith.constant dense<0.000000e+00> : vector<8xf32>
    %313 = vector.multi_reduction <add>, %312, %cst_144 [1] : vector<8x128xf32> to vector<8xf32>
    %314 = vector.shape_cast %313 : vector<8xf32> to vector<8x1xf32>
    %cst_145 = arith.constant 1.280000e+02 : f32
    %315 = vector.broadcast %cst_145 : f32 to vector<8x1xf32>
    %316 = arith.divf %314, %315 : vector<8x1xf32>
    %cst_146 = arith.constant 9.99999997E-7 : f32
    %317 = vector.broadcast %cst_146 : f32 to vector<8x1xf32>
    %318 = arith.addf %316, %317 : vector<8x1xf32>
    %319 = math.rsqrt %318 : vector<8x1xf32>
    %320 = vector.broadcast %319 : vector<8x1xf32> to vector<8x128xf32>
    %321 = arith.mulf %311, %320 : vector<8x128xf32>
    %322 = vector.broadcast %186 : vector<1x128xf32> to vector<8x128xf32>
    %323 = arith.mulf %321, %322 : vector<8x128xf32>
    %324 = arith.truncf %323 : vector<8x128xf32> to vector<8x128xbf16>
    %c1_147 = arith.constant 1 : index
    %c0_148 = arith.constant 0 : index
    %c0_149 = arith.constant 0 : index
    %325 = vector.load %arg7[%c1_147, %c0_148, %c0_149] : memref<2x128x512xbf16, #tpu.memory_space<vmem>>, vector<1x128x256xbf16>
    %326 = vector.shape_cast %325 : vector<1x128x256xbf16> to vector<128x256xbf16>
    %cst_150 = arith.constant dense<0.000000e+00> : vector<8x256xf32>
    %327 = tpu.matmul %324, %326, %cst_150 {dimension_numbers = #tpu.dot_dimension_numbers<[1], [0], [0], [1], [0, 0, 1, 1], [], []>} : vector<8x128xbf16>, vector<128x256xbf16>, vector<8x256xf32> -> vector<8x256xf32>
    %c1_151 = arith.constant 1 : index
    %c0_152 = arith.constant 0 : index
    %c0_153 = arith.constant 0 : index
    %328 = vector.load %arg10[%c1_151, %c0_152, %c0_153] : memref<2x1x512xf32, #tpu.memory_space<vmem>>, vector<1x1x256xf32>
    %329 = vector.shape_cast %328 : vector<1x1x256xf32> to vector<1x256xf32>
    %330 = vector.broadcast %329 : vector<1x256xf32> to vector<8x256xf32>
    %331 = arith.addf %327, %330 : vector<8x256xf32>
    %c1_154 = arith.constant 1 : index
    %c0_155 = arith.constant 0 : index
    %c256_156 = arith.constant 256 : index
    %332 = vector.load %arg7[%c1_154, %c0_155, %c256_156] : memref<2x128x512xbf16, #tpu.memory_space<vmem>>, vector<1x128x256xbf16>
    %333 = vector.shape_cast %332 : vector<1x128x256xbf16> to vector<128x256xbf16>
    %cst_157 = arith.constant dense<0.000000e+00> : vector<8x256xf32>
    %334 = tpu.matmul %324, %333, %cst_157 {dimension_numbers = #tpu.dot_dimension_numbers<[1], [0], [0], [1], [0, 0, 1, 1], [], []>} : vector<8x128xbf16>, vector<128x256xbf16>, vector<8x256xf32> -> vector<8x256xf32>
    %c1_158 = arith.constant 1 : index
    %c0_159 = arith.constant 0 : index
    %c256_160 = arith.constant 256 : index
    %335 = vector.load %arg10[%c1_158, %c0_159, %c256_160] : memref<2x1x512xf32, #tpu.memory_space<vmem>>, vector<1x1x256xf32>
    %336 = vector.shape_cast %335 : vector<1x1x256xf32> to vector<1x256xf32>
    %337 = vector.broadcast %336 : vector<1x256xf32> to vector<8x256xf32>
    %338 = arith.addf %334, %337 : vector<8x256xf32>
    %339 = arith.truncf %338 : vector<8x256xf32> to vector<8x256xbf16>
    %340 = arith.negf %339 : vector<8x256xbf16>
    %341 = math.exp %340 : vector<8x256xbf16>
    %cst_161 = arith.constant 1.000000e+00 : bf16
    %342 = vector.broadcast %cst_161 : bf16 to vector<8x256xbf16>
    %343 = arith.addf %342, %341 : vector<8x256xbf16>
    %344 = arith.divf %342, %343 : vector<8x256xbf16>
    %345 = arith.mulf %339, %344 : vector<8x256xbf16>
    %346 = arith.extf %345 : vector<8x256xbf16> to vector<8x256xf32>
    %347 = arith.mulf %331, %346 : vector<8x256xf32>
    %348 = arith.truncf %347 : vector<8x256xf32> to vector<8x256xbf16>
    %c1_162 = arith.constant 1 : index
    %c0_163 = arith.constant 0 : index
    %c0_164 = arith.constant 0 : index
    %349 = vector.load %arg8[%c1_162, %c0_163, %c0_164] : memref<2x256x128xbf16, #tpu.memory_space<vmem>>, vector<1x256x128xbf16>
    %350 = vector.shape_cast %349 : vector<1x256x128xbf16> to vector<256x128xbf16>
    %cst_165 = arith.constant dense<0.000000e+00> : vector<8x128xf32>
    %351 = tpu.matmul %348, %350, %cst_165 {dimension_numbers = #tpu.dot_dimension_numbers<[1], [0], [0], [1], [0, 0, 1, 1], [], []>} : vector<8x256xbf16>, vector<256x128xbf16>, vector<8x128xf32> -> vector<8x128xf32>
    %352 = vector.broadcast %190 : vector<1x128xf32> to vector<8x128xf32>
    %353 = arith.addf %351, %352 : vector<8x128xf32>
    %354 = arith.addf %353, %311 : vector<8x128xf32>
    %355 = arith.truncf %284 : vector<8x128xf32> to vector<8x128xbf16>
    %c0_166 = arith.constant 0 : index
    %c1_167 = arith.constant 1 : index
    %c0_168 = arith.constant 0 : index
    %c0_169 = arith.constant 0 : index
    %356 = vector.load %arg13[%c0_166, %c1_167, %c0_168, %c0_169] : memref<1x2x8x128xbf16, #tpu.memory_space<vmem>>, vector<1x1x8x128xbf16>
    %357 = vector.shape_cast %356 : vector<1x1x8x128xbf16> to vector<8x128xbf16>
    %358 = vector.shape_cast %355 : vector<8x128xbf16> to vector<1x1x8x128xbf16>
    tpu.vector_store %arg13[%c0_166, %c1_167, %c0_168, %c0_169], %358 {strides = array<i32>} : memref<1x2x8x128xbf16, #tpu.memory_space<vmem>>, vector<1x1x8x128xbf16>,
    %c0_170 = arith.constant 0 : index
    %c0_171 = arith.constant 0 : index
    %c0_172 = arith.constant 0 : index
    %359 = vector.load %arg12[%c0_170, %c0_171, %c0_172] : memref<1x8x128xf32, #tpu.memory_space<vmem>>, vector<1x8x128xf32>
    %360 = vector.shape_cast %359 : vector<1x8x128xf32> to vector<8x128xf32>
    %361 = vector.shape_cast %354 : vector<8x128xf32> to vector<1x8x128xf32>
    tpu.vector_store %arg12[%c0_170, %c0_171, %c0_172], %361 {strides = array<i32>} : memref<1x8x128xf32, #tpu.memory_space<vmem>>, vector<1x8x128xf32>,
    return
  }
  func.func @transform_0(%arg0: i32, %arg1: i32) -> (i32, i32, i32) {
    %c0_i32 = arith.constant 0 : i32
    %c0_i32_0 = arith.constant 0 : i32
    return %arg0, %arg1, %c0_i32 : i32, i32, i32
  }
  func.func @transform_1(%arg0: i32, %arg1: i32) -> (i32, i32, i32) {
    %c0_i32 = arith.constant 0 : i32
    %c0_i32_0 = arith.constant 0 : i32
    %c0_i32_1 = arith.constant 0 : i32
    return %arg0, %c0_i32, %c0_i32_0 : i32, i32, i32
  }
  func.func @transform_2(%arg0: i32, %arg1: i32) -> (i32, i32) {
    %c0_i32 = arith.constant 0 : i32
    %c0_i32_0 = arith.constant 0 : i32
    %c0_i32_1 = arith.constant 0 : i32
    return %c0_i32, %c0_i32_0 : i32, i32
  }
  func.func @transform_3(%arg0: i32, %arg1: i32) -> (i32, i32, i32) {
    %c0_i32 = arith.constant 0 : i32
    %c0_i32_0 = arith.constant 0 : i32
    %c0_i32_1 = arith.constant 0 : i32
    %c0_i32_2 = arith.constant 0 : i32
    return %c0_i32, %c0_i32_0, %c0_i32_1 : i32, i32, i32
  }
  func.func @transform_4(%arg0: i32, %arg1: i32) -> (i32, i32, i32) {
    %c0_i32 = arith.constant 0 : i32
    %c0_i32_0 = arith.constant 0 : i32
    %c0_i32_1 = arith.constant 0 : i32
    %c0_i32_2 = arith.constant 0 : i32
    return %c0_i32, %c0_i32_0, %c0_i32_1 : i32, i32, i32
  }
  func.func @transform_5(%arg0: i32, %arg1: i32) -> (i32, i32, i32) {
    %c0_i32 = arith.constant 0 : i32
    %c0_i32_0 = arith.constant 0 : i32
    %c0_i32_1 = arith.constant 0 : i32
    %c0_i32_2 = arith.constant 0 : i32
    return %c0_i32, %c0_i32_0, %c0_i32_1 : i32, i32, i32
  }
  func.func @transform_6(%arg0: i32, %arg1: i32) -> (i32, i32, i32) {
    %c0_i32 = arith.constant 0 : i32
    %c0_i32_0 = arith.constant 0 : i32
    %c0_i32_1 = arith.constant 0 : i32
    %c0_i32_2 = arith.constant 0 : i32
    return %c0_i32, %c0_i32_0, %c0_i32_1 : i32, i32, i32
  }
  func.func @transform_7(%arg0: i32, %arg1: i32) -> (i32, i32, i32) {
    %c0_i32 = arith.constant 0 : i32
    %c0_i32_0 = arith.constant 0 : i32
    %c0_i32_1 = arith.constant 0 : i32
    %c0_i32_2 = arith.constant 0 : i32
    return %c0_i32, %c0_i32_0, %c0_i32_1 : i32, i32, i32
  }
  func.func @transform_8(%arg0: i32, %arg1: i32) -> (i32, i32, i32) {
    %c0_i32 = arith.constant 0 : i32
    %c0_i32_0 = arith.constant 0 : i32
    %c0_i32_1 = arith.constant 0 : i32
    %c0_i32_2 = arith.constant 0 : i32
    return %c0_i32, %c0_i32_0, %c0_i32_1 : i32, i32, i32
  }
  func.func @transform_9(%arg0: i32, %arg1: i32) -> (i32, i32, i32) {
    %c0_i32 = arith.constant 0 : i32
    %c0_i32_0 = arith.constant 0 : i32
    %c0_i32_1 = arith.constant 0 : i32
    %c0_i32_2 = arith.constant 0 : i32
    return %c0_i32, %c0_i32_0, %c0_i32_1 : i32, i32, i32
  }
  func.func @transform_10(%arg0: i32, %arg1: i32) -> (i32, i32, i32) {
    %c0_i32 = arith.constant 0 : i32
    %c0_i32_0 = arith.constant 0 : i32
    return %arg0, %arg1, %c0_i32 : i32, i32, i32
  }
  func.func @transform_11(%arg0: i32, %arg1: i32) -> (i32, i32, i32, i32) {
    %c0_i32 = arith.constant 0 : i32
    %c0_i32_0 = arith.constant 0 : i32
    %c0_i32_1 = arith.constant 0 : i32
    return %arg0, %c0_i32, %arg1, %c0_i32_0 : i32, i32, i32, i32
  }
}

</mosaic_0001>

<llo_original>
// kernel: _sioconv_ps_impl.1
$region0: #{_sioconv_ps_impl.1}
  #allocation0 [shape = 'u32[]', space=smem, size = 0x4, offset = 0x4, fixed_abs, tag = 'smem constant byte address 0x4 - core index']
  #allocation1 [shape = 'u32[72,128]{1,0:T(1,128)}', space=vmem, size = 0x9000, scoped, tag = 'internal scratch']
  #allocation2 [shape = 'f32[2,1,128]{2,1,0:T(1,128)}', space=vmem, size = 0x400, scoped, tag = 'scratch operand']
  #allocation3 [shape = 'f32[2,1,128]{2,1,0:T(1,128)}', space=vmem, size = 0x400, scoped, tag = 'scratch operand']
  #allocation4 [shape = 'f32[2,1,128]{2,1,0:T(1,128)}', space=vmem, size = 0x400, scoped, tag = 'scratch operand']
  %s0 = inlined_call_operand.hbm [shape: f32[2,16,128], index: 0, kind: input, shape index: {}]
  %s1 = inlined_call_operand.hbm [shape: f32[2,2,128], index: 1, kind: input, shape index: {}]
  %s2 = inlined_call_operand.vmem [shape: f32[8,8], index: 2, kind: input, shape index: {}]
  %s3 = inlined_call_operand.hbm [shape: bf16[2,128,384], index: 3, kind: input, shape index: {}]
  %s4 = inlined_call_operand.hbm [shape: bf16[2,128,128], index: 4, kind: input, shape index: {}]
  %s5 = inlined_call_operand.hbm [shape: bf16[2,128,512], index: 5, kind: input, shape index: {}]
  %s6 = inlined_call_operand.hbm [shape: bf16[2,256,128], index: 6, kind: input, shape index: {}]
  %s7 = inlined_call_operand.hbm [shape: f32[2,1,384], index: 7, kind: input, shape index: {}]
  %s8 = inlined_call_operand.hbm [shape: f32[2,1,512], index: 8, kind: input, shape index: {}]
  %s9 = inlined_call_operand.hbm [shape: f32[2,8,128], index: 9, kind: input, shape index: {}]
  %s10 = inlined_call_operand.hbm [shape: f32[2,16,128], index: 10, kind: output, shape index: {0}]
  %s11 = inlined_call_operand.hbm [shape: bf16[2,2,16,128], index: 11, kind: output, shape index: {1}]
  %12 = xla_tuple %s10, %s11
  %s13 = sld [smem:[#allocation0]]
  $region121: #{_sioconv_ps_impl.1} parent=0
    _
  %s15 = ssub.s32 1, %s13
  %s16 = scalar_select 0, %s15, %s13
  $region1: #{_sioconv_ps_impl.1} parent=0
    #allocation5 [shape = 'u8[8192]{0}', space=vmem, size = 0x2000, scoped, tag = 'input window, operand 0']
    #allocation6 [shape = 's32[2]{0}', space=sflag, size = 0x8, scoped, tag = 'scoped memory for _sioconv_ps_impl.1']
    #allocation7 [shape = 's32[2]{0}', space=sflag, size = 0x8, scoped, tag = 'scoped memory for _sioconv_ps_impl.1']
    #allocation8 [shape = 'u8[2048]{0}', space=vmem, size = 0x800, scoped, tag = 'input window, operand 1']
    #allocation9 [shape = 's32[2]{0}', space=sflag, size = 0x8, scoped, tag = 'scoped memory for _sioconv_ps_impl.1']
    #allocation10 [shape = 'u8[196608]{0}', space=vmem, size = 0x30000, scoped, tag = 'input window, operand 3, single buffered']
    #allocation11 [shape = 'u8[65536]{0}', space=vmem, size = 0x10000, scoped, tag = 'input window, operand 4, single buffered']
    #allocation12 [shape = 's32[1]{0}', space=sflag, size = 0x4, scoped, tag = 'scoped memory for _sioconv_ps_impl.1']
    #allocation13 [shape = 'u8[262144]{0}', space=vmem, size = 0x40000, scoped, tag = 'input window, operand 5, single buffered']
    #allocation14 [shape = 'u8[131072]{0}', space=vmem, size = 0x20000, scoped, tag = 'input window, operand 6, single buffered']
    #allocation15 [shape = 's32[1]{0}', space=sflag, size = 0x4, scoped, tag = 'scoped memory for _sioconv_ps_impl.1']
    #allocation16 [shape = 'u8[3072]{0}', space=vmem, size = 0xc00, scoped, tag = 'input window, operand 7, single buffered']
    #allocation17 [shape = 'u8[4096]{0}', space=vmem, size = 0x1000, scoped, tag = 'input window, operand 8, single buffered']
    #allocation18 [shape = 's32[1]{0}', space=sflag, size = 0x4, scoped, tag = 'scoped memory for _sioconv_ps_impl.1']
    #allocation19 [shape = 'u8[8192]{0}', space=vmem, size = 0x2000, scoped, tag = 'input window, operand 9, single buffered']
    #allocation20 [shape = 'u8[8192]{0}', space=vmem, size = 0x2000, scoped, tag = 'output window, operand 0']
    #allocation21 [shape = 'u8[8192]{0}', space=vmem, size = 0x2000, scoped, tag = 'output window, operand 1']
    #allocation22 [shape = 's32[2]{0}', space=sflag, size = 0x8, scoped, tag = 'scoped memory for _sioconv_ps_impl.1']
    %17 = vsyncpa [#allocation6], 0
    %s18 = scalar_lea.sflag [#allocation6], 1
    %19 = vsyncpa %s18, 0
    %20 = vsyncpa [#allocation9], 0
    %s21 = scalar_lea.sflag [#allocation9], 1
    %22 = vsyncpa %s21, 0
    %23 = vsyncpa [#allocation12], 0
    %24 = vsyncpa [#allocation15], 0
    %25 = vsyncpa [#allocation18], 0
    %26 = vsyncpa [#allocation7], 0
    %s27 = scalar_lea.sflag [#allocation7], 1
    %28 = vsyncpa %s27, 0
    %29 = vsyncpa [#allocation22], 0
    %s30 = scalar_lea.sflag [#allocation22], 1
    %31 = vsyncpa %s30, 0
    loop: start=0, step=1, limit=6
    $region2: #{_sioconv_ps_impl.1} parent=1 // loop_pre_header
      _
    $region3: #{_sioconv_ps_impl.1} parent=1 // loop_header
      %s33 = sphi 0, %s37
      %p34 = scmp.ge.s32.totalorder %s33, 6
      %s40 = sphi 0, %s52
      %s41 = sphi 0, %s48
      %s42 = sphi 0, %s40
      %s43 = sphi 0, %s41
      %s44 = sphi 0, %s42
      %s45 = sphi 0, %s43
      %s57 = sphi 0, %s59
      %s60 = sphi 0, %s57
      %s61 = sphi 0, %s60
      %s77 = sphi 0, %s61
      %s83 = sphi 0, %s85
      %s86 = sphi 0, %s83
      %s87 = sphi 0, %s86
      %s103 = sphi 0, %s87
      %s107 = sphi 0, %s107
      %s109 = sphi 0, %s107
      %s110 = sphi 0, %s109
      %s124 = sphi 0, %s110
      %s128 = sphi 0, %s128
      %s130 = sphi 0, %s128
      %s131 = sphi 0, %s130
      %s145 = sphi 0, %s131
      %s149 = sphi 0, %s149
      %s151 = sphi 0, %s149
      %s152 = sphi 0, %s151
      %s166 = sphi 0, %s152
      %s170 = sphi 0, %s170
      %s172 = sphi 0, %s170
      %s173 = sphi 0, %s172
      %s187 = sphi 0, %s173
      %s191 = sphi 0, %s191
      %s193 = sphi 0, %s191
      %s194 = sphi 0, %s193
      %s208 = sphi 0, %s194
      %s212 = sphi 0, %s212
      %s214 = sphi 0, %s212
      %s215 = sphi 0, %s214
      %s229 = sphi 0, %s215
      %s233 = sphi 0, %s233
      %s235 = sphi 0, %s233
      %s236 = sphi 0, %s235
      %s250 = sphi 0, %s236
      %s254 = sphi 0, %s254
      %s256 = sphi 0, %s254
      %s257 = sphi 0, %s256
      %s271 = sphi 0, %s257
      %s279 = sphi 0, %s281
      %s282 = sphi 0, %s279
      %s283 = sphi 0, %s282
      %s299 = sphi 0, %s283
      %s307 = sphi 0, %s309
      %s310 = sphi 0, %s307
      %s311 = sphi 0, %s310
      %s327 = sphi 0, %s311
    $region4: #{_sioconv_ps_impl.1} parent=1 // loop_header_branch
      %36 = sbr.rel (%p34) target = $region8
    $region5: #{_sioconv_ps_impl.1} parent=1 // loop_body
      %s38 = ssub.s32 %s33, 1
      %s39 = ssub.s32 %s33, 2
      %s46 = sadd.s32 1, %s41
      %p47 = scmp.ge.s32.totalorder %s46, 2
      %s48 = scalar_select %p47, 0, %s46
      %s49 = sadd.s32 1, %s40
      %s50 = scalar_select %p47, %s49, %s40
      %p51 = scmp.ge.s32.totalorder %s50, 2
      %s52 = scalar_select %p51, 0, %s50
      %s53 = ssub.s32 %s40, %s52
      %s54 = ssub.s32 %s41, %s48
      %s55 = sor.u32 %s53, %s54
      %p56 = scmp.eq.s32.totalorder %s55, 0
      %s58 = sadd.s32 %s57, 1
      %s59 = scalar_select %p56, %s57, %s58
      %p62 = pneg %p56
      %p63 = scmp.eq.s32.totalorder %s33, 3
      %p64 = por %p62, %p63
      %p65 = scmp.ne.s32.totalorder %s57, %s60
      %p66 = scmp.eq.s32.totalorder %s33, 0
      %p67 = por %p65, %p66
      %p68 = scmp.ne.s32.totalorder %s57, %s60
      %p69 = scmp.eq.s32.totalorder %s38, 3
      %p70 = por %p68, %p69
      %p71 = scmp.ne.s32.totalorder %s60, %s61
      %p72 = scmp.eq.s32.totalorder %s38, 0
      %p73 = por %p71, %p72
      %p74 = scmp.ne.s32.totalorder %s60, %s61
      %p75 = scmp.eq.s32.totalorder %s39, 3
      %p76 = por %p74, %p75
      %p78 = scmp.ne.s32.totalorder %s61, %s77
      %p79 = scmp.eq.s32.totalorder %s39, 0
      %p80 = por %p78, %p79
      %s81 = ssub.s32 %s40, %s52
      %p82 = scmp.eq.s32.totalorder %s81, 0
      %s84 = sadd.s32 %s83, 1
      %s85 = scalar_select %p82, %s83, %s84
      %p88 = pneg %p82
      %p89 = scmp.eq.s32.totalorder %s33, 3
      %p90 = por %p88, %p89
      %p91 = scmp.ne.s32.totalorder %s83, %s86
      %p92 = scmp.eq.s32.totalorder %s33, 0
      %p93 = por %p91, %p92
      %p94 = scmp.ne.s32.totalorder %s83, %s86
      %p95 = scmp.eq.s32.totalorder %s38, 3
      %p96 = por %p94, %p95
      %p97 = scmp.ne.s32.totalorder %s86, %s87
      %p98 = scmp.eq.s32.totalorder %s38, 0
      %p99 = por %p97, %p98
      %p100 = scmp.ne.s32.totalorder %s86, %s87
      %p101 = scmp.eq.s32.totalorder %s39, 3
      %p102 = por %p100, %p101
      %p104 = scmp.ne.s32.totalorder %s87, %s103
      %p105 = scmp.eq.s32.totalorder %s39, 0
      %p106 = por %p104, %p105
      %s108 = sadd.s32 %s107, 1
      %p111 = scmp.eq.s32.totalorder %s33, 3
      %p112 = scmp.ne.s32.totalorder %s107, %s109
      %p113 = scmp.eq.s32.totalorder %s33, 0
      %p114 = por %p112, %p113
      %p115 = scmp.ne.s32.totalorder %s107, %s109
      %p116 = scmp.eq.s32.totalorder %s38, 3
      %p117 = por %p115, %p116
      %p118 = scmp.ne.s32.totalorder %s109, %s110
      %p119 = scmp.eq.s32.totalorder %s38, 0
      %p120 = por %p118, %p119
      %p121 = scmp.ne.s32.totalorder %s109, %s110
      %p122 = scmp.eq.s32.totalorder %s39, 3
      %p123 = por %p121, %p122
      %p125 = scmp.ne.s32.totalorder %s110, %s124
      %p126 = scmp.eq.s32.totalorder %s39, 0
      %p127 = por %p125, %p126
      %s129 = sadd.s32 %s128, 1
      %p132 = scmp.eq.s32.totalorder %s33, 3
      %p133 = scmp.ne.s32.totalorder %s128, %s130
      %p134 = scmp.eq.s32.totalorder %s33, 0
      %p135 = por %p133, %p134
      %p136 = scmp.ne.s32.totalorder %s128, %s130
      %p137 = scmp.eq.s32.totalorder %s38, 3
      %p138 = por %p136, %p137
      %p139 = scmp.ne.s32.totalorder %s130, %s131
      %p140 = scmp.eq.s32.totalorder %s38, 0
      %p141 = por %p139, %p140
      %p142 = scmp.ne.s32.totalorder %s130, %s131
      %p143 = scmp.eq.s32.totalorder %s39, 3
      %p144 = por %p142, %p143
      %p146 = scmp.ne.s32.totalorder %s131, %s145
      %p147 = scmp.eq.s32.totalorder %s39, 0
      %p148 = por %p146, %p147
      %s150 = sadd.s32 %s149, 1
      %p153 = scmp.eq.s32.totalorder %s33, 3
      %p154 = scmp.ne.s32.totalorder %s149, %s151
      %p155 = scmp.eq.s32.totalorder %s33, 0
      %p156 = por %p154, %p155
      %p157 = scmp.ne.s32.totalorder %s149, %s151
      %p158 = scmp.eq.s32.totalorder %s38, 3
      %p159 = por %p157, %p158
      %p160 = scmp.ne.s32.totalorder %s151, %s152
      %p161 = scmp.eq.s32.totalorder %s38, 0
      %p162 = por %p160, %p161
      %p163 = scmp.ne.s32.totalorder %s151, %s152
      %p164 = scmp.eq.s32.totalorder %s39, 3
      %p165 = por %p163, %p164
      %p167 = scmp.ne.s32.totalorder %s152, %s166
      %p168 = scmp.eq.s32.totalorder %s39, 0
      %p169 = por %p167, %p168
      %s171 = sadd.s32 %s170, 1
      %p174 = scmp.eq.s32.totalorder %s33, 3
      %p175 = scmp.ne.s32.totalorder %s170, %s172
      %p176 = scmp.eq.s32.totalorder %s33, 0
      %p177 = por %p175, %p176
      %p178 = scmp.ne.s32.totalorder %s170, %s172
      %p179 = scmp.eq.s32.totalorder %s38, 3
      %p180 = por %p178, %p179
      %p181 = scmp.ne.s32.totalorder %s172, %s173
      %p182 = scmp.eq.s32.totalorder %s38, 0
      %p183 = por %p181, %p182
      %p184 = scmp.ne.s32.totalorder %s172, %s173
      %p185 = scmp.eq.s32.totalorder %s39, 3
      %p186 = por %p184, %p185
      %p188 = scmp.ne.s32.totalorder %s173, %s187
      %p189 = scmp.eq.s32.totalorder %s39, 0
      %p190 = por %p188, %p189
      %s192 = sadd.s32 %s191, 1
      %p195 = scmp.eq.s32.totalorder %s33, 3
      %p196 = scmp.ne.s32.totalorder %s191, %s193
      %p197 = scmp.eq.s32.totalorder %s33, 0
      %p198 = por %p196, %p197
      %p199 = scmp.ne.s32.totalorder %s191, %s193
      %p200 = scmp.eq.s32.totalorder %s38, 3
      %p201 = por %p199, %p200
      %p202 = scmp.ne.s32.totalorder %s193, %s194
      %p203 = scmp.eq.s32.totalorder %s38, 0
      %p204 = por %p202, %p203
      %p205 = scmp.ne.s32.totalorder %s193, %s194
      %p206 = scmp.eq.s32.totalorder %s39, 3
      %p207 = por %p205, %p206
      %p209 = scmp.ne.s32.totalorder %s194, %s208
      %p210 = scmp.eq.s32.totalorder %s39, 0
      %p211 = por %p209, %p210
      %s213 = sadd.s32 %s212, 1
      %p216 = scmp.eq.s32.totalorder %s33, 3
      %p217 = scmp.ne.s32.totalorder %s212, %s214
      %p218 = scmp.eq.s32.totalorder %s33, 0
      %p219 = por %p217, %p218
      %p220 = scmp.ne.s32.totalorder %s212, %s214
      %p221 = scmp.eq.s32.totalorder %s38, 3
      %p222 = por %p220, %p221
      %p223 = scmp.ne.s32.totalorder %s214, %s215
      %p224 = scmp.eq.s32.totalorder %s38, 0
      %p225 = por %p223, %p224
      %p226 = scmp.ne.s32.totalorder %s214, %s215
      %p227 = scmp.eq.s32.totalorder %s39, 3
      %p228 = por %p226, %p227
      %p230 = scmp.ne.s32.totalorder %s215, %s229
      %p231 = scmp.eq.s32.totalorder %s39, 0
      %p232 = por %p230, %p231
      %s234 = sadd.s32 %s233, 1
      %p237 = scmp.eq.s32.totalorder %s33, 3
      %p238 = scmp.ne.s32.totalorder %s233, %s235
      %p239 = scmp.eq.s32.totalorder %s33, 0
      %p240 = por %p238, %p239
      %p241 = scmp.ne.s32.totalorder %s233, %s235
      %p242 = scmp.eq.s32.totalorder %s38, 3
      %p243 = por %p241, %p242
      %p244 = scmp.ne.s32.totalorder %s235, %s236
      %p245 = scmp.eq.s32.totalorder %s38, 0
      %p246 = por %p244, %p245
      %p247 = scmp.ne.s32.totalorder %s235, %s236
      %p248 = scmp.eq.s32.totalorder %s39, 3
      %p249 = por %p247, %p248
      %p251 = scmp.ne.s32.totalorder %s236, %s250
      %p252 = scmp.eq.s32.totalorder %s39, 0
      %p253 = por %p251, %p252
      %s255 = sadd.s32 %s254, 1
      %p258 = scmp.eq.s32.totalorder %s33, 3
      %p259 = scmp.ne.s32.totalorder %s254, %s256
      %p260 = scmp.eq.s32.totalorder %s33, 0
      %p261 = por %p259, %p260
      %p262 = scmp.ne.s32.totalorder %s254, %s256
      %p263 = scmp.eq.s32.totalorder %s38, 3
      %p264 = por %p262, %p263
      %p265 = scmp.ne.s32.totalorder %s256, %s257
      %p266 = scmp.eq.s32.totalorder %s38, 0
      %p267 = por %p265, %p266
      %p268 = scmp.ne.s32.totalorder %s256, %s257
      %p269 = scmp.eq.s32.totalorder %s39, 3
      %p270 = por %p268, %p269
      %p272 = scmp.ne.s32.totalorder %s257, %s271
      %p273 = scmp.eq.s32.totalorder %s39, 0
      %p274 = por %p272, %p273
      %s275 = ssub.s32 %s40, %s52
      %s276 = ssub.s32 %s41, %s48
      %s277 = sor.u32 %s275, %s276
      %p278 = scmp.eq.s32.totalorder %s277, 0
      %s280 = sadd.s32 %s279, 1
      %s281 = scalar_select %p278, %s279, %s280
      %p284 = pneg %p278
      %p285 = scmp.eq.s32.totalorder %s33, 3
      %p286 = por %p284, %p285
      %p287 = scmp.ne.s32.totalorder %s279, %s282
      %p288 = scmp.eq.s32.totalorder %s33, 0
      %p289 = por %p287, %p288
      %p290 = scmp.ne.s32.totalorder %s279, %s282
      %p291 = scmp.eq.s32.totalorder %s38, 3
      %p292 = por %p290, %p291
      %p293 = scmp.ne.s32.totalorder %s282, %s283
      %p294 = scmp.eq.s32.totalorder %s38, 0
      %p295 = por %p293, %p294
      %p296 = scmp.ne.s32.totalorder %s282, %s283
      %p297 = scmp.eq.s32.totalorder %s39, 3
      %p298 = por %p296, %p297
      %p300 = scmp.ne.s32.totalorder %s283, %s299
      %p301 = scmp.eq.s32.totalorder %s39, 0
      %p302 = por %p300, %p301
      %s303 = ssub.s32 %s40, %s52
      %s304 = ssub.s32 %s41, %s48
      %s305 = sor.u32 %s303, %s304
      %p306 = scmp.eq.s32.totalorder %s305, 0
      %s308 = sadd.s32 %s307, 1
      %s309 = scalar_select %p306, %s307, %s308
      %p312 = pneg %p306
      %p313 = scmp.eq.s32.totalorder %s33, 3
      %p314 = por %p312, %p313
      %p315 = scmp.ne.s32.totalorder %s307, %s310
      %p316 = scmp.eq.s32.totalorder %s33, 0
      %p317 = por %p315, %p316
      %p318 = scmp.ne.s32.totalorder %s307, %s310
      %p319 = scmp.eq.s32.totalorder %s38, 3
      %p320 = por %p318, %p319
      %p321 = scmp.ne.s32.totalorder %s310, %s311
      %p322 = scmp.eq.s32.totalorder %s38, 0
      %p323 = por %p321, %p322
      %p324 = scmp.ne.s32.totalorder %s310, %s311
      %p325 = scmp.eq.s32.totalorder %s39, 3
      %p326 = por %p324, %p325
      %p328 = scmp.ne.s32.totalorder %s311, %s327
      %p329 = scmp.eq.s32.totalorder %s39, 0
      %p330 = por %p328, %p329
      %p331 = scmp.le.s32.totalorder 1, %s33
      %p332 = scmp.lt.s32.totalorder %s33, 5
      %p333 = pnand %p331, %p332
      %p334 = pneg %p333
      // Predicated region
      $region9: #{_sioconv_ps_impl.1} parent=5 // pred_check
        _
      $region10: #{_sioconv_ps_impl.1} parent=5 // pred_check_branch
        %336 = sbr.rel (%p333) target = $region12
      $region11: #{_sioconv_ps_impl.1} parent=5 // pred_region
        %s337 = ssub.s32 %s33, 1
        // Predicated region
        $region13: #{_sioconv_ps_impl.1} parent=11 // pred_check
          %p338 = pneg %p120
        $region14: #{_sioconv_ps_impl.1} parent=11 // pred_check_branch
          %340 = sbr.rel (%p338) target = $region16
        $region15: #{_sioconv_ps_impl.1} parent=11 // pred_region
          _
        $region16: #{_sioconv_ps_impl.1} parent=11 // pred_fallthru
          _
        // Predicated region
        $region17: #{_sioconv_ps_impl.1} parent=11 // pred_check
          %p341 = pneg %p141
        $region18: #{_sioconv_ps_impl.1} parent=11 // pred_check_branch
          %343 = sbr.rel (%p341) target = $region20
        $region19: #{_sioconv_ps_impl.1} parent=11 // pred_region
          %345 = vsyncadd [#allocation9], 0
          %s346 = sshll.u32 %s3, 4
          %s347 = int_to_ptr.hbm [resolvable:$true] %s346
          %s348 = sshll.u32 [#allocation10], 4
          %s349 = int_to_ptr.vmem [resolvable:$true] %s348
          %354 = dma.hbm_to_vmem [thread:$0]  %s347, 6144, %s349, [#allocation9], 192, 192, 12
        $region20: #{_sioconv_ps_impl.1} parent=11 // pred_fallthru
          _
        // Predicated region
        $region21: #{_sioconv_ps_impl.1} parent=11 // pred_check
          %p355 = pneg %p162
        $region22: #{_sioconv_ps_impl.1} parent=11 // pred_check_branch
          %357 = sbr.rel (%p355) target = $region24
        $region23: #{_sioconv_ps_impl.1} parent=11 // pred_region
          %359 = vsyncadd [#allocation12], 0
          %s360 = sshll.u32 %s4, 4
          %s361 = int_to_ptr.hbm [resolvable:$true] %s360
          %s362 = sshll.u32 [#allocation11], 4
          %s363 = int_to_ptr.vmem [resolvable:$true] %s362
          %368 = dma.hbm_to_vmem [thread:$0]  %s361, 2048, %s363, [#allocation12], 64, 64, 4
        $region24: #{_sioconv_ps_impl.1} parent=11 // pred_fallthru
          _
        // Predicated region
        $region25: #{_sioconv_ps_impl.1} parent=11 // pred_check
          %p369 = pneg %p183
        $region26: #{_sioconv_ps_impl.1} parent=11 // pred_check_branch
          %371 = sbr.rel (%p369) target = $region28
        $region27: #{_sioconv_ps_impl.1} parent=11 // pred_region
          %373 = vsyncadd [#allocation12], 0
          %s374 = sshll.u32 %s5, 4
          %s375 = int_to_ptr.hbm [resolvable:$true] %s374
          %s376 = sshll.u32 [#allocation13], 4
          %s377 = int_to_ptr.vmem [resolvable:$true] %s376
          %382 = dma.hbm_to_vmem [thread:$0]  %s375, 8192, %s377, [#allocation12], 256, 256, 16
        $region28: #{_sioconv_ps_impl.1} parent=11 // pred_fallthru
          _
        // Predicated region
        $region29: #{_sioconv_ps_impl.1} parent=11 // pred_check
          %p383 = pneg %p204
        $region30: #{_sioconv_ps_impl.1} parent=11 // pred_check_branch
          %385 = sbr.rel (%p383) target = $region32
        $region31: #{_sioconv_ps_impl.1} parent=11 // pred_region
          %387 = vsyncadd [#allocation15], 0
          %s388 = sshll.u32 %s6, 4
          %s389 = int_to_ptr.hbm [resolvable:$true] %s388
          %s390 = sshll.u32 [#allocation14], 4
          %s391 = int_to_ptr.vmem [resolvable:$true] %s390
          %396 = dma.hbm_to_vmem [thread:$0]  %s389, 4096, %s391, [#allocation15], 64, 64, 4
        $region32: #{_sioconv_ps_impl.1} parent=11 // pred_fallthru
          _
        // Predicated region
        $region33: #{_sioconv_ps_impl.1} parent=11 // pred_check
          %p397 = pneg %p225
        $region34: #{_sioconv_ps_impl.1} parent=11 // pred_check_branch
          %399 = sbr.rel (%p397) target = $region36
        $region35: #{_sioconv_ps_impl.1} parent=11 // pred_region
          %401 = vsyncadd [#allocation15], 0
          %s402 = sshll.u32 %s7, 4
          %s403 = int_to_ptr.hbm [resolvable:$true] %s402
          %s404 = sshll.u32 [#allocation16], 4
          %s405 = int_to_ptr.vmem [resolvable:$true] %s404
          %410 = dma.hbm_to_vmem [thread:$0]  %s403, 96, %s405, [#allocation15], 48, 48, 3
        $region36: #{_sioconv_ps_impl.1} parent=11 // pred_fallthru
          _
        // Predicated region
        $region37: #{_sioconv_ps_impl.1} parent=11 // pred_check
          %p411 = pneg %p246
        $region38: #{_sioconv_ps_impl.1} parent=11 // pred_check_branch
          %413 = sbr.rel (%p411) target = $region40
        $region39: #{_sioconv_ps_impl.1} parent=11 // pred_region
          %415 = vsyncadd [#allocation18], 0
          %s416 = sshll.u32 %s8, 4
          %s417 = int_to_ptr.hbm [resolvable:$true] %s416
          %s418 = sshll.u32 [#allocation17], 4
          %s419 = int_to_ptr.vmem [resolvable:$true] %s418
          %424 = dma.hbm_to_vmem [thread:$0]  %s417, 128, %s419, [#allocation18], 64, 64, 4
        $region40: #{_sioconv_ps_impl.1} parent=11 // pred_fallthru
          _
        // Predicated region
        $region41: #{_sioconv_ps_impl.1} parent=11 // pred_check
          %p425 = pneg %p267
        $region42: #{_sioconv_ps_impl.1} parent=11 // pred_check_branch
          %427 = sbr.rel (%p425) target = $region44
        $region43: #{_sioconv_ps_impl.1} parent=11 // pred_region
          %429 = vsyncadd [#allocation18], 0
          %s430 = sshll.u32 %s9, 4
          %s431 = int_to_ptr.hbm [resolvable:$true] %s430
          %s432 = sshll.u32 [#allocation19], 4
          %s433 = int_to_ptr.vmem [resolvable:$true] %s432
          %438 = dma.hbm_to_vmem [thread:$0]  %s431, 256, %s433, [#allocation18], 128, 128, 8
        $region44: #{_sioconv_ps_impl.1} parent=11 // pred_fallthru
          _
      $region12: #{_sioconv_ps_impl.1} parent=5 // pred_fallthru
        _
      %p439 = scmp.lt.s32.totalorder %s33, 4
      // Predicated region
      $region45: #{_sioconv_ps_impl.1} parent=5 // pred_check
        %p440 = pneg %p439
      $region46: #{_sioconv_ps_impl.1} parent=5 // pred_check_branch
        %442 = sbr.rel (%p440) target = $region48
      $region47: #{_sioconv_ps_impl.1} parent=5 // pred_region
        // Predicated region
        $region49: #{_sioconv_ps_impl.1} parent=47 // pred_check
          %p443 = pneg %p67
        $region50: #{_sioconv_ps_impl.1} parent=47 // pred_check_branch
          %445 = sbr.rel (%p443) target = $region52
        $region51: #{_sioconv_ps_impl.1} parent=47 // pred_region
          %s446 = sand.u32 %s57, 1
          %s447 = scalar_lea.sflag [#allocation6], %s446
          %s448 = sand.u32 %s57, 1
          %s449 = smul.addr %s448, 8
          %s450 = scalar_lea.vmem [#allocation5], %s449
          %452 = vsyncadd %s447, 0
          %s453 = smul.addr %s40, 2
          %s454 = sadd.s32 %s41, %s453
          %s455 = smul.addr %s454, 8
          %s456 = scalar_lea.hbm %s0, %s455
          %s458 = sshll.u32 %s456, 4
          %s459 = int_to_ptr.hbm [resolvable:$true] %s458
          %s460 = sshll.u32 %s450, 4
          %s461 = int_to_ptr.vmem [resolvable:$true] %s460
          %463 = dma.hbm_to_vmem [thread:$0]  %s459, 128, %s461, %s447
        $region52: #{_sioconv_ps_impl.1} parent=47 // pred_fallthru
          _
        // Predicated region
        $region53: #{_sioconv_ps_impl.1} parent=47 // pred_check
          %p464 = pneg %p93
        $region54: #{_sioconv_ps_impl.1} parent=47 // pred_check_branch
          %466 = sbr.rel (%p464) target = $region56
        $region55: #{_sioconv_ps_impl.1} parent=47 // pred_region
          %s467 = sand.u32 %s33, 1
          %s468 = scalar_lea.sflag [#allocation9], %s467
          %s469 = sand.u32 %s83, 1
          %s470 = smul.addr %s469, 2
          %s471 = scalar_lea.vmem [#allocation8], %s470
          %473 = vsyncadd %s468, 0
          %s474 = smul.addr %s40, 2
          %s475 = scalar_lea.hbm %s1, %s474
          %s477 = sshll.u32 %s475, 4
          %s478 = int_to_ptr.hbm [resolvable:$true] %s477
          %s479 = sshll.u32 %s471, 4
          %s480 = int_to_ptr.vmem [resolvable:$true] %s479
          %482 = dma.hbm_to_vmem [thread:$0]  %s478, 32, %s480, %s468
        $region56: #{_sioconv_ps_impl.1} parent=47 // pred_fallthru
          _
      $region48: #{_sioconv_ps_impl.1} parent=5 // pred_fallthru
        _
      %p483 = scmp.le.s32.totalorder 1, %s33
      %p484 = scmp.lt.s32.totalorder %s33, 5
      %p485 = pnand %p483, %p484
      %p486 = pneg %p485
      // Predicated region
      $region57: #{_sioconv_ps_impl.1} parent=5 // pred_check
        _
      $region58: #{_sioconv_ps_impl.1} parent=5 // pred_check_branch
        %488 = sbr.rel (%p485) target = $region60
      $region59: #{_sioconv_ps_impl.1} parent=5 // pred_region
        %s489 = ssub.s32 %s33, 1
        %s490 = sand.u32 %s60, 1
        %s491 = scalar_lea.sflag [#allocation6], %s490
        %s492 = sand.u32 %s60, 1
        %s493 = smul.addr %s492, 8
        %s494 = scalar_lea.vmem [#allocation5], %s493
        // Predicated region
        $region61: #{_sioconv_ps_impl.1} parent=59 // pred_check
          %p495 = pneg %p73
        $region62: #{_sioconv_ps_impl.1} parent=59 // pred_check_branch
          %497 = sbr.rel (%p495) target = $region64
        $region63: #{_sioconv_ps_impl.1} parent=59 // pred_region
          %499 = dma.done %s491, 128
        $region64: #{_sioconv_ps_impl.1} parent=59 // pred_fallthru
          _
        %s500 = sand.u32 %s38, 1
        %s501 = scalar_lea.sflag [#allocation9], %s500
        %s502 = sand.u32 %s86, 1
        %s503 = smul.addr %s502, 2
        %s504 = scalar_lea.vmem [#allocation8], %s503
        // Predicated region
        $region65: #{_sioconv_ps_impl.1} parent=59 // pred_check
          %p505 = pneg %p99
        $region66: #{_sioconv_ps_impl.1} parent=59 // pred_check_branch
          %507 = sbr.rel (%p505) target = $region68
        $region67: #{_sioconv_ps_impl.1} parent=59 // pred_region
          %509 = dma.done %s501, 32
        $region68: #{_sioconv_ps_impl.1} parent=59 // pred_fallthru
          _
        // Predicated region
        $region69: #{_sioconv_ps_impl.1} parent=59 // pred_check
          %p510 = pneg %p141
        $region70: #{_sioconv_ps_impl.1} parent=59 // pred_check_branch
          %512 = sbr.rel (%p510) target = $region72
        $region71: #{_sioconv_ps_impl.1} parent=59 // pred_region
          %514 = dma.done [#allocation9], 6144
        $region72: #{_sioconv_ps_impl.1} parent=59 // pred_fallthru
          _
        // Predicated region
        $region73: #{_sioconv_ps_impl.1} parent=59 // pred_check
          %p515 = pneg %p162
        $region74: #{_sioconv_ps_impl.1} parent=59 // pred_check_branch
          %517 = sbr.rel (%p515) target = $region76
        $region75: #{_sioconv_ps_impl.1} parent=59 // pred_region
          %519 = dma.done [#allocation12], 2048
        $region76: #{_sioconv_ps_impl.1} parent=59 // pred_fallthru
          _
        // Predicated region
        $region77: #{_sioconv_ps_impl.1} parent=59 // pred_check
          %p520 = pneg %p183
        $region78: #{_sioconv_ps_impl.1} parent=59 // pred_check_branch
          %522 = sbr.rel (%p520) target = $region80
        $region79: #{_sioconv_ps_impl.1} parent=59 // pred_region
          %524 = dma.done [#allocation12], 8192
        $region80: #{_sioconv_ps_impl.1} parent=59 // pred_fallthru
          _
        // Predicated region
        $region81: #{_sioconv_ps_impl.1} parent=59 // pred_check
          %p525 = pneg %p204
        $region82: #{_sioconv_ps_impl.1} parent=59 // pred_check_branch
          %527 = sbr.rel (%p525) target = $region84
        $region83: #{_sioconv_ps_impl.1} parent=59 // pred_region
          %529 = dma.done [#allocation15], 4096
        $region84: #{_sioconv_ps_impl.1} parent=59 // pred_fallthru
          _
        // Predicated region
        $region85: #{_sioconv_ps_impl.1} parent=59 // pred_check
          %p530 = pneg %p225
        $region86: #{_sioconv_ps_impl.1} parent=59 // pred_check_branch
          %532 = sbr.rel (%p530) target = $region88
        $region87: #{_sioconv_ps_impl.1} parent=59 // pred_region
          %534 = dma.done [#allocation15], 96
        $region88: #{_sioconv_ps_impl.1} parent=59 // pred_fallthru
          _
        // Predicated region
        $region89: #{_sioconv_ps_impl.1} parent=59 // pred_check
          %p535 = pneg %p246
        $region90: #{_sioconv_ps_impl.1} parent=59 // pred_check_branch
          %537 = sbr.rel (%p535) target = $region92
        $region91: #{_sioconv_ps_impl.1} parent=59 // pred_region
          %539 = dma.done [#allocation18], 128
        $region92: #{_sioconv_ps_impl.1} parent=59 // pred_fallthru
          _
        // Predicated region
        $region93: #{_sioconv_ps_impl.1} parent=59 // pred_check
          %p540 = pneg %p267
        $region94: #{_sioconv_ps_impl.1} parent=59 // pred_check_branch
          %542 = sbr.rel (%p540) target = $region96
        $region95: #{_sioconv_ps_impl.1} parent=59 // pred_region
          %544 = dma.done [#allocation18], 256
        $region96: #{_sioconv_ps_impl.1} parent=59 // pred_fallthru
          _
        %s545 = sand.u32 %s60, 1
        %s546 = scalar_lea.sflag [#allocation6], %s545
        %s547 = sand.u32 %s60, 1
        %s548 = smul.addr %s547, 8
        %s549 = scalar_lea.vmem [#allocation5], %s548
        %p550 = pneg %p73
        %p551 = pneg %p70
        %s552 = sand.u32 %s38, 1
        %s553 = scalar_lea.sflag [#allocation9], %s552
        %s554 = sand.u32 %s86, 1
        %s555 = smul.addr %s554, 2
        %s556 = scalar_lea.vmem [#allocation8], %s555
        %p557 = pneg %p99
        %p558 = pneg %p96
        %p559 = pneg %p120
        %p560 = pneg %p117
        %p561 = pneg %p141
        %p562 = pneg %p138
        %p563 = pneg %p162
        %p564 = pneg %p159
        %p565 = pneg %p183
        %p566 = pneg %p180
        %p567 = pneg %p204
        %p568 = pneg %p201
        %p569 = pneg %p225
        %p570 = pneg %p222
        %p571 = pneg %p246
        %p572 = pneg %p243
        %p573 = pneg %p267
        %p574 = pneg %p264
        %p575 = pneg %p295
        %p576 = pneg %p292
        %s577 = sand.u32 %s282, 1
        %s578 = scalar_lea.sflag [#allocation7], %s577
        %s579 = sand.u32 %s282, 1
        %s580 = smul.addr %s579, 8
        %s581 = scalar_lea.vmem [#allocation20], %s580
        %p582 = pneg %p323
        %p583 = pneg %p320
        %s584 = sand.u32 %s310, 1
        %s585 = scalar_lea.sflag [#allocation22], %s584
        %s586 = sand.u32 %s310, 1
        %s587 = smul.addr %s586, 8
        %s588 = scalar_lea.vmem [#allocation21], %s587
        %v591 = vld [vmem:[%s494] sm:$0xff]
        %v592 = vld [vmem:[%s2] sm:$0xff]
        %v593 = vpack.c.bf16 %v592, %v592
        %p594 = scmp.eq.s32.totalorder %s43, 0
        // Predicated region
        $region97: #{_sioconv_ps_impl.1} parent=59 // pred_check
          %p595 = pneg %p594
        $region98: #{_sioconv_ps_impl.1} parent=59 // pred_check_branch
          %597 = sbr.rel (%p595) target = $region100
        $region99: #{_sioconv_ps_impl.1} parent=59 // pred_region
          %598 = vst [vmem:[#allocation2] sm:$0x1] 0.0
          %599 = vst [vmem:[#allocation2 + $0x1] sm:$0x1] 0.0
          %600 = vst [vmem:[#allocation3] sm:$0x1] -1e+30
          %601 = vst [vmem:[#allocation3 + $0x1] sm:$0x1] -1e+30
          %602 = vst [vmem:[#allocation4] sm:$0x1] 0.0
          %603 = vst [vmem:[#allocation4 + $0x1] sm:$0x1] 0.0
        $region100: #{_sioconv_ps_impl.1} parent=59 // pred_fallthru
          _
        %v604 = vld [vmem:[#allocation19] sm:$0x1]
        %v605 = vld [vmem:[#allocation19 + $0x1] sm:$0x1]
        %v606 = vld [vmem:[#allocation19 + $0x2] sm:$0x1]
        %v607 = vld [vmem:[#allocation19 + $0x3] sm:$0x1]
        %v608 = vld [vmem:[%s504] sm:$0x1]
        %v609 = vmul.f32 %v591, %v591
        %610 = vadd.xlane.f32.xlu0 %v609
        %v611 = vpop.xlane.xlu0 %610
        %v612 = vrcp.pop 128.0
        %v613 = vmul.f32 128.0, %v612
        %v614 = vsub.f32 1.0, %v613
        %v615 = vmul.f32 %v612, %v614
        %v616 = vadd.f32 %v612, %v615
        %vm617 = vweird.f32 %v612
        %v618 = vsel %vm617, %v612, %v616
        %v619 = vmul.f32 %v611, %v618
        %v620 = vadd.f32 %v619, 1e-06
        %v621 = vrsqrt.pop %v620
        %v622 = vmul.f32 %v621, %v620
        %v623 = vmul.f32 %v622, %v621
        %v624 = vmul.f32 0.5, %v623
        %v625 = vsub.f32 1.5, %v624
        %v626 = vmul.f32 %v621, %v625
        %vm627 = vweird.f32 %v620
        %vm628 = vweird.f32 %v621
        %vm629 = vmor %vm627, %vm628
        %v630 = vsel %vm629, %v621, %v626
        %v631 = vmul.f32 %v591, %v630
        %v632 = vperm.slane %v604, 0
        %v633 = vmul.f32 %v631, %v632
        %v634 = vpack.c.bf16 %v633, %v633
        %v635 = vld [vmem:[#allocation10] sm:$0xff]
        %v636 = vld [vmem:[#allocation10 + $0x8] sm:$0xf]
        %v637 = vld [vmem:[#allocation10 + $0xc] sm:$0xff]
        %v638 = vld [vmem:[#allocation10 + $0x14] sm:$0xf]
        %v639 = vld [vmem:[#allocation10 + $0x18] sm:$0xff]
        %v640 = vld [vmem:[#allocation10 + $0x20] sm:$0xf]
        %v641 = vld [vmem:[#allocation10 + $0x24] sm:$0xff]
        %v642 = vld [vmem:[#allocation10 + $0x2c] sm:$0xf]
        %v643 = vld [vmem:[#allocation10 + $0x30] sm:$0xff]
        %v644 = vld [vmem:[#allocation10 + $0x38] sm:$0xf]
        %v645 = vld [vmem:[#allocation10 + $0x3c] sm:$0xff]
        %v646 = vld [vmem:[#allocation10 + $0x44] sm:$0xf]
        %v647 = vld [vmem:[#allocation10 + $0x48] sm:$0xff]
        %v648 = vld [vmem:[#allocation10 + $0x50] sm:$0xf]
        %v649 = vld [vmem:[#allocation10 + $0x54] sm:$0xff]
        %v650 = vld [vmem:[#allocation10 + $0x5c] sm:$0xf]
        %v651 = vld [vmem:[#allocation10 + $0x60] sm:$0xff]
        %v652 = vld [vmem:[#allocation10 + $0x68] sm:$0xf]
        %v653 = vld [vmem:[#allocation10 + $0x6c] sm:$0xff]
        %v654 = vld [vmem:[#allocation10 + $0x74] sm:$0xf]
        %v655 = vld [vmem:[#allocation10 + $0x78] sm:$0xff]
        %v656 = vld [vmem:[#allocation10 + $0x80] sm:$0xf]
        %v657 = vld [vmem:[#allocation10 + $0x84] sm:$0xff]
        %v658 = vld [vmem:[#allocation10 + $0x8c] sm:$0xf]
        %v659 = vld [vmem:[#allocation10 + $0x90] sm:$0xff]
        %v660 = vld [vmem:[#allocation10 + $0x98] sm:$0xf]
        %v661 = vld [vmem:[#allocation10 + $0x9c] sm:$0xff]
        %v662 = vld [vmem:[#allocation10 + $0xa4] sm:$0xf]
        %v663 = vld [vmem:[#allocation10 + $0xa8] sm:$0xff]
        %v664 = vld [vmem:[#allocation10 + $0xb0] sm:$0xf]
        %v665 = vld [vmem:[#allocation10 + $0xb4] sm:$0xff]
        %v666 = vld [vmem:[#allocation10 + $0xbc] sm:$0xf]
        %v667 = vld [vmem:[#allocation16] sm:$0x7]
        %v669 = vperm.slane %v667, 0
        %v670 = vperm.slane %v667, 1
        %v671 = vperm.slane %v667, 2
        %v707 = vunpack.c.l.b16 %v635
        %v708 = vunpack.c.h.b16 %v635
        %v709 = vunpack.c.l.b16 %v636
        %v710 = vunpack.c.l.b16 %v637
        %v711 = vunpack.c.h.b16 %v637
        %v712 = vunpack.c.l.b16 %v638
        %v713 = vunpack.c.l.b16 %v639
        %v714 = vunpack.c.h.b16 %v639
        %v715 = vunpack.c.l.b16 %v640
        %v716 = vunpack.c.l.b16 %v641
        %v717 = vunpack.c.h.b16 %v641
        %v718 = vunpack.c.l.b16 %v642
        %v719 = vunpack.c.l.b16 %v643
        %v720 = vunpack.c.h.b16 %v643
        %v721 = vunpack.c.l.b16 %v644
        %v722 = vunpack.c.l.b16 %v645
        %v723 = vunpack.c.h.b16 %v645
        %v724 = vunpack.c.l.b16 %v646
        %v725 = vunpack.c.l.b16 %v647
        %v726 = vunpack.c.h.b16 %v647
        %v727 = vunpack.c.l.b16 %v648
        %v728 = vunpack.c.l.b16 %v649
        %v729 = vunpack.c.h.b16 %v649
        %v730 = vunpack.c.l.b16 %v650
        %v731 = vunpack.c.l.b16 %v651
        %v732 = vunpack.c.h.b16 %v651
        %v733 = vunpack.c.l.b16 %v652
        %v734 = vunpack.c.l.b16 %v653
        %v735 = vunpack.c.h.b16 %v653
        %v736 = vunpack.c.l.b16 %v654
        %v737 = vunpack.c.l.b16 %v655
        %v738 = vunpack.c.h.b16 %v655
        %v739 = vunpack.c.l.b16 %v656
        %v740 = vunpack.c.l.b16 %v657
        %v741 = vunpack.c.h.b16 %v657
        %v742 = vunpack.c.l.b16 %v658
        %v743 = vunpack.c.l.b16 %v659
        %v744 = vunpack.c.h.b16 %v659
        %v745 = vunpack.c.l.b16 %v660
        %v746 = vunpack.c.l.b16 %v661
        %v747 = vunpack.c.h.b16 %v661
        %v748 = vunpack.c.l.b16 %v662
        %v749 = vunpack.c.l.b16 %v663
        %v750 = vunpack.c.h.b16 %v663
        %v751 = vunpack.c.l.b16 %v664
        %v752 = vunpack.c.l.b16 %v665
        %v753 = vunpack.c.h.b16 %v665
        %v754 = vunpack.c.l.b16 %v666
        %v755 = vpack.c.b16 %v710, %v707
        %v756 = vpack.c.b16 %v711, %v708
        %v757 = vpack.c.b16 %v712, %v709
        %v758 = vpack.c.b16 %v716, %v713
        %v759 = vpack.c.b16 %v717, %v714
        %v760 = vpack.c.b16 %v718, %v715
        %v761 = vpack.c.b16 %v722, %v719
        %v762 = vpack.c.b16 %v723, %v720
        %v763 = vpack.c.b16 %v724, %v721
        %v764 = vpack.c.b16 %v728, %v725
        %v765 = vpack.c.b16 %v729, %v726
        %v766 = vpack.c.b16 %v730, %v727
        %v767 = vpack.c.b16 %v734, %v731
        %v768 = vpack.c.b16 %v735, %v732
        %v769 = vpack.c.b16 %v736, %v733
        %v770 = vpack.c.b16 %v740, %v737
        %v771 = vpack.c.b16 %v741, %v738
        %v772 = vpack.c.b16 %v742, %v739
        %v773 = vpack.c.b16 %v746, %v743
        %v774 = vpack.c.b16 %v747, %v744
        %v775 = vpack.c.b16 %v748, %v745
        %v776 = vpack.c.b16 %v752, %v749
        %v777 = vpack.c.b16 %v753, %v750
        %v778 = vpack.c.b16 %v754, %v751
        %803 = vmatpush.bf16.msra.mxu0 %v776
        %804 = vmatpush.bf16.msra.mxu0 %v773
        %805 = vmatpush.bf16.msra.mxu0 %v770
        %806 = vmatpush.bf16.msra.mxu0 %v767
        %807 = vmatpush.bf16.msra.mxu0 %v764
        %808 = vmatpush.bf16.msra.mxu0 %v761
        %809 = vmatpush.bf16.msra.mxu0 %v758
        %810 = vmatpush.bf16.msra.mxu0 %v755
        %811 = vmatmul.bf16.gmra.mxu0 %v634
        %v812 = vpop.f32.mrf.mxu0
        %v813 = vadd.f32 %v669, %v812
        %v814 = vpop.f32.mrf.mxu0
        %815 = vdwg.mxu0
        %816 = vmatpush.bf16.msra.mxu0 %v777
        %817 = vmatpush.bf16.msra.mxu0 %v774
        %818 = vmatpush.bf16.msra.mxu0 %v771
        %819 = vmatpush.bf16.msra.mxu0 %v768
        %820 = vmatpush.bf16.msra.mxu0 %v765
        %821 = vmatpush.bf16.msra.mxu0 %v762
        %822 = vmatpush.bf16.msra.mxu0 %v759
        %823 = vmatpush.bf16.msra.mxu0 %v756
        %824 = vmatmul.bf16.gmra.mxu0 %v634
        %v825 = vpop.f32.mrf.mxu0
        %v826 = vadd.f32 %v670, %v825
        %v827 = vpop.f32.mrf.mxu0
        %828 = vdwg.mxu0
        %829 = vmatpush.bf16.msra.mxu0 %v778
        %830 = vmatpush.bf16.msra.mxu0 %v775
        %831 = vmatpush.bf16.msra.mxu0 %v772
        %832 = vmatpush.bf16.msra.mxu0 %v769
        %833 = vmatpush.bf16.msra.mxu0 %v766
        %834 = vmatpush.bf16.msra.mxu0 %v763
        %835 = vmatpush.bf16.msra.mxu0 %v760
        %836 = vmatpush.bf16.msra.mxu0 %v757
        %837 = vmatmul.bf16.gmra.mxu0 %v634
        %v838 = vpop.f32.mrf.mxu0
        %v839 = vadd.f32 %v671, %v838
        %v840 = vpop.f32.mrf.mxu0
        %841 = vdwg.mxu0
        %v842 = vsub.f32 0.0, %v813
        %v843 = vmax.f32 %v842, 0.0
        %vm844 = vcmp.ne.f32.partialorder %v842, %v842
        %v845 = vadd.f32 %v842, 0.0
        %v846 = vand.u32 2147483647, %v842
        %v847 = vsub.f32 0.0, %v846
        %v848 = vmul.f32 %v847, 1.442695
        %v849 = vpow.pop %v848
        %v850 = vadd.f32 %v849, 1.0
        %v851 = vlog2.pop %v850
        %v852 = vmul.f32 %v851, 0.6931472
        %v853 = vmul.f32 -0.5, %v849
        %v854 = vadd.f32 %v853, 1.0
        %v855 = vmul.f32 %v854, %v849
        %v856 = vand.u32 2147483647, %v849
        %vm857 = vcmp.lt.f32.partialorder %v856, 0.0004427343
        %v858 = vsel %vm857, %v855, %v852
        %v859 = vadd.f32 %v843, %v858
        %v860 = vsel %vm844, %v845, %v859
        %v861 = vsub.f32 0.0, %v860
        %v862 = vsub.f32 0.0, %v826
        %v863 = vmax.f32 %v862, 0.0
        %vm864 = vcmp.ne.f32.partialorder %v862, %v862
        %v865 = vadd.f32 %v862, 0.0
        %v866 = vand.u32 2147483647, %v862
        %v867 = vsub.f32 0.0, %v866
        %v868 = vmul.f32 %v867, 1.442695
        %v869 = vpow.pop %v868
        %v870 = vadd.f32 %v869, 1.0
        %v871 = vlog2.pop %v870
        %v872 = vmul.f32 %v871, 0.6931472
        %v873 = vmul.f32 -0.5, %v869
        %v874 = vadd.f32 %v873, 1.0
        %v875 = vmul.f32 %v874, %v869
        %v876 = vand.u32 2147483647, %v869
        %vm877 = vcmp.lt.f32.partialorder %v876, 0.0004427343
        %v878 = vsel %vm877, %v875, %v872
        %v879 = vadd.f32 %v863, %v878
        %v880 = vsel %vm864, %v865, %v879
        %v881 = vsub.f32 0.0, %v880
        %v882 = vadd.f32 %v861, %v881
        %v883 = vsub.f32 %v881, %v826
        %v884 = vld [vmem:[#allocation2] sm:$0x1]
        %v886 = vperm.slane %v884, 0
        %vm888 = vcmask 64512
        %v890 = vsel %vm888, %v592, 0
        %892 = vmatpush.msra.mxu0 0.0
        %893 = vmatpush.msra.mxu0 0.0
        %894 = vmatpush.msra.mxu0 0.0
        %895 = vmatpush.msra.mxu0 0.0
        %896 = vmatpush.msra.mxu0 0.0
        %897 = vmatpush.msra.mxu0 0.0
        %898 = vmatpush.msra.mxu0 0.0
        %899 = vmatpush.msra.mxu0 0.0
        %900 = vmatpush.msra.mxu0 0.0
        %901 = vmatpush.msra.mxu0 0.0
        %902 = vmatpush.msra.mxu0 0.0
        %903 = vmatpush.msra.mxu0 0.0
        %904 = vmatpush.msra.mxu0 0.0
        %905 = vmatpush.msra.mxu0 0.0
        %906 = vmatpush.msra.mxu0 0.0
        %907 = vmatpush.msra.mxu0 %v883
        %908 = vmatmul.f32.gmra.mxu0 %v890
        %v909 = vpop.f32.mrf.mxu0
        %v910 = vadd.f32 %v886, %v909
        %911 = vdwg.mxu0
        %v912 = vsub.f32 %v882, %v910
        %v913 = vld [vmem:[#allocation3] sm:$0x1]
        %v914 = vld [vmem:[#allocation4] sm:$0x1]
        %v915 = vrot.slane %v912, 4
        %v916 = vmax.f32 %v912, %v915
        %v917 = vrot.slane %v916, 2
        %v918 = vmax.f32 %v916, %v917
        %v919 = vrot.slane %v918, 1
        %v920 = vmax.f32 %v918, %v919
        %v921 = vmax.f32 %v913, %v920
        %v923 = vperm.slane %v921, 0
        %v925 = vsub.f32 %v912, %v923
        %v926 = vmul.f32 %v925, 1.442695
        %v927 = vpow.pop %v926
        %v928 = vpack.c.bf16 %v927, %v927
        %v929 = vsub.f32 %v913, %v921
        %v930 = vmul.f32 %v929, 1.442695
        %v931 = vpow.pop %v930
        %v932 = vmul.f32 %v914, %v931
        %v934 = vperm.slane %v932, 0
        %v937 = vsel %vm888, %v593, 0
        %vm939 = vcmask 1043456
        %v941 = vsel %vm939, %v928, 0
        %943 = vmatpush.bf16.msra.mxu0 0
        %944 = vmatpush.bf16.msra.mxu0 0
        %945 = vmatpush.bf16.msra.mxu0 0
        %946 = vmatpush.bf16.msra.mxu0 0
        %947 = vmatpush.bf16.msra.mxu0 0
        %948 = vmatpush.bf16.msra.mxu0 0
        %949 = vmatpush.bf16.msra.mxu0 0
        %950 = vmatpush.bf16.msra.mxu0 %v941
        %951 = vmatmul.bf16.gmra.mxu0 %v937
        %v952 = vpop.f32.mrf.mxu0
        %v953 = vadd.f32 %v934, %v952
        %v954 = vpop.f32.mrf.mxu0
        %955 = vdwg.mxu0
        %v956 = vadd.f32 %v923, %v910
        %v957 = vmul.f32 %v956, 1.442695
        %v958 = vpow.pop %v957
        %v959 = vmul.f32 %v958, %v953
        %v960 = vmul.f32 %v910, 1.442695
        %v961 = vpow.pop %v960
        %v962 = vperm.slane %v608, 0
        %v963 = vmul.f32 %v961, %v962
        %v964 = vadd.f32 %v959, %v963
        %965 = vst [vmem:[#allocation2 - $0x7] sm:$0x80] %v910
        %966 = vst [vmem:[#allocation3] sm:$0x1] %v921
        %967 = vst [vmem:[#allocation4 - $0x7] sm:$0x80] %v953
        %v968 = vpack.c.bf16 %v964, %v964
        %v969 = vld [vmem:[#allocation11] sm:$0xf]
        %v970 = vld [vmem:[#allocation11 + $0x4] sm:$0xf]
        %v971 = vld [vmem:[#allocation11 + $0x8] sm:$0xf]
        %v972 = vld [vmem:[#allocation11 + $0xc] sm:$0xf]
        %v973 = vld [vmem:[#allocation11 + $0x10] sm:$0xf]
        %v974 = vld [vmem:[#allocation11 + $0x14] sm:$0xf]
        %v975 = vld [vmem:[#allocation11 + $0x18] sm:$0xf]
        %v976 = vld [vmem:[#allocation11 + $0x1c] sm:$0xf]
        %v977 = vld [vmem:[#allocation11 + $0x20] sm:$0xf]
        %v978 = vld [vmem:[#allocation11 + $0x24] sm:$0xf]
        %v979 = vld [vmem:[#allocation11 + $0x28] sm:$0xf]
        %v980 = vld [vmem:[#allocation11 + $0x2c] sm:$0xf]
        %v981 = vld [vmem:[#allocation11 + $0x30] sm:$0xf]
        %v982 = vld [vmem:[#allocation11 + $0x34] sm:$0xf]
        %v983 = vld [vmem:[#allocation11 + $0x38] sm:$0xf]
        %v984 = vld [vmem:[#allocation11 + $0x3c] sm:$0xf]
        %v985 = vperm.slane %v606, 0
        %v1002 = vunpack.c.l.b16 %v969
        %v1003 = vunpack.c.l.b16 %v970
        %v1004 = vunpack.c.l.b16 %v971
        %v1005 = vunpack.c.l.b16 %v972
        %v1006 = vunpack.c.l.b16 %v973
        %v1007 = vunpack.c.l.b16 %v974
        %v1008 = vunpack.c.l.b16 %v975
        %v1009 = vunpack.c.l.b16 %v976
        %v1010 = vunpack.c.l.b16 %v977
        %v1011 = vunpack.c.l.b16 %v978
        %v1012 = vunpack.c.l.b16 %v979
        %v1013 = vunpack.c.l.b16 %v980
        %v1014 = vunpack.c.l.b16 %v981
        %v1015 = vunpack.c.l.b16 %v982
        %v1016 = vunpack.c.l.b16 %v983
        %v1017 = vunpack.c.l.b16 %v984
        %v1018 = vpack.c.b16 %v1003, %v1002
        %v1019 = vpack.c.b16 %v1005, %v1004
        %v1020 = vpack.c.b16 %v1007, %v1006
        %v1021 = vpack.c.b16 %v1009, %v1008
        %v1022 = vpack.c.b16 %v1011, %v1010
        %v1023 = vpack.c.b16 %v1013, %v1012
        %v1024 = vpack.c.b16 %v1015, %v1014
        %v1025 = vpack.c.b16 %v1017, %v1016
        %1034 = vmatpush.bf16.msra.mxu0 %v1025
        %1035 = vmatpush.bf16.msra.mxu0 %v1024
        %1036 = vmatpush.bf16.msra.mxu0 %v1023
        %1037 = vmatpush.bf16.msra.mxu0 %v1022
        %1038 = vmatpush.bf16.msra.mxu0 %v1021
        %1039 = vmatpush.bf16.msra.mxu0 %v1020
        %1040 = vmatpush.bf16.msra.mxu0 %v1019
        %1041 = vmatpush.bf16.msra.mxu0 %v1018
        %1042 = vmatmul.bf16.gmra.mxu0 %v968
        %v1043 = vpop.f32.mrf.mxu0
        %v1044 = vadd.f32 %v985, %v1043
        %v1045 = vpop.f32.mrf.mxu0
        %1046 = vdwg.mxu0
        %v1047 = vpack.c.bf16 %v839, %v839
        %v1048 = vxor.u32 %v1047, 2147516416
        %v1049 = vunpack.c.l.bf16 %v1048
        %v1050 = vmul.f32 %v1049, 1.442695
        %v1051 = vpow.pop %v1050
        %v1052 = vpack.c.bf16 %v1051, %v1051
        %v1053 = vunpack.c.l.bf16 %v1052
        %v1054 = vadd.f32 %v1053, 1.0
        %v1055 = vpack.c.bf16 %v1054, %v1054
        %v1056 = vunpack.c.h.bf16 1065369472
        %v1057 = vunpack.c.l.bf16 1065369472
        %v1058 = vunpack.c.h.bf16 %v1055
        %v1059 = vunpack.c.l.bf16 %v1055
        %v1060 = vrcp.pop %v1058
        %v1061 = vmul.f32 %v1056, %v1060
        %v1062 = vrcp.pop %v1059
        %v1063 = vmul.f32 %v1057, %v1062
        %v1064 = vpack.c.bf16 %v1061, %v1063
        %v1065 = vunpack.c.l.bf16 %v1047
        %v1066 = vunpack.c.l.bf16 %v1064
        %v1067 = vmul.f32 %v1065, %v1066
        %v1068 = vpack.c.bf16 %v1067, %v1067
        %v1069 = vunpack.c.l.bf16 %v1068
        %v1070 = vmul.f32 %v1044, %v1069
        %v1071 = vadd.f32 %v1070, %v591
        %v1072 = vmul.f32 %v1071, %v1071
        %1073 = vadd.xlane.f32.xlu0 %v1072
        %v1074 = vpop.xlane.xlu0 %1073
        %v1075 = vmul.f32 %v1074, %v618
        %v1076 = vadd.f32 %v1075, 1e-06
        %v1077 = vrsqrt.pop %v1076
        %v1078 = vmul.f32 %v1077, %v1076
        %v1079 = vmul.f32 %v1078, %v1077
        %v1080 = vmul.f32 0.5, %v1079
        %v1081 = vsub.f32 1.5, %v1080
        %v1082 = vmul.f32 %v1077, %v1081
        %vm1083 = vweird.f32 %v1076
        %vm1084 = vweird.f32 %v1077
        %vm1085 = vmor %vm1083, %vm1084
        %v1086 = vsel %vm1085, %v1077, %v1082
        %v1087 = vmul.f32 %v1071, %v1086
        %v1088 = vperm.slane %v605, 0
        %v1089 = vmul.f32 %v1087, %v1088
        %v1090 = vpack.c.bf16 %v1089, %v1089
        %v1091 = vld [vmem:[#allocation13] sm:$0xff]
        %v1092 = vld [vmem:[#allocation13 + $0x10] sm:$0xff]
        %v1093 = vld [vmem:[#allocation13 + $0x20] sm:$0xff]
        %v1094 = vld [vmem:[#allocation13 + $0x30] sm:$0xff]
        %v1095 = vld [vmem:[#allocation13 + $0x40] sm:$0xff]
        %v1096 = vld [vmem:[#allocation13 + $0x50] sm:$0xff]
        %v1097 = vld [vmem:[#allocation13 + $0x60] sm:$0xff]
        %v1098 = vld [vmem:[#allocation13 + $0x70] sm:$0xff]
        %v1099 = vld [vmem:[#allocation13 + $0x80] sm:$0xff]
        %v1100 = vld [vmem:[#allocation13 + $0x90] sm:$0xff]
        %v1101 = vld [vmem:[#allocation13 + $0xa0] sm:$0xff]
        %v1102 = vld [vmem:[#allocation13 + $0xb0] sm:$0xff]
        %v1103 = vld [vmem:[#allocation13 + $0xc0] sm:$0xff]
        %v1104 = vld [vmem:[#allocation13 + $0xd0] sm:$0xff]
        %v1105 = vld [vmem:[#allocation13 + $0xe0] sm:$0xff]
        %v1106 = vld [vmem:[#allocation13 + $0xf0] sm:$0xff]
        %v1107 = vld [vmem:[#allocation17] sm:$0x3]
        %v1109 = vperm.slane %v1107, 0
        %v1110 = vperm.slane %v1107, 1
        %v1129 = vunpack.c.l.b16 %v1091
        %v1130 = vunpack.c.h.b16 %v1091
        %v1131 = vunpack.c.l.b16 %v1092
        %v1132 = vunpack.c.h.b16 %v1092
        %v1133 = vunpack.c.l.b16 %v1093
        %v1134 = vunpack.c.h.b16 %v1093
        %v1135 = vunpack.c.l.b16 %v1094
        %v1136 = vunpack.c.h.b16 %v1094
        %v1137 = vunpack.c.l.b16 %v1095
        %v1138 = vunpack.c.h.b16 %v1095
        %v1139 = vunpack.c.l.b16 %v1096
        %v1140 = vunpack.c.h.b16 %v1096
        %v1141 = vunpack.c.l.b16 %v1097
        %v1142 = vunpack.c.h.b16 %v1097
        %v1143 = vunpack.c.l.b16 %v1098
        %v1144 = vunpack.c.h.b16 %v1098
        %v1145 = vunpack.c.l.b16 %v1099
        %v1146 = vunpack.c.h.b16 %v1099
        %v1147 = vunpack.c.l.b16 %v1100
        %v1148 = vunpack.c.h.b16 %v1100
        %v1149 = vunpack.c.l.b16 %v1101
        %v1150 = vunpack.c.h.b16 %v1101
        %v1151 = vunpack.c.l.b16 %v1102
        %v1152 = vunpack.c.h.b16 %v1102
        %v1153 = vunpack.c.l.b16 %v1103
        %v1154 = vunpack.c.h.b16 %v1103
        %v1155 = vunpack.c.l.b16 %v1104
        %v1156 = vunpack.c.h.b16 %v1104
        %v1157 = vunpack.c.l.b16 %v1105
        %v1158 = vunpack.c.h.b16 %v1105
        %v1159 = vunpack.c.l.b16 %v1106
        %v1160 = vunpack.c.h.b16 %v1106
        %v1161 = vpack.c.b16 %v1131, %v1129
        %v1162 = vpack.c.b16 %v1132, %v1130
        %v1163 = vpack.c.b16 %v1135, %v1133
        %v1164 = vpack.c.b16 %v1136, %v1134
        %v1165 = vpack.c.b16 %v1139, %v1137
        %v1166 = vpack.c.b16 %v1140, %v1138
        %v1167 = vpack.c.b16 %v1143, %v1141
        %v1168 = vpack.c.b16 %v1144, %v1142
        %v1169 = vpack.c.b16 %v1147, %v1145
        %v1170 = vpack.c.b16 %v1148, %v1146
        %v1171 = vpack.c.b16 %v1151, %v1149
        %v1172 = vpack.c.b16 %v1152, %v1150
        %v1173 = vpack.c.b16 %v1155, %v1153
        %v1174 = vpack.c.b16 %v1156, %v1154
        %v1175 = vpack.c.b16 %v1159, %v1157
        %v1176 = vpack.c.b16 %v1160, %v1158
        %1193 = vmatpush.bf16.msra.mxu0 %v1175
        %1194 = vmatpush.bf16.msra.mxu0 %v1173
        %1195 = vmatpush.bf16.msra.mxu0 %v1171
        %1196 = vmatpush.bf16.msra.mxu0 %v1169
        %1197 = vmatpush.bf16.msra.mxu0 %v1167
        %1198 = vmatpush.bf16.msra.mxu0 %v1165
        %1199 = vmatpush.bf16.msra.mxu0 %v1163
        %1200 = vmatpush.bf16.msra.mxu0 %v1161
        %1201 = vmatmul.bf16.gmra.mxu0 %v1090
        %v1202 = vpop.f32.mrf.mxu0
        %v1203 = vadd.f32 %v1109, %v1202
        %v1204 = vpop.f32.mrf.mxu0
        %1205 = vdwg.mxu0
        %1206 = vmatpush.bf16.msra.mxu0 %v1176
        %1207 = vmatpush.bf16.msra.mxu0 %v1174
        %1208 = vmatpush.bf16.msra.mxu0 %v1172
        %1209 = vmatpush.bf16.msra.mxu0 %v1170
        %1210 = vmatpush.bf16.msra.mxu0 %v1168
        %1211 = vmatpush.bf16.msra.mxu0 %v1166
        %1212 = vmatpush.bf16.msra.mxu0 %v1164
        %1213 = vmatpush.bf16.msra.mxu0 %v1162
        %1214 = vmatmul.bf16.gmra.mxu0 %v1090
        %v1215 = vpop.f32.mrf.mxu0
        %v1216 = vadd.f32 %v1110, %v1215
        %v1217 = vpop.f32.mrf.mxu0
        %1218 = vdwg.mxu0
        %v1219 = vld [vmem:[#allocation13 + $0x8] sm:$0xff]
        %v1220 = vld [vmem:[#allocation13 + $0x18] sm:$0xff]
        %v1221 = vld [vmem:[#allocation13 + $0x28] sm:$0xff]
        %v1222 = vld [vmem:[#allocation13 + $0x38] sm:$0xff]
        %v1223 = vld [vmem:[#allocation13 + $0x48] sm:$0xff]
        %v1224 = vld [vmem:[#allocation13 + $0x58] sm:$0xff]
        %v1225 = vld [vmem:[#allocation13 + $0x68] sm:$0xff]
        %v1226 = vld [vmem:[#allocation13 + $0x78] sm:$0xff]
        %v1227 = vld [vmem:[#allocation13 + $0x88] sm:$0xff]
        %v1228 = vld [vmem:[#allocation13 + $0x98] sm:$0xff]
        %v1229 = vld [vmem:[#allocation13 + $0xa8] sm:$0xff]
        %v1230 = vld [vmem:[#allocation13 + $0xb8] sm:$0xff]
        %v1231 = vld [vmem:[#allocation13 + $0xc8] sm:$0xff]
        %v1232 = vld [vmem:[#allocation13 + $0xd8] sm:$0xff]
        %v1233 = vld [vmem:[#allocation13 + $0xe8] sm:$0xff]
        %v1234 = vld [vmem:[#allocation13 + $0xf8] sm:$0xff]
        %v1235 = vld [vmem:[#allocation17 + $0x2] sm:$0x3]
        %v1237 = vperm.slane %v1235, 0
        %v1238 = vperm.slane %v1235, 1
        %v1257 = vunpack.c.l.b16 %v1219
        %v1258 = vunpack.c.h.b16 %v1219
        %v1259 = vunpack.c.l.b16 %v1220
        %v1260 = vunpack.c.h.b16 %v1220
        %v1261 = vunpack.c.l.b16 %v1221
        %v1262 = vunpack.c.h.b16 %v1221
        %v1263 = vunpack.c.l.b16 %v1222
        %v1264 = vunpack.c.h.b16 %v1222
        %v1265 = vunpack.c.l.b16 %v1223
        %v1266 = vunpack.c.h.b16 %v1223
        %v1267 = vunpack.c.l.b16 %v1224
        %v1268 = vunpack.c.h.b16 %v1224
        %v1269 = vunpack.c.l.b16 %v1225
        %v1270 = vunpack.c.h.b16 %v1225
        %v1271 = vunpack.c.l.b16 %v1226
        %v1272 = vunpack.c.h.b16 %v1226
        %v1273 = vunpack.c.l.b16 %v1227
        %v1274 = vunpack.c.h.b16 %v1227
        %v1275 = vunpack.c.l.b16 %v1228
        %v1276 = vunpack.c.h.b16 %v1228
        %v1277 = vunpack.c.l.b16 %v1229
        %v1278 = vunpack.c.h.b16 %v1229
        %v1279 = vunpack.c.l.b16 %v1230
        %v1280 = vunpack.c.h.b16 %v1230
        %v1281 = vunpack.c.l.b16 %v1231
        %v1282 = vunpack.c.h.b16 %v1231
        %v1283 = vunpack.c.l.b16 %v1232
        %v1284 = vunpack.c.h.b16 %v1232
        %v1285 = vunpack.c.l.b16 %v1233
        %v1286 = vunpack.c.h.b16 %v1233
        %v1287 = vunpack.c.l.b16 %v1234
        %v1288 = vunpack.c.h.b16 %v1234
        %v1289 = vpack.c.b16 %v1259, %v1257
        %v1290 = vpack.c.b16 %v1260, %v1258
        %v1291 = vpack.c.b16 %v1263, %v1261
        %v1292 = vpack.c.b16 %v1264, %v1262
        %v1293 = vpack.c.b16 %v1267, %v1265
        %v1294 = vpack.c.b16 %v1268, %v1266
        %v1295 = vpack.c.b16 %v1271, %v1269
        %v1296 = vpack.c.b16 %v1272, %v1270
        %v1297 = vpack.c.b16 %v1275, %v1273
        %v1298 = vpack.c.b16 %v1276, %v1274
        %v1299 = vpack.c.b16 %v1279, %v1277
        %v1300 = vpack.c.b16 %v1280, %v1278
        %v1301 = vpack.c.b16 %v1283, %v1281
        %v1302 = vpack.c.b16 %v1284, %v1282
        %v1303 = vpack.c.b16 %v1287, %v1285
        %v1304 = vpack.c.b16 %v1288, %v1286
        %1321 = vmatpush.bf16.msra.mxu0 %v1303
        %1322 = vmatpush.bf16.msra.mxu0 %v1301
        %1323 = vmatpush.bf16.msra.mxu0 %v1299
        %1324 = vmatpush.bf16.msra.mxu0 %v1297
        %1325 = vmatpush.bf16.msra.mxu0 %v1295
        %1326 = vmatpush.bf16.msra.mxu0 %v1293
        %1327 = vmatpush.bf16.msra.mxu0 %v1291
        %1328 = vmatpush.bf16.msra.mxu0 %v1289
        %1329 = vmatmul.bf16.gmra.mxu0 %v1090
        %v1330 = vpop.f32.mrf.mxu0
        %v1331 = vadd.f32 %v1237, %v1330
        %v1332 = vpop.f32.mrf.mxu0
        %1333 = vdwg.mxu0
        %1334 = vmatpush.bf16.msra.mxu0 %v1304
        %1335 = vmatpush.bf16.msra.mxu0 %v1302
        %1336 = vmatpush.bf16.msra.mxu0 %v1300
        %1337 = vmatpush.bf16.msra.mxu0 %v1298
        %1338 = vmatpush.bf16.msra.mxu0 %v1296
        %1339 = vmatpush.bf16.msra.mxu0 %v1294
        %1340 = vmatpush.bf16.msra.mxu0 %v1292
        %1341 = vmatpush.bf16.msra.mxu0 %v1290
        %1342 = vmatmul.bf16.gmra.mxu0 %v1090
        %v1343 = vpop.f32.mrf.mxu0
        %v1344 = vadd.f32 %v1238, %v1343
        %v1345 = vpop.f32.mrf.mxu0
        %1346 = vdwg.mxu0
        %v1347 = vpack.c.bf16 %v1344, %v1331
        %v1348 = vxor.u32 %v1347, 2147516416
        %v1349 = vunpack.c.l.bf16 %v1348
        %v1350 = vunpack.c.h.bf16 %v1348
        %v1351 = vmul.f32 %v1349, 1.442695
        %v1352 = vpow.pop %v1351
        %v1353 = vmul.f32 %v1350, 1.442695
        %v1354 = vpow.pop %v1353
        %v1355 = vpack.c.bf16 %v1354, %v1352
        %v1356 = vunpack.c.l.bf16 %v1355
        %v1357 = vunpack.c.h.bf16 %v1355
        %v1358 = vadd.f32 %v1356, 1.0
        %v1359 = vadd.f32 %v1357, 1.0
        %v1360 = vpack.c.bf16 %v1359, %v1358
        %v1361 = vunpack.c.h.bf16 %v1360
        %v1362 = vunpack.c.l.bf16 %v1360
        %v1363 = vrcp.pop %v1361
        %v1364 = vmul.f32 %v1056, %v1363
        %v1365 = vrcp.pop %v1362
        %v1366 = vmul.f32 %v1057, %v1365
        %v1367 = vpack.c.bf16 %v1364, %v1366
        %v1368 = vunpack.c.l.bf16 %v1347
        %v1369 = vunpack.c.h.bf16 %v1347
        %v1370 = vunpack.c.l.bf16 %v1367
        %v1371 = vunpack.c.h.bf16 %v1367
        %v1372 = vmul.f32 %v1368, %v1370
        %v1373 = vmul.f32 %v1369, %v1371
        %v1374 = vpack.c.bf16 %v1373, %v1372
        %v1375 = vunpack.c.l.bf16 %v1374
        %v1376 = vunpack.c.h.bf16 %v1374
        %v1377 = vmul.f32 %v1203, %v1375
        %v1378 = vmul.f32 %v1216, %v1376
        %v1379 = vpack.c.bf16 %v1377, %v1377
        %v1380 = vpack.c.bf16 %v1378, %v1378
        %v1381 = vld [vmem:[#allocation14] sm:$0xf]
        %v1382 = vld [vmem:[#allocation14 + $0x4] sm:$0xf]
        %v1383 = vld [vmem:[#allocation14 + $0x8] sm:$0xf]
        %v1384 = vld [vmem:[#allocation14 + $0xc] sm:$0xf]
        %v1385 = vld [vmem:[#allocation14 + $0x10] sm:$0xf]
        %v1386 = vld [vmem:[#allocation14 + $0x14] sm:$0xf]
        %v1387 = vld [vmem:[#allocation14 + $0x18] sm:$0xf]
        %v1388 = vld [vmem:[#allocation14 + $0x1c] sm:$0xf]
        %v1389 = vld [vmem:[#allocation14 + $0x20] sm:$0xf]
        %v1390 = vld [vmem:[#allocation14 + $0x24] sm:$0xf]
        %v1391 = vld [vmem:[#allocation14 + $0x28] sm:$0xf]
        %v1392 = vld [vmem:[#allocation14 + $0x2c] sm:$0xf]
        %v1393 = vld [vmem:[#allocation14 + $0x30] sm:$0xf]
        %v1394 = vld [vmem:[#allocation14 + $0x34] sm:$0xf]
        %v1395 = vld [vmem:[#allocation14 + $0x38] sm:$0xf]
        %v1396 = vld [vmem:[#allocation14 + $0x3c] sm:$0xf]
        %v1397 = vld [vmem:[#allocation14 + $0x40] sm:$0xf]
        %v1398 = vld [vmem:[#allocation14 + $0x44] sm:$0xf]
        %v1399 = vld [vmem:[#allocation14 + $0x48] sm:$0xf]
        %v1400 = vld [vmem:[#allocation14 + $0x4c] sm:$0xf]
        %v1401 = vld [vmem:[#allocation14 + $0x50] sm:$0xf]
        %v1402 = vld [vmem:[#allocation14 + $0x54] sm:$0xf]
        %v1403 = vld [vmem:[#allocation14 + $0x58] sm:$0xf]
        %v1404 = vld [vmem:[#allocation14 + $0x5c] sm:$0xf]
        %v1405 = vld [vmem:[#allocation14 + $0x60] sm:$0xf]
        %v1406 = vld [vmem:[#allocation14 + $0x64] sm:$0xf]
        %v1407 = vld [vmem:[#allocation14 + $0x68] sm:$0xf]
        %v1408 = vld [vmem:[#allocation14 + $0x6c] sm:$0xf]
        %v1409 = vld [vmem:[#allocation14 + $0x70] sm:$0xf]
        %v1410 = vld [vmem:[#allocation14 + $0x74] sm:$0xf]
        %v1411 = vld [vmem:[#allocation14 + $0x78] sm:$0xf]
        %v1412 = vld [vmem:[#allocation14 + $0x7c] sm:$0xf]
        %v1413 = vperm.slane %v607, 0
        %v1446 = vunpack.c.l.b16 %v1381
        %v1447 = vunpack.c.l.b16 %v1382
        %v1448 = vunpack.c.l.b16 %v1383
        %v1449 = vunpack.c.l.b16 %v1384
        %v1450 = vunpack.c.l.b16 %v1385
        %v1451 = vunpack.c.l.b16 %v1386
        %v1452 = vunpack.c.l.b16 %v1387
        %v1453 = vunpack.c.l.b16 %v1388
        %v1454 = vunpack.c.l.b16 %v1389
        %v1455 = vunpack.c.l.b16 %v1390
        %v1456 = vunpack.c.l.b16 %v1391
        %v1457 = vunpack.c.l.b16 %v1392
        %v1458 = vunpack.c.l.b16 %v1393
        %v1459 = vunpack.c.l.b16 %v1394
        %v1460 = vunpack.c.l.b16 %v1395
        %v1461 = vunpack.c.l.b16 %v1396
        %v1462 = vunpack.c.l.b16 %v1397
        %v1463 = vunpack.c.l.b16 %v1398
        %v1464 = vunpack.c.l.b16 %v1399
        %v1465 = vunpack.c.l.b16 %v1400
        %v1466 = vunpack.c.l.b16 %v1401
        %v1467 = vunpack.c.l.b16 %v1402
        %v1468 = vunpack.c.l.b16 %v1403
        %v1469 = vunpack.c.l.b16 %v1404
        %v1470 = vunpack.c.l.b16 %v1405
        %v1471 = vunpack.c.l.b16 %v1406
        %v1472 = vunpack.c.l.b16 %v1407
        %v1473 = vunpack.c.l.b16 %v1408
        %v1474 = vunpack.c.l.b16 %v1409
        %v1475 = vunpack.c.l.b16 %v1410
        %v1476 = vunpack.c.l.b16 %v1411
        %v1477 = vunpack.c.l.b16 %v1412
        %v1478 = vpack.c.b16 %v1447, %v1446
        %v1479 = vpack.c.b16 %v1449, %v1448
        %v1480 = vpack.c.b16 %v1451, %v1450
        %v1481 = vpack.c.b16 %v1453, %v1452
        %v1482 = vpack.c.b16 %v1455, %v1454
        %v1483 = vpack.c.b16 %v1457, %v1456
        %v1484 = vpack.c.b16 %v1459, %v1458
        %v1485 = vpack.c.b16 %v1461, %v1460
        %v1486 = vpack.c.b16 %v1463, %v1462
        %v1487 = vpack.c.b16 %v1465, %v1464
        %v1488 = vpack.c.b16 %v1467, %v1466
        %v1489 = vpack.c.b16 %v1469, %v1468
        %v1490 = vpack.c.b16 %v1471, %v1470
        %v1491 = vpack.c.b16 %v1473, %v1472
        %v1492 = vpack.c.b16 %v1475, %v1474
        %v1493 = vpack.c.b16 %v1477, %v1476
        %1510 = vmatpush.bf16.msra.mxu0 %v1485
        %1511 = vmatpush.bf16.msra.mxu0 %v1484
        %1512 = vmatpush.bf16.msra.mxu0 %v1483
        %1513 = vmatpush.bf16.msra.mxu0 %v1482
        %1514 = vmatpush.bf16.msra.mxu0 %v1481
        %1515 = vmatpush.bf16.msra.mxu0 %v1480
        %1516 = vmatpush.bf16.msra.mxu0 %v1479
        %1517 = vmatpush.bf16.msra.mxu0 %v1478
        %1518 = vmatmul.bf16.gmra.mxu0 %v1379
        %v1519 = vpop.f32.mrf.mxu0
        %v1520 = vadd.f32 %v1413, %v1519
        %v1521 = vpop.f32.mrf.mxu0
        %1522 = vdwg.mxu0
        %1523 = vmatpush.bf16.msra.mxu0 %v1493
        %1524 = vmatpush.bf16.msra.mxu0 %v1492
        %1525 = vmatpush.bf16.msra.mxu0 %v1491
        %1526 = vmatpush.bf16.msra.mxu0 %v1490
        %1527 = vmatpush.bf16.msra.mxu0 %v1489
        %1528 = vmatpush.bf16.msra.mxu0 %v1488
        %1529 = vmatpush.bf16.msra.mxu0 %v1487
        %1530 = vmatpush.bf16.msra.mxu0 %v1486
        %1531 = vmatmul.bf16.gmra.mxu0 %v1380
        %v1532 = vpop.f32.mrf.mxu0
        %v1533 = vadd.f32 %v1520, %v1532
        %v1534 = vpop.f32.mrf.mxu0
        %1535 = vdwg.mxu0
        %v1536 = vadd.f32 %v1533, %v1071
        %1537 = vst [vmem:[%s588] sm:$0xf] %v968
        %s1538 = scalar_lea.vmem [#allocation19], 8
        %v1539 = vld [vmem:[%s1538] sm:$0x1]
        %v1540 = vld [vmem:[%s1538 + $0x1] sm:$0x1]
        %v1541 = vld [vmem:[%s1538 + $0x2] sm:$0x1]
        %v1542 = vld [vmem:[%s1538 + $0x3] sm:$0x1]
        %v1543 = vld [vmem:[%s504 + $0x1] sm:$0x1]
        %v1544 = vmul.f32 %v1536, %v1536
        %1545 = vadd.xlane.f32.xlu0 %v1544
        %v1546 = vpop.xlane.xlu0 %1545
        %v1547 = vmul.f32 %v1546, %v618
        %v1548 = vadd.f32 %v1547, 1e-06
        %v1549 = vrsqrt.pop %v1548
        %v1550 = vmul.f32 %v1549, %v1548
        %v1551 = vmul.f32 %v1550, %v1549
        %v1552 = vmul.f32 0.5, %v1551
        %v1553 = vsub.f32 1.5, %v1552
        %v1554 = vmul.f32 %v1549, %v1553
        %vm1555 = vweird.f32 %v1548
        %vm1556 = vweird.f32 %v1549
        %vm1557 = vmor %vm1555, %vm1556
        %v1558 = vsel %vm1557, %v1549, %v1554
        %v1559 = vmul.f32 %v1536, %v1558
        %v1560 = vperm.slane %v1539, 0
        %v1561 = vmul.f32 %v1559, %v1560
        %v1562 = vpack.c.bf16 %v1561, %v1561
        %s1563 = scalar_lea.vmem [#allocation10], 192
        %v1564 = vld [vmem:[%s1563] sm:$0xff]
        %v1565 = vld [vmem:[%s1563 + $0x8] sm:$0xf]
        %v1566 = vld [vmem:[%s1563 + $0xc] sm:$0xff]
        %v1567 = vld [vmem:[%s1563 + $0x14] sm:$0xf]
        %v1568 = vld [vmem:[%s1563 + $0x18] sm:$0xff]
        %v1569 = vld [vmem:[%s1563 + $0x20] sm:$0xf]
        %v1570 = vld [vmem:[%s1563 + $0x24] sm:$0xff]
        %v1571 = vld [vmem:[%s1563 + $0x2c] sm:$0xf]
        %v1572 = vld [vmem:[%s1563 + $0x30] sm:$0xff]
        %v1573 = vld [vmem:[%s1563 + $0x38] sm:$0xf]
        %v1574 = vld [vmem:[%s1563 + $0x3c] sm:$0xff]
        %v1575 = vld [vmem:[%s1563 + $0x44] sm:$0xf]
        %v1576 = vld [vmem:[%s1563 + $0x48] sm:$0xff]
        %v1577 = vld [vmem:[%s1563 + $0x50] sm:$0xf]
        %v1578 = vld [vmem:[%s1563 + $0x54] sm:$0xff]
        %v1579 = vld [vmem:[%s1563 + $0x5c] sm:$0xf]
        %v1580 = vld [vmem:[%s1563 + $0x60] sm:$0xff]
        %v1581 = vld [vmem:[%s1563 + $0x68] sm:$0xf]
        %v1582 = vld [vmem:[%s1563 + $0x6c] sm:$0xff]
        %v1583 = vld [vmem:[%s1563 + $0x74] sm:$0xf]
        %v1584 = vld [vmem:[%s1563 + $0x78] sm:$0xff]
        %v1585 = vld [vmem:[%s1563 + $0x80] sm:$0xf]
        %v1586 = vld [vmem:[%s1563 + $0x84] sm:$0xff]
        %v1587 = vld [vmem:[%s1563 + $0x8c] sm:$0xf]
        %v1588 = vld [vmem:[%s1563 + $0x90] sm:$0xff]
        %v1589 = vld [vmem:[%s1563 + $0x98] sm:$0xf]
        %v1590 = vld [vmem:[%s1563 + $0x9c] sm:$0xff]
        %v1591 = vld [vmem:[%s1563 + $0xa4] sm:$0xf]
        %v1592 = vld [vmem:[%s1563 + $0xa8] sm:$0xff]
        %v1593 = vld [vmem:[%s1563 + $0xb0] sm:$0xf]
        %v1594 = vld [vmem:[%s1563 + $0xb4] sm:$0xff]
        %v1595 = vld [vmem:[%s1563 + $0xbc] sm:$0xf]
        %s1596 = scalar_lea.vmem [#allocation16], 3
        %v1597 = vld [vmem:[%s1596] sm:$0x7]
        %v1599 = vperm.slane %v1597, 0
        %v1600 = vperm.slane %v1597, 1
        %v1601 = vperm.slane %v1597, 2
        %v1637 = vunpack.c.l.b16 %v1564
        %v1638 = vunpack.c.h.b16 %v1564
        %v1639 = vunpack.c.l.b16 %v1565
        %v1640 = vunpack.c.l.b16 %v1566
        %v1641 = vunpack.c.h.b16 %v1566
        %v1642 = vunpack.c.l.b16 %v1567
        %v1643 = vunpack.c.l.b16 %v1568
        %v1644 = vunpack.c.h.b16 %v1568
        %v1645 = vunpack.c.l.b16 %v1569
        %v1646 = vunpack.c.l.b16 %v1570
        %v1647 = vunpack.c.h.b16 %v1570
        %v1648 = vunpack.c.l.b16 %v1571
        %v1649 = vunpack.c.l.b16 %v1572
        %v1650 = vunpack.c.h.b16 %v1572
        %v1651 = vunpack.c.l.b16 %v1573
        %v1652 = vunpack.c.l.b16 %v1574
        %v1653 = vunpack.c.h.b16 %v1574
        %v1654 = vunpack.c.l.b16 %v1575
        %v1655 = vunpack.c.l.b16 %v1576
        %v1656 = vunpack.c.h.b16 %v1576
        %v1657 = vunpack.c.l.b16 %v1577
        %v1658 = vunpack.c.l.b16 %v1578
        %v1659 = vunpack.c.h.b16 %v1578
        %v1660 = vunpack.c.l.b16 %v1579
        %v1661 = vunpack.c.l.b16 %v1580
        %v1662 = vunpack.c.h.b16 %v1580
        %v1663 = vunpack.c.l.b16 %v1581
        %v1664 = vunpack.c.l.b16 %v1582
        %v1665 = vunpack.c.h.b16 %v1582
        %v1666 = vunpack.c.l.b16 %v1583
        %v1667 = vunpack.c.l.b16 %v1584
        %v1668 = vunpack.c.h.b16 %v1584
        %v1669 = vunpack.c.l.b16 %v1585
        %v1670 = vunpack.c.l.b16 %v1586
        %v1671 = vunpack.c.h.b16 %v1586
        %v1672 = vunpack.c.l.b16 %v1587
        %v1673 = vunpack.c.l.b16 %v1588
        %v1674 = vunpack.c.h.b16 %v1588
        %v1675 = vunpack.c.l.b16 %v1589
        %v1676 = vunpack.c.l.b16 %v1590
        %v1677 = vunpack.c.h.b16 %v1590
        %v1678 = vunpack.c.l.b16 %v1591
        %v1679 = vunpack.c.l.b16 %v1592
        %v1680 = vunpack.c.h.b16 %v1592
        %v1681 = vunpack.c.l.b16 %v1593
        %v1682 = vunpack.c.l.b16 %v1594
        %v1683 = vunpack.c.h.b16 %v1594
        %v1684 = vunpack.c.l.b16 %v1595
        %v1685 = vpack.c.b16 %v1640, %v1637
        %v1686 = vpack.c.b16 %v1641, %v1638
        %v1687 = vpack.c.b16 %v1642, %v1639
        %v1688 = vpack.c.b16 %v1646, %v1643
        %v1689 = vpack.c.b16 %v1647, %v1644
        %v1690 = vpack.c.b16 %v1648, %v1645
        %v1691 = vpack.c.b16 %v1652, %v1649
        %v1692 = vpack.c.b16 %v1653, %v1650
        %v1693 = vpack.c.b16 %v1654, %v1651
        %v1694 = vpack.c.b16 %v1658, %v1655
        %v1695 = vpack.c.b16 %v1659, %v1656
        %v1696 = vpack.c.b16 %v1660, %v1657
        %v1697 = vpack.c.b16 %v1664, %v1661
        %v1698 = vpack.c.b16 %v1665, %v1662
        %v1699 = vpack.c.b16 %v1666, %v1663
        %v1700 = vpack.c.b16 %v1670, %v1667
        %v1701 = vpack.c.b16 %v1671, %v1668
        %v1702 = vpack.c.b16 %v1672, %v1669
        %v1703 = vpack.c.b16 %v1676, %v1673
        %v1704 = vpack.c.b16 %v1677, %v1674
        %v1705 = vpack.c.b16 %v1678, %v1675
        %v1706 = vpack.c.b16 %v1682, %v1679
        %v1707 = vpack.c.b16 %v1683, %v1680
        %v1708 = vpack.c.b16 %v1684, %v1681
        %1733 = vmatpush.bf16.msra.mxu0 %v1706
        %1734 = vmatpush.bf16.msra.mxu0 %v1703
        %1735 = vmatpush.bf16.msra.mxu0 %v1700
        %1736 = vmatpush.bf16.msra.mxu0 %v1697
        %1737 = vmatpush.bf16.msra.mxu0 %v1694
        %1738 = vmatpush.bf16.msra.mxu0 %v1691
        %1739 = vmatpush.bf16.msra.mxu0 %v1688
        %1740 = vmatpush.bf16.msra.mxu0 %v1685
        %1741 = vmatmul.bf16.gmra.mxu0 %v1562
        %v1742 = vpop.f32.mrf.mxu0
        %v1743 = vadd.f32 %v1599, %v1742
        %v1744 = vpop.f32.mrf.mxu0
        %1745 = vdwg.mxu0
        %1746 = vmatpush.bf16.msra.mxu0 %v1707
        %1747 = vmatpush.bf16.msra.mxu0 %v1704
        %1748 = vmatpush.bf16.msra.mxu0 %v1701
        %1749 = vmatpush.bf16.msra.mxu0 %v1698
        %1750 = vmatpush.bf16.msra.mxu0 %v1695
        %1751 = vmatpush.bf16.msra.mxu0 %v1692
        %1752 = vmatpush.bf16.msra.mxu0 %v1689
        %1753 = vmatpush.bf16.msra.mxu0 %v1686
        %1754 = vmatmul.bf16.gmra.mxu0 %v1562
        %v1755 = vpop.f32.mrf.mxu0
        %v1756 = vadd.f32 %v1600, %v1755
        %v1757 = vpop.f32.mrf.mxu0
        %1758 = vdwg.mxu0
        %1759 = vmatpush.bf16.msra.mxu0 %v1708
        %1760 = vmatpush.bf16.msra.mxu0 %v1705
        %1761 = vmatpush.bf16.msra.mxu0 %v1702
        %1762 = vmatpush.bf16.msra.mxu0 %v1699
        %1763 = vmatpush.bf16.msra.mxu0 %v1696
        %1764 = vmatpush.bf16.msra.mxu0 %v1693
        %1765 = vmatpush.bf16.msra.mxu0 %v1690
        %1766 = vmatpush.bf16.msra.mxu0 %v1687
        %1767 = vmatmul.bf16.gmra.mxu0 %v1562
        %v1768 = vpop.f32.mrf.mxu0
        %v1769 = vadd.f32 %v1601, %v1768
        %v1770 = vpop.f32.mrf.mxu0
        %1771 = vdwg.mxu0
        %v1772 = vsub.f32 0.0, %v1743
        %v1773 = vmax.f32 %v1772, 0.0
        %vm1774 = vcmp.ne.f32.partialorder %v1772, %v1772
        %v1775 = vadd.f32 %v1772, 0.0
        %v1776 = vand.u32 2147483647, %v1772
        %v1777 = vsub.f32 0.0, %v1776
        %v1778 = vmul.f32 %v1777, 1.442695
        %v1779 = vpow.pop %v1778
        %v1780 = vadd.f32 %v1779, 1.0
        %v1781 = vlog2.pop %v1780
        %v1782 = vmul.f32 %v1781, 0.6931472
        %v1783 = vmul.f32 -0.5, %v1779
        %v1784 = vadd.f32 %v1783, 1.0
        %v1785 = vmul.f32 %v1784, %v1779
        %v1786 = vand.u32 2147483647, %v1779
        %vm1787 = vcmp.lt.f32.partialorder %v1786, 0.0004427343
        %v1788 = vsel %vm1787, %v1785, %v1782
        %v1789 = vadd.f32 %v1773, %v1788
        %v1790 = vsel %vm1774, %v1775, %v1789
        %v1791 = vsub.f32 0.0, %v1790
        %v1792 = vsub.f32 0.0, %v1756
        %v1793 = vmax.f32 %v1792, 0.0
        %vm1794 = vcmp.ne.f32.partialorder %v1792, %v1792
        %v1795 = vadd.f32 %v1792, 0.0
        %v1796 = vand.u32 2147483647, %v1792
        %v1797 = vsub.f32 0.0, %v1796
        %v1798 = vmul.f32 %v1797, 1.442695
        %v1799 = vpow.pop %v1798
        %v1800 = vadd.f32 %v1799, 1.0
        %v1801 = vlog2.pop %v1800
        %v1802 = vmul.f32 %v1801, 0.6931472
        %v1803 = vmul.f32 -0.5, %v1799
        %v1804 = vadd.f32 %v1803, 1.0
        %v1805 = vmul.f32 %v1804, %v1799
        %v1806 = vand.u32 2147483647, %v1799
        %vm1807 = vcmp.lt.f32.partialorder %v1806, 0.0004427343
        %v1808 = vsel %vm1807, %v1805, %v1802
        %v1809 = vadd.f32 %v1793, %v1808
        %v1810 = vsel %vm1794, %v1795, %v1809
        %v1811 = vsub.f32 0.0, %v1810
        %v1812 = vadd.f32 %v1791, %v1811
        %v1813 = vsub.f32 %v1811, %v1756
        %s1814 = scalar_lea.vmem [#allocation2], 1
        %v1815 = vld [vmem:[%s1814] sm:$0x1]
        %v1817 = vperm.slane %v1815, 0
        %1819 = vmatpush.msra.mxu0 0.0
        %1820 = vmatpush.msra.mxu0 0.0
        %1821 = vmatpush.msra.mxu0 0.0
        %1822 = vmatpush.msra.mxu0 0.0
        %1823 = vmatpush.msra.mxu0 0.0
        %1824 = vmatpush.msra.mxu0 0.0
        %1825 = vmatpush.msra.mxu0 0.0
        %1826 = vmatpush.msra.mxu0 0.0
        %1827 = vmatpush.msra.mxu0 0.0
        %1828 = vmatpush.msra.mxu0 0.0
        %1829 = vmatpush.msra.mxu0 0.0
        %1830 = vmatpush.msra.mxu0 0.0
        %1831 = vmatpush.msra.mxu0 0.0
        %1832 = vmatpush.msra.mxu0 0.0
        %1833 = vmatpush.msra.mxu0 0.0
        %1834 = vmatpush.msra.mxu0 %v1813
        %1835 = vmatmul.f32.gmra.mxu0 %v890
        %v1836 = vpop.f32.mrf.mxu0
        %v1837 = vadd.f32 %v1817, %v1836
        %1838 = vdwg.mxu0
        %v1839 = vsub.f32 %v1812, %v1837
        %s1840 = scalar_lea.vmem [#allocation3], 1
        %v1841 = vld [vmem:[%s1840] sm:$0x1]
        %s1842 = scalar_lea.vmem [#allocation4], 1
        %v1843 = vld [vmem:[%s1842] sm:$0x1]
        %v1844 = vrot.slane %v1839, 4
        %v1845 = vmax.f32 %v1839, %v1844
        %v1846 = vrot.slane %v1845, 2
        %v1847 = vmax.f32 %v1845, %v1846
        %v1848 = vrot.slane %v1847, 1
        %v1849 = vmax.f32 %v1847, %v1848
        %v1850 = vmax.f32 %v1841, %v1849
        %v1852 = vperm.slane %v1850, 0
        %v1854 = vsub.f32 %v1839, %v1852
        %v1855 = vmul.f32 %v1854, 1.442695
        %v1856 = vpow.pop %v1855
        %v1857 = vpack.c.bf16 %v1856, %v1856
        %v1858 = vsub.f32 %v1841, %v1850
        %v1859 = vmul.f32 %v1858, 1.442695
        %v1860 = vpow.pop %v1859
        %v1861 = vmul.f32 %v1843, %v1860
        %v1863 = vperm.slane %v1861, 0
        %v1866 = vsel %vm939, %v1857, 0
        %1868 = vmatpush.bf16.msra.mxu0 0
        %1869 = vmatpush.bf16.msra.mxu0 0
        %1870 = vmatpush.bf16.msra.mxu0 0
        %1871 = vmatpush.bf16.msra.mxu0 0
        %1872 = vmatpush.bf16.msra.mxu0 0
        %1873 = vmatpush.bf16.msra.mxu0 0
        %1874 = vmatpush.bf16.msra.mxu0 0
        %1875 = vmatpush.bf16.msra.mxu0 %v1866
        %1876 = vmatmul.bf16.gmra.mxu0 %v937
        %v1877 = vpop.f32.mrf.mxu0
        %v1878 = vadd.f32 %v1863, %v1877
        %v1879 = vpop.f32.mrf.mxu0
        %1880 = vdwg.mxu0
        %v1881 = vadd.f32 %v1852, %v1837
        %v1882 = vmul.f32 %v1881, 1.442695
        %v1883 = vpow.pop %v1882
        %v1884 = vmul.f32 %v1883, %v1878
        %v1885 = vmul.f32 %v1837, 1.442695
        %v1886 = vpow.pop %v1885
        %v1887 = vperm.slane %v1543, 0
        %v1888 = vmul.f32 %v1886, %v1887
        %v1889 = vadd.f32 %v1884, %v1888
        %1890 = vst [vmem:[%s1814 - $0x7] sm:$0x80] %v1837
        %1891 = vst [vmem:[%s1840] sm:$0x1] %v1850
        %1892 = vst [vmem:[%s1842 - $0x7] sm:$0x80] %v1878
        %v1893 = vpack.c.bf16 %v1889, %v1889
        %s1894 = scalar_lea.vmem [#allocation11], 64
        %v1895 = vld [vmem:[%s1894] sm:$0xf]
        %v1896 = vld [vmem:[%s1894 + $0x4] sm:$0xf]
        %v1897 = vld [vmem:[%s1894 + $0x8] sm:$0xf]
        %v1898 = vld [vmem:[%s1894 + $0xc] sm:$0xf]
        %v1899 = vld [vmem:[%s1894 + $0x10] sm:$0xf]
        %v1900 = vld [vmem:[%s1894 + $0x14] sm:$0xf]
        %v1901 = vld [vmem:[%s1894 + $0x18] sm:$0xf]
        %v1902 = vld [vmem:[%s1894 + $0x1c] sm:$0xf]
        %v1903 = vld [vmem:[%s1894 + $0x20] sm:$0xf]
        %v1904 = vld [vmem:[%s1894 + $0x24] sm:$0xf]
        %v1905 = vld [vmem:[%s1894 + $0x28] sm:$0xf]
        %v1906 = vld [vmem:[%s1894 + $0x2c] sm:$0xf]
        %v1907 = vld [vmem:[%s1894 + $0x30] sm:$0xf]
        %v1908 = vld [vmem:[%s1894 + $0x34] sm:$0xf]
        %v1909 = vld [vmem:[%s1894 + $0x38] sm:$0xf]
        %v1910 = vld [vmem:[%s1894 + $0x3c] sm:$0xf]
        %v1911 = vperm.slane %v1541, 0
        %v1928 = vunpack.c.l.b16 %v1895
        %v1929 = vunpack.c.l.b16 %v1896
        %v1930 = vunpack.c.l.b16 %v1897
        %v1931 = vunpack.c.l.b16 %v1898
        %v1932 = vunpack.c.l.b16 %v1899
        %v1933 = vunpack.c.l.b16 %v1900
        %v1934 = vunpack.c.l.b16 %v1901
        %v1935 = vunpack.c.l.b16 %v1902
        %v1936 = vunpack.c.l.b16 %v1903
        %v1937 = vunpack.c.l.b16 %v1904
        %v1938 = vunpack.c.l.b16 %v1905
        %v1939 = vunpack.c.l.b16 %v1906
        %v1940 = vunpack.c.l.b16 %v1907
        %v1941 = vunpack.c.l.b16 %v1908
        %v1942 = vunpack.c.l.b16 %v1909
        %v1943 = vunpack.c.l.b16 %v1910
        %v1944 = vpack.c.b16 %v1929, %v1928
        %v1945 = vpack.c.b16 %v1931, %v1930
        %v1946 = vpack.c.b16 %v1933, %v1932
        %v1947 = vpack.c.b16 %v1935, %v1934
        %v1948 = vpack.c.b16 %v1937, %v1936
        %v1949 = vpack.c.b16 %v1939, %v1938
        %v1950 = vpack.c.b16 %v1941, %v1940
        %v1951 = vpack.c.b16 %v1943, %v1942
        %1960 = vmatpush.bf16.msra.mxu0 %v1951
        %1961 = vmatpush.bf16.msra.mxu0 %v1950
        %1962 = vmatpush.bf16.msra.mxu0 %v1949
        %1963 = vmatpush.bf16.msra.mxu0 %v1948
        %1964 = vmatpush.bf16.msra.mxu0 %v1947
        %1965 = vmatpush.bf16.msra.mxu0 %v1946
        %1966 = vmatpush.bf16.msra.mxu0 %v1945
        %1967 = vmatpush.bf16.msra.mxu0 %v1944
        %1968 = vmatmul.bf16.gmra.mxu0 %v1893
        %v1969 = vpop.f32.mrf.mxu0
        %v1970 = vadd.f32 %v1911, %v1969
        %v1971 = vpop.f32.mrf.mxu0
        %1972 = vdwg.mxu0
        %v1973 = vpack.c.bf16 %v1769, %v1769
        %v1974 = vxor.u32 %v1973, 2147516416
        %v1975 = vunpack.c.l.bf16 %v1974
        %v1976 = vmul.f32 %v1975, 1.442695
        %v1977 = vpow.pop %v1976
        %v1978 = vpack.c.bf16 %v1977, %v1977
        %v1979 = vunpack.c.l.bf16 %v1978
        %v1980 = vadd.f32 %v1979, 1.0
        %v1981 = vpack.c.bf16 %v1980, %v1980
        %v1982 = vunpack.c.h.bf16 %v1981
        %v1983 = vunpack.c.l.bf16 %v1981
        %v1984 = vrcp.pop %v1982
        %v1985 = vmul.f32 %v1056, %v1984
        %v1986 = vrcp.pop %v1983
        %v1987 = vmul.f32 %v1057, %v1986
        %v1988 = vpack.c.bf16 %v1985, %v1987
        %v1989 = vunpack.c.l.bf16 %v1973
        %v1990 = vunpack.c.l.bf16 %v1988
        %v1991 = vmul.f32 %v1989, %v1990
        %v1992 = vpack.c.bf16 %v1991, %v1991
        %v1993 = vunpack.c.l.bf16 %v1992
        %v1994 = vmul.f32 %v1970, %v1993
        %v1995 = vadd.f32 %v1994, %v1536
        %v1996 = vmul.f32 %v1995, %v1995
        %1997 = vadd.xlane.f32.xlu0 %v1996
        %v1998 = vpop.xlane.xlu0 %1997
        %v1999 = vmul.f32 %v1998, %v618
        %v2000 = vadd.f32 %v1999, 1e-06
        %v2001 = vrsqrt.pop %v2000
        %v2002 = vmul.f32 %v2001, %v2000
        %v2003 = vmul.f32 %v2002, %v2001
        %v2004 = vmul.f32 0.5, %v2003
        %v2005 = vsub.f32 1.5, %v2004
        %v2006 = vmul.f32 %v2001, %v2005
        %vm2007 = vweird.f32 %v2000
        %vm2008 = vweird.f32 %v2001
        %vm2009 = vmor %vm2007, %vm2008
        %v2010 = vsel %vm2009, %v2001, %v2006
        %v2011 = vmul.f32 %v1995, %v2010
        %v2012 = vperm.slane %v1540, 0
        %v2013 = vmul.f32 %v2011, %v2012
        %v2014 = vpack.c.bf16 %v2013, %v2013
        %s2015 = scalar_lea.vmem [#allocation13], 256
        %v2016 = vld [vmem:[%s2015] sm:$0xff]
        %v2017 = vld [vmem:[%s2015 + $0x10] sm:$0xff]
        %v2018 = vld [vmem:[%s2015 + $0x20] sm:$0xff]
        %v2019 = vld [vmem:[%s2015 + $0x30] sm:$0xff]
        %v2020 = vld [vmem:[%s2015 + $0x40] sm:$0xff]
        %v2021 = vld [vmem:[%s2015 + $0x50] sm:$0xff]
        %v2022 = vld [vmem:[%s2015 + $0x60] sm:$0xff]
        %v2023 = vld [vmem:[%s2015 + $0x70] sm:$0xff]
        %v2024 = vld [vmem:[%s2015 + $0x80] sm:$0xff]
        %v2025 = vld [vmem:[%s2015 + $0x90] sm:$0xff]
        %v2026 = vld [vmem:[%s2015 + $0xa0] sm:$0xff]
        %v2027 = vld [vmem:[%s2015 + $0xb0] sm:$0xff]
        %v2028 = vld [vmem:[%s2015 + $0xc0] sm:$0xff]
        %v2029 = vld [vmem:[%s2015 + $0xd0] sm:$0xff]
        %v2030 = vld [vmem:[%s2015 + $0xe0] sm:$0xff]
        %v2031 = vld [vmem:[%s2015 + $0xf0] sm:$0xff]
        %s2032 = scalar_lea.vmem [#allocation17], 4
        %v2033 = vld [vmem:[%s2032] sm:$0x3]
        %v2035 = vperm.slane %v2033, 0
        %v2036 = vperm.slane %v2033, 1
        %v2055 = vunpack.c.l.b16 %v2016
        %v2056 = vunpack.c.h.b16 %v2016
        %v2057 = vunpack.c.l.b16 %v2017
        %v2058 = vunpack.c.h.b16 %v2017
        %v2059 = vunpack.c.l.b16 %v2018
        %v2060 = vunpack.c.h.b16 %v2018
        %v2061 = vunpack.c.l.b16 %v2019
        %v2062 = vunpack.c.h.b16 %v2019
        %v2063 = vunpack.c.l.b16 %v2020
        %v2064 = vunpack.c.h.b16 %v2020
        %v2065 = vunpack.c.l.b16 %v2021
        %v2066 = vunpack.c.h.b16 %v2021
        %v2067 = vunpack.c.l.b16 %v2022
        %v2068 = vunpack.c.h.b16 %v2022
        %v2069 = vunpack.c.l.b16 %v2023
        %v2070 = vunpack.c.h.b16 %v2023
        %v2071 = vunpack.c.l.b16 %v2024
        %v2072 = vunpack.c.h.b16 %v2024
        %v2073 = vunpack.c.l.b16 %v2025
        %v2074 = vunpack.c.h.b16 %v2025
        %v2075 = vunpack.c.l.b16 %v2026
        %v2076 = vunpack.c.h.b16 %v2026
        %v2077 = vunpack.c.l.b16 %v2027
        %v2078 = vunpack.c.h.b16 %v2027
        %v2079 = vunpack.c.l.b16 %v2028
        %v2080 = vunpack.c.h.b16 %v2028
        %v2081 = vunpack.c.l.b16 %v2029
        %v2082 = vunpack.c.h.b16 %v2029
        %v2083 = vunpack.c.l.b16 %v2030
        %v2084 = vunpack.c.h.b16 %v2030
        %v2085 = vunpack.c.l.b16 %v2031
        %v2086 = vunpack.c.h.b16 %v2031
        %v2087 = vpack.c.b16 %v2057, %v2055
        %v2088 = vpack.c.b16 %v2058, %v2056
        %v2089 = vpack.c.b16 %v2061, %v2059
        %v2090 = vpack.c.b16 %v2062, %v2060
        %v2091 = vpack.c.b16 %v2065, %v2063
        %v2092 = vpack.c.b16 %v2066, %v2064
        %v2093 = vpack.c.b16 %v2069, %v2067
        %v2094 = vpack.c.b16 %v2070, %v2068
        %v2095 = vpack.c.b16 %v2073, %v2071
        %v2096 = vpack.c.b16 %v2074, %v2072
        %v2097 = vpack.c.b16 %v2077, %v2075
        %v2098 = vpack.c.b16 %v2078, %v2076
        %v2099 = vpack.c.b16 %v2081, %v2079
        %v2100 = vpack.c.b16 %v2082, %v2080
        %v2101 = vpack.c.b16 %v2085, %v2083
        %v2102 = vpack.c.b16 %v2086, %v2084
        %2119 = vmatpush.bf16.msra.mxu0 %v2101
        %2120 = vmatpush.bf16.msra.mxu0 %v2099
        %2121 = vmatpush.bf16.msra.mxu0 %v2097
        %2122 = vmatpush.bf16.msra.mxu0 %v2095
        %2123 = vmatpush.bf16.msra.mxu0 %v2093
        %2124 = vmatpush.bf16.msra.mxu0 %v2091
        %2125 = vmatpush.bf16.msra.mxu0 %v2089
        %2126 = vmatpush.bf16.msra.mxu0 %v2087
        %2127 = vmatmul.bf16.gmra.mxu0 %v2014
        %v2128 = vpop.f32.mrf.mxu0
        %v2129 = vadd.f32 %v2035, %v2128
        %v2130 = vpop.f32.mrf.mxu0
        %2131 = vdwg.mxu0
        %2132 = vmatpush.bf16.msra.mxu0 %v2102
        %2133 = vmatpush.bf16.msra.mxu0 %v2100
        %2134 = vmatpush.bf16.msra.mxu0 %v2098
        %2135 = vmatpush.bf16.msra.mxu0 %v2096
        %2136 = vmatpush.bf16.msra.mxu0 %v2094
        %2137 = vmatpush.bf16.msra.mxu0 %v2092
        %2138 = vmatpush.bf16.msra.mxu0 %v2090
        %2139 = vmatpush.bf16.msra.mxu0 %v2088
        %2140 = vmatmul.bf16.gmra.mxu0 %v2014
        %v2141 = vpop.f32.mrf.mxu0
        %v2142 = vadd.f32 %v2036, %v2141
        %v2143 = vpop.f32.mrf.mxu0
        %2144 = vdwg.mxu0
        %v2145 = vld [vmem:[%s2015 + $0x8] sm:$0xff]
        %v2146 = vld [vmem:[%s2015 + $0x18] sm:$0xff]
        %v2147 = vld [vmem:[%s2015 + $0x28] sm:$0xff]
        %v2148 = vld [vmem:[%s2015 + $0x38] sm:$0xff]
        %v2149 = vld [vmem:[%s2015 + $0x48] sm:$0xff]
        %v2150 = vld [vmem:[%s2015 + $0x58] sm:$0xff]
        %v2151 = vld [vmem:[%s2015 + $0x68] sm:$0xff]
        %v2152 = vld [vmem:[%s2015 + $0x78] sm:$0xff]
        %v2153 = vld [vmem:[%s2015 + $0x88] sm:$0xff]
        %v2154 = vld [vmem:[%s2015 + $0x98] sm:$0xff]
        %v2155 = vld [vmem:[%s2015 + $0xa8] sm:$0xff]
        %v2156 = vld [vmem:[%s2015 + $0xb8] sm:$0xff]
        %v2157 = vld [vmem:[%s2015 + $0xc8] sm:$0xff]
        %v2158 = vld [vmem:[%s2015 + $0xd8] sm:$0xff]
        %v2159 = vld [vmem:[%s2015 + $0xe8] sm:$0xff]
        %v2160 = vld [vmem:[%s2015 + $0xf8] sm:$0xff]
        %v2161 = vld [vmem:[%s2032 + $0x2] sm:$0x3]
        %v2163 = vperm.slane %v2161, 0
        %v2164 = vperm.slane %v2161, 1
        %v2183 = vunpack.c.l.b16 %v2145
        %v2184 = vunpack.c.h.b16 %v2145
        %v2185 = vunpack.c.l.b16 %v2146
        %v2186 = vunpack.c.h.b16 %v2146
        %v2187 = vunpack.c.l.b16 %v2147
        %v2188 = vunpack.c.h.b16 %v2147
        %v2189 = vunpack.c.l.b16 %v2148
        %v2190 = vunpack.c.h.b16 %v2148
        %v2191 = vunpack.c.l.b16 %v2149
        %v2192 = vunpack.c.h.b16 %v2149
        %v2193 = vunpack.c.l.b16 %v2150
        %v2194 = vunpack.c.h.b16 %v2150
        %v2195 = vunpack.c.l.b16 %v2151
        %v2196 = vunpack.c.h.b16 %v2151
        %v2197 = vunpack.c.l.b16 %v2152
        %v2198 = vunpack.c.h.b16 %v2152
        %v2199 = vunpack.c.l.b16 %v2153
        %v2200 = vunpack.c.h.b16 %v2153
        %v2201 = vunpack.c.l.b16 %v2154
        %v2202 = vunpack.c.h.b16 %v2154
        %v2203 = vunpack.c.l.b16 %v2155
        %v2204 = vunpack.c.h.b16 %v2155
        %v2205 = vunpack.c.l.b16 %v2156
        %v2206 = vunpack.c.h.b16 %v2156
        %v2207 = vunpack.c.l.b16 %v2157
        %v2208 = vunpack.c.h.b16 %v2157
        %v2209 = vunpack.c.l.b16 %v2158
        %v2210 = vunpack.c.h.b16 %v2158
        %v2211 = vunpack.c.l.b16 %v2159
        %v2212 = vunpack.c.h.b16 %v2159
        %v2213 = vunpack.c.l.b16 %v2160
        %v2214 = vunpack.c.h.b16 %v2160
        %v2215 = vpack.c.b16 %v2185, %v2183
        %v2216 = vpack.c.b16 %v2186, %v2184
        %v2217 = vpack.c.b16 %v2189, %v2187
        %v2218 = vpack.c.b16 %v2190, %v2188
        %v2219 = vpack.c.b16 %v2193, %v2191
        %v2220 = vpack.c.b16 %v2194, %v2192
        %v2221 = vpack.c.b16 %v2197, %v2195
        %v2222 = vpack.c.b16 %v2198, %v2196
        %v2223 = vpack.c.b16 %v2201, %v2199
        %v2224 = vpack.c.b16 %v2202, %v2200
        %v2225 = vpack.c.b16 %v2205, %v2203
        %v2226 = vpack.c.b16 %v2206, %v2204
        %v2227 = vpack.c.b16 %v2209, %v2207
        %v2228 = vpack.c.b16 %v2210, %v2208
        %v2229 = vpack.c.b16 %v2213, %v2211
        %v2230 = vpack.c.b16 %v2214, %v2212
        %2247 = vmatpush.bf16.msra.mxu0 %v2229
        %2248 = vmatpush.bf16.msra.mxu0 %v2227
        %2249 = vmatpush.bf16.msra.mxu0 %v2225
        %2250 = vmatpush.bf16.msra.mxu0 %v2223
        %2251 = vmatpush.bf16.msra.mxu0 %v2221
        %2252 = vmatpush.bf16.msra.mxu0 %v2219
        %2253 = vmatpush.bf16.msra.mxu0 %v2217
        %2254 = vmatpush.bf16.msra.mxu0 %v2215
        %2255 = vmatmul.bf16.gmra.mxu0 %v2014
        %v2256 = vpop.f32.mrf.mxu0
        %v2257 = vadd.f32 %v2163, %v2256
        %v2258 = vpop.f32.mrf.mxu0
        %2259 = vdwg.mxu0
        %2260 = vmatpush.bf16.msra.mxu0 %v2230
        %2261 = vmatpush.bf16.msra.mxu0 %v2228
        %2262 = vmatpush.bf16.msra.mxu0 %v2226
        %2263 = vmatpush.bf16.msra.mxu0 %v2224
        %2264 = vmatpush.bf16.msra.mxu0 %v2222
        %2265 = vmatpush.bf16.msra.mxu0 %v2220
        %2266 = vmatpush.bf16.msra.mxu0 %v2218
        %2267 = vmatpush.bf16.msra.mxu0 %v2216
        %2268 = vmatmul.bf16.gmra.mxu0 %v2014
        %v2269 = vpop.f32.mrf.mxu0
        %v2270 = vadd.f32 %v2164, %v2269
        %v2271 = vpop.f32.mrf.mxu0
        %2272 = vdwg.mxu0
        %v2273 = vpack.c.bf16 %v2270, %v2257
        %v2274 = vxor.u32 %v2273, 2147516416
        %v2275 = vunpack.c.l.bf16 %v2274
        %v2276 = vunpack.c.h.bf16 %v2274
        %v2277 = vmul.f32 %v2275, 1.442695
        %v2278 = vpow.pop %v2277
        %v2279 = vmul.f32 %v2276, 1.442695
        %v2280 = vpow.pop %v2279
        %v2281 = vpack.c.bf16 %v2280, %v2278
        %v2282 = vunpack.c.l.bf16 %v2281
        %v2283 = vunpack.c.h.bf16 %v2281
        %v2284 = vadd.f32 %v2282, 1.0
        %v2285 = vadd.f32 %v2283, 1.0
        %v2286 = vpack.c.bf16 %v2285, %v2284
        %v2287 = vunpack.c.h.bf16 %v2286
        %v2288 = vunpack.c.l.bf16 %v2286
        %v2289 = vrcp.pop %v2287
        %v2290 = vmul.f32 %v1056, %v2289
        %v2291 = vrcp.pop %v2288
        %v2292 = vmul.f32 %v1057, %v2291
        %v2293 = vpack.c.bf16 %v2290, %v2292
        %v2294 = vunpack.c.l.bf16 %v2273
        %v2295 = vunpack.c.h.bf16 %v2273
        %v2296 = vunpack.c.l.bf16 %v2293
        %v2297 = vunpack.c.h.bf16 %v2293
        %v2298 = vmul.f32 %v2294, %v2296
        %v2299 = vmul.f32 %v2295, %v2297
        %v2300 = vpack.c.bf16 %v2299, %v2298
        %v2301 = vunpack.c.l.bf16 %v2300
        %v2302 = vunpack.c.h.bf16 %v2300
        %v2303 = vmul.f32 %v2129, %v2301
        %v2304 = vmul.f32 %v2142, %v2302
        %v2305 = vpack.c.bf16 %v2303, %v2303
        %v2306 = vpack.c.bf16 %v2304, %v2304
        %s2307 = scalar_lea.vmem [#allocation14], 128
        %v2308 = vld [vmem:[%s2307] sm:$0xf]
        %v2309 = vld [vmem:[%s2307 + $0x4] sm:$0xf]
        %v2310 = vld [vmem:[%s2307 + $0x8] sm:$0xf]
        %v2311 = vld [vmem:[%s2307 + $0xc] sm:$0xf]
        %v2312 = vld [vmem:[%s2307 + $0x10] sm:$0xf]
        %v2313 = vld [vmem:[%s2307 + $0x14] sm:$0xf]
        %v2314 = vld [vmem:[%s2307 + $0x18] sm:$0xf]
        %v2315 = vld [vmem:[%s2307 + $0x1c] sm:$0xf]
        %v2316 = vld [vmem:[%s2307 + $0x20] sm:$0xf]
        %v2317 = vld [vmem:[%s2307 + $0x24] sm:$0xf]
        %v2318 = vld [vmem:[%s2307 + $0x28] sm:$0xf]
        %v2319 = vld [vmem:[%s2307 + $0x2c] sm:$0xf]
        %v2320 = vld [vmem:[%s2307 + $0x30] sm:$0xf]
        %v2321 = vld [vmem:[%s2307 + $0x34] sm:$0xf]
        %v2322 = vld [vmem:[%s2307 + $0x38] sm:$0xf]
        %v2323 = vld [vmem:[%s2307 + $0x3c] sm:$0xf]
        %v2324 = vld [vmem:[%s2307 + $0x40] sm:$0xf]
        %v2325 = vld [vmem:[%s2307 + $0x44] sm:$0xf]
        %v2326 = vld [vmem:[%s2307 + $0x48] sm:$0xf]
        %v2327 = vld [vmem:[%s2307 + $0x4c] sm:$0xf]
        %v2328 = vld [vmem:[%s2307 + $0x50] sm:$0xf]
        %v2329 = vld [vmem:[%s2307 + $0x54] sm:$0xf]
        %v2330 = vld [vmem:[%s2307 + $0x58] sm:$0xf]
        %v2331 = vld [vmem:[%s2307 + $0x5c] sm:$0xf]
        %v2332 = vld [vmem:[%s2307 + $0x60] sm:$0xf]
        %v2333 = vld [vmem:[%s2307 + $0x64] sm:$0xf]
        %v2334 = vld [vmem:[%s2307 + $0x68] sm:$0xf]
        %v2335 = vld [vmem:[%s2307 + $0x6c] sm:$0xf]
        %v2336 = vld [vmem:[%s2307 + $0x70] sm:$0xf]
        %v2337 = vld [vmem:[%s2307 + $0x74] sm:$0xf]
        %v2338 = vld [vmem:[%s2307 + $0x78] sm:$0xf]
        %v2339 = vld [vmem:[%s2307 + $0x7c] sm:$0xf]
        %v2340 = vperm.slane %v1542, 0
        %v2373 = vunpack.c.l.b16 %v2308
        %v2374 = vunpack.c.l.b16 %v2309
        %v2375 = vunpack.c.l.b16 %v2310
        %v2376 = vunpack.c.l.b16 %v2311
        %v2377 = vunpack.c.l.b16 %v2312
        %v2378 = vunpack.c.l.b16 %v2313
        %v2379 = vunpack.c.l.b16 %v2314
        %v2380 = vunpack.c.l.b16 %v2315
        %v2381 = vunpack.c.l.b16 %v2316
        %v2382 = vunpack.c.l.b16 %v2317
        %v2383 = vunpack.c.l.b16 %v2318
        %v2384 = vunpack.c.l.b16 %v2319
        %v2385 = vunpack.c.l.b16 %v2320
        %v2386 = vunpack.c.l.b16 %v2321
        %v2387 = vunpack.c.l.b16 %v2322
        %v2388 = vunpack.c.l.b16 %v2323
        %v2389 = vunpack.c.l.b16 %v2324
        %v2390 = vunpack.c.l.b16 %v2325
        %v2391 = vunpack.c.l.b16 %v2326
        %v2392 = vunpack.c.l.b16 %v2327
        %v2393 = vunpack.c.l.b16 %v2328
        %v2394 = vunpack.c.l.b16 %v2329
        %v2395 = vunpack.c.l.b16 %v2330
        %v2396 = vunpack.c.l.b16 %v2331
        %v2397 = vunpack.c.l.b16 %v2332
        %v2398 = vunpack.c.l.b16 %v2333
        %v2399 = vunpack.c.l.b16 %v2334
        %v2400 = vunpack.c.l.b16 %v2335
        %v2401 = vunpack.c.l.b16 %v2336
        %v2402 = vunpack.c.l.b16 %v2337
        %v2403 = vunpack.c.l.b16 %v2338
        %v2404 = vunpack.c.l.b16 %v2339
        %v2405 = vpack.c.b16 %v2374, %v2373
        %v2406 = vpack.c.b16 %v2376, %v2375
        %v2407 = vpack.c.b16 %v2378, %v2377
        %v2408 = vpack.c.b16 %v2380, %v2379
        %v2409 = vpack.c.b16 %v2382, %v2381
        %v2410 = vpack.c.b16 %v2384, %v2383
        %v2411 = vpack.c.b16 %v2386, %v2385
        %v2412 = vpack.c.b16 %v2388, %v2387
        %v2413 = vpack.c.b16 %v2390, %v2389
        %v2414 = vpack.c.b16 %v2392, %v2391
        %v2415 = vpack.c.b16 %v2394, %v2393
        %v2416 = vpack.c.b16 %v2396, %v2395
        %v2417 = vpack.c.b16 %v2398, %v2397
        %v2418 = vpack.c.b16 %v2400, %v2399
        %v2419 = vpack.c.b16 %v2402, %v2401
        %v2420 = vpack.c.b16 %v2404, %v2403
        %2437 = vmatpush.bf16.msra.mxu0 %v2412
        %2438 = vmatpush.bf16.msra.mxu0 %v2411
        %2439 = vmatpush.bf16.msra.mxu0 %v2410
        %2440 = vmatpush.bf16.msra.mxu0 %v2409
        %2441 = vmatpush.bf16.msra.mxu0 %v2408
        %2442 = vmatpush.bf16.msra.mxu0 %v2407
        %2443 = vmatpush.bf16.msra.mxu0 %v2406
        %2444 = vmatpush.bf16.msra.mxu0 %v2405
        %2445 = vmatmul.bf16.gmra.mxu0 %v2305
        %v2446 = vpop.f32.mrf.mxu0
        %v2447 = vadd.f32 %v2340, %v2446
        %v2448 = vpop.f32.mrf.mxu0
        %2449 = vdwg.mxu0
        %2450 = vmatpush.bf16.msra.mxu0 %v2420
        %2451 = vmatpush.bf16.msra.mxu0 %v2419
        %2452 = vmatpush.bf16.msra.mxu0 %v2418
        %2453 = vmatpush.bf16.msra.mxu0 %v2417
        %2454 = vmatpush.bf16.msra.mxu0 %v2416
        %2455 = vmatpush.bf16.msra.mxu0 %v2415
        %2456 = vmatpush.bf16.msra.mxu0 %v2414
        %2457 = vmatpush.bf16.msra.mxu0 %v2413
        %2458 = vmatmul.bf16.gmra.mxu0 %v2306
        %v2459 = vpop.f32.mrf.mxu0
        %v2460 = vadd.f32 %v2447, %v2459
        %v2461 = vpop.f32.mrf.mxu0
        %2462 = vdwg.mxu0
        %v2463 = vadd.f32 %v2460, %v1995
        %s2464 = scalar_lea.vmem %s588, 4 [#allocation21]
        %2465 = vst [vmem:[%s2464] sm:$0xf] %v1893
        %2466 = vst [vmem:[%s581] sm:$0xff] %v2463
        %s2467 = sand.u32 %s282, 1
        %s2468 = scalar_lea.sflag [#allocation7], %s2467
        %s2469 = sand.u32 %s282, 1
        %s2470 = smul.addr %s2469, 8
        %s2471 = scalar_lea.vmem [#allocation20], %s2470
        %s2472 = sand.u32 %s310, 1
        %s2473 = scalar_lea.sflag [#allocation22], %s2472
        %s2474 = sand.u32 %s310, 1
        %s2475 = smul.addr %s2474, 8
        %s2476 = scalar_lea.vmem [#allocation21], %s2475
        // Predicated region
        $region101: #{_sioconv_ps_impl.1} parent=59 // pred_check
          %p2477 = pneg %p292
        $region102: #{_sioconv_ps_impl.1} parent=59 // pred_check_branch
          %2479 = sbr.rel (%p2477) target = $region104
        $region103: #{_sioconv_ps_impl.1} parent=59 // pred_region
          %2481 = vsyncadd %s2468, 0
          %s2482 = smul.addr %s42, 2
          %s2483 = sadd.s32 %s43, %s2482
          %s2484 = smul.addr %s2483, 8
          %s2485 = scalar_lea.hbm %s10, %s2484
          %s2487 = sshll.u32 %s2471, 4
          %s2488 = int_to_ptr.vmem [resolvable:$true] %s2487
          %s2489 = sshll.u32 %s2485, 4
          %s2490 = int_to_ptr.hbm [resolvable:$true] %s2489
          %2492 = dma.vmem_to_hbm [thread:$0]  %s2488, 128, %s2490, %s2468
        $region104: #{_sioconv_ps_impl.1} parent=59 // pred_fallthru
          _
        // Predicated region
        $region105: #{_sioconv_ps_impl.1} parent=59 // pred_check
          %p2493 = pneg %p320
        $region106: #{_sioconv_ps_impl.1} parent=59 // pred_check_branch
          %2495 = sbr.rel (%p2493) target = $region108
        $region107: #{_sioconv_ps_impl.1} parent=59 // pred_region
          %2497 = vsyncadd %s2473, 0
          %s2498 = smul.addr %s42, 4
          %s2499 = sadd.s32 %s43, %s2498
          %s2500 = smul.addr %s2499, 4
          %s2501 = scalar_lea.hbm %s11, %s2500
          %s2502 = sshll.u32 %s2476, 4
          %s2503 = int_to_ptr.vmem [resolvable:$true] %s2502
          %s2504 = sshll.u32 %s2501, 4
          %s2505 = int_to_ptr.hbm [resolvable:$true] %s2504
          %2510 = dma.vmem_to_hbm [thread:$0]  %s2503, 128, %s2505, %s2473, 64, 128, 4
        $region108: #{_sioconv_ps_impl.1} parent=59 // pred_fallthru
          _
      $region60: #{_sioconv_ps_impl.1} parent=5 // pred_fallthru
        _
      %p2511 = scmp.le.s32.totalorder 2, %s33
      // Predicated region
      $region109: #{_sioconv_ps_impl.1} parent=5 // pred_check
        %p2512 = pneg %p2511
      $region110: #{_sioconv_ps_impl.1} parent=5 // pred_check_branch
        %2514 = sbr.rel (%p2512) target = $region112
      $region111: #{_sioconv_ps_impl.1} parent=5 // pred_region
        %s2515 = ssub.s32 %s33, 2
        // Predicated region
        $region113: #{_sioconv_ps_impl.1} parent=111 // pred_check
          %p2516 = pneg %p298
        $region114: #{_sioconv_ps_impl.1} parent=111 // pred_check_branch
          %2518 = sbr.rel (%p2516) target = $region116
        $region115: #{_sioconv_ps_impl.1} parent=111 // pred_region
          %s2519 = sand.u32 %s283, 1
          %s2520 = scalar_lea.sflag [#allocation7], %s2519
          %s2521 = sand.u32 %s283, 1
          %s2522 = smul.addr %s2521, 8
          %s2523 = scalar_lea.vmem [#allocation20], %s2522
          %2525 = dma.done %s2520, 128
        $region116: #{_sioconv_ps_impl.1} parent=111 // pred_fallthru
          _
        // Predicated region
        $region117: #{_sioconv_ps_impl.1} parent=111 // pred_check
          %p2526 = pneg %p326
        $region118: #{_sioconv_ps_impl.1} parent=111 // pred_check_branch
          %2528 = sbr.rel (%p2526) target = $region120
        $region119: #{_sioconv_ps_impl.1} parent=111 // pred_region
          %s2529 = sand.u32 %s311, 1
          %s2530 = scalar_lea.sflag [#allocation22], %s2529
          %s2531 = sand.u32 %s311, 1
          %s2532 = smul.addr %s2531, 8
          %s2533 = scalar_lea.vmem [#allocation21], %s2532
          %2535 = dma.done %s2530, 128
        $region120: #{_sioconv_ps_impl.1} parent=111 // pred_fallthru
          _
      $region112: #{_sioconv_ps_impl.1} parent=5 // pred_fallthru
        _
    $region6: #{_sioconv_ps_impl.1} parent=1 // loop_footer
      %s37 = sadd.s32 1, %s33
    $region7: #{_sioconv_ps_impl.1} parent=1 // loop_footer_branch
      %32 = sbr.rel target = $region3
    $region8: #{_sioconv_ps_impl.1} parent=1 // loop_exit
      _
    %2536 = vsyncpa [#allocation6], 1
    %s2537 = scalar_lea.sflag [#allocation6], 1
    %2538 = vsyncpa %s2537, 1
    %2539 = vsyncpa [#allocation9], 1
    %s2540 = scalar_lea.sflag [#allocation9], 1
    %2541 = vsyncpa %s2540, 1
    %2542 = vsyncpa [#allocation12], 1
    %2543 = vsyncpa [#allocation15], 1
    %2544 = vsyncpa [#allocation18], 1
    %2545 = vsyncpa [#allocation7], 1
    %s2546 = scalar_lea.sflag [#allocation7], 1
    %2547 = vsyncpa %s2546, 1
    %2548 = vsyncpa [#allocation22], 1
    %s2549 = scalar_lea.sflag [#allocation22], 1
    %2550 = vsyncpa %s2549, 1

</llo_original>
